<compile_context>
chip_gen: v6e
topology: v6e:2x2x1
jax: 0.10.0
libtpu: 0.0.40
codegen_flags: <defaults>
</compile_context>

<pallas_src>
import math
import functools

import jax
import jax.numpy as jnp
from jax.experimental import pallas as pl
from jax.experimental.pallas import tpu as pltpu


# --------------------------------------------------------------------------
# Small helpers
# --------------------------------------------------------------------------
def _round_up(x: int, m: int) -> int:
    return ((x + m - 1) // m) * m


def _vmem_budget():
    """(vmem_limit_bytes, max_token_tile) derived from the chip's VMEM size."""
    cap = 64 * 1024 * 1024  # conservative fallback (v7x per-TC)
    try:
        cap = int(pltpu.get_tpu_info().vmem_capacity_bytes)
    except Exception:
        pass
    limit = max(32 * 1024 * 1024, min(cap - 16 * 1024 * 1024, 112 * 1024 * 1024))
    max_tile = 512 if cap >= 100 * 1024 * 1024 else 256
    return limit, max_tile


def _pick_token_tile(n: int, batch: int, max_tile: int, min_tile: int = 64):
    """Token tile T (multiple of 8) and padded length N_pad = ceil(n/T)*T.

    Prefers tiles that minimise padding, then larger tiles; when batch == 1 it
    tries to keep >= 2 token tiles so both v7x TensorCores get work.
    """
    n_lo = _round_up(max(n, 1), 8)
    hi = min(max_tile, n_lo)

    def search(lo, require_two_tiles):
        best = None
        for t in range(hi, lo - 1, -8):
            n_pad = _round_up(n, t)
            if require_two_tiles and n_pad // t < 2:
                continue
            cand = (n_pad - n, -t)          # min padding, then max tile
            if best is None or cand < best:
                best = cand
        if best is None:
            return None
        t = -best[1]
        return t, _round_up(n, t)

    res = None
    if batch < 2 and n_lo > 8:
        res = search(8, True)
    if res is None:
        res = search(min(min_tile, hi), False)
    return res


def _pick_head_group(num_heads: int, head_dim: int) -> int:
    """Heads per attention block so the block lane width is 128-aligned
    (or equals the full hidden size)."""
    if head_dim % 128 == 0:
        return 1
    for hg in range(1, num_heads + 1):
        if num_heads % hg == 0 and (hg * head_dim) % 128 == 0:
            return hg
    return num_heads  # block width == H -> full-dim block, always legal


def _const_spec(shape):
    """Grid-invariant operand: single-buffered (no useless double-buffering)."""
    index_map = lambda *_: (0,) * len(shape)
    try:
        return pl.BlockSpec(shape, index_map, pipeline_mode=pl.Buffered(1))
    except (TypeError, AttributeError):
        return pl.BlockSpec(shape, index_map)


# --------------------------------------------------------------------------
# Kernel 1: LayerNorm1 + QKV projection (per (batch, token-tile)).
# --------------------------------------------------------------------------
def _ln1_qkv_kernel(x_ref, g_ref, b_ref, wq_ref, wk_ref, wv_ref,
                    q_ref, k_ref, v_ref, *, eps: float):
    x = x_ref[0].astype(jnp.float32)                        # (T, H)
    mean = jnp.mean(x, axis=-1, keepdims=True)
    var = jnp.mean((x - mean) ** 2, axis=-1, keepdims=True)
    xn = (x - mean) * jax.lax.rsqrt(var + eps)
    xn = (xn * g_ref[...] + b_ref[...]).astype(jnp.bfloat16)  # f32 LN stats
    q_ref[0] = jnp.dot(xn, wq_ref[...],
                       preferred_element_type=jnp.float32).astype(q_ref.dtype)
    k_ref[0] = jnp.dot(xn, wk_ref[...],
                       preferred_element_type=jnp.float32).astype(k_ref.dtype)
    v_ref[0] = jnp.dot(xn, wv_ref[...],
                       preferred_element_type=jnp.float32).astype(v_ref.dtype)


# --------------------------------------------------------------------------
# Kernel 2: flash attention core.  Grid (B, head_group, q_block, kv_block);
# kv_block is the reduction axis (online softmax, scratch accumulators).
# --------------------------------------------------------------------------
def _attn_kernel(q_ref, k_ref, v_ref, o_ref, m_sc, l_sc, acc_sc, *,
                 heads_per_blk: int, head_dim: int, scale: float,
                 n_tokens: int, kv_tile: int, masked: bool):
    ki = pl.program_id(3)

    @pl.when(ki == 0)
    def _init():
        m_sc[...] = jnp.full_like(m_sc, -1e30)
        l_sc[...] = jnp.zeros_like(l_sc)
        acc_sc[...] = jnp.zeros_like(acc_sc)

    qb = q_ref[0]                                           # (TQ, hg*d) bf16
    kb = k_ref[0]                                           # (TK, hg*d)
    vb = v_ref[0]

    if masked:  # static: only traced when N was padded to the token tile
        kv_idx = ki * kv_tile + jax.lax.broadcasted_iota(jnp.int32, (1, kv_tile), 1)
        kv_ok = kv_idx < n_tokens

    for h in range(heads_per_blk):                          # small static unroll
        lo = h * head_dim
        q = qb[:, lo:lo + head_dim]
        k = kb[:, lo:lo + head_dim]
        v = vb[:, lo:lo + head_dim]
        s = jax.lax.dot_general(q, k, (((1,), (1,)), ((), ())),
                                preferred_element_type=jnp.float32) * scale
        if masked:
            s = jnp.where(kv_ok, s, -1e30)
        m_prev = m_sc[h]                                    # (TQ, 1) f32
        m_new = jnp.maximum(m_prev, jnp.max(s, axis=-1, keepdims=True))
        alpha = jnp.exp(m_prev - m_new)
        p = jnp.exp(s - m_new)
        l_sc[h] = alpha * l_sc[h] + jnp.sum(p, axis=-1, keepdims=True)
        acc_sc[h] = alpha * acc_sc[h] + jnp.dot(
            p.astype(jnp.bfloat16), v, preferred_element_type=jnp.float32)
        m_sc[h] = m_new

    @pl.when(ki == pl.num_programs(3) - 1)
    def _finalize():
        outs = []
        for h in range(heads_per_blk):
            inv = pl.reciprocal(l_sc[h], approx=True)
            outs.append((acc_sc[h] * inv).astype(o_ref.dtype))
        # single lane-dense store of the whole head group
        o_ref[0] = outs[0] if len(outs) == 1 else jnp.concatenate(outs, axis=-1)


# --------------------------------------------------------------------------
# Kernel 3: output projection + residual + LayerNorm2 + MLP + residual.
# --------------------------------------------------------------------------
def _proj_mlp_kernel(x_ref, a_ref, wo_ref, bo_ref, g2_ref, be2_ref,
                     w1_ref, b1_ref, w2_ref, b2_ref, o_ref, *, eps: float):
    inv_sqrt2 = 1.0 / math.sqrt(2.0)
    x = x_ref[0].astype(jnp.float32)                        # (T, H)
    proj = jnp.dot(a_ref[0], wo_ref[...],
                   preferred_element_type=jnp.float32) + bo_ref[...]
    x1 = x + proj                                           # residual 1 (f32)

    mean = jnp.mean(x1, axis=-1, keepdims=True)
    var = jnp.mean((x1 - mean) ** 2, axis=-1, keepdims=True)
    xn2 = (x1 - mean) * jax.lax.rsqrt(var + eps)
    xn2 = xn2 * g2_ref[...] + be2_ref[...]

    h1 = jnp.dot(xn2.astype(jnp.bfloat16), w1_ref[...],
                 preferred_element_type=jnp.float32) + b1_ref[...]
    # Exact-erf GELU keeps parity with PyTorch nn.GELU.
    # TODO(synk): switch to tanh-approx GELU (EUP slot) if the accuracy budget
    # allows and a bundle dump shows erf's VALU polynomial beating the MXU time.
    g1 = 0.5 * h1 * (1.0 + jax.lax.erf(h1 * inv_sqrt2))
    h2 = jnp.dot(g1.astype(jnp.bfloat16), w2_ref[...],
                 preferred_element_type=jnp.float32) + b2_ref[...]

    o_ref[0] = (x1 + h2).astype(o_ref.dtype)                # residual 2
    # NOTE: for ViT-L/H on v7x (H>=1024, M>=4096) this call should grow an
    # "arbitrary" M-tiling grid axis; unnecessary at ViT-B / 128-MiB parts.


# --------------------------------------------------------------------------
# Wrapper
# --------------------------------------------------------------------------
def transformer_block(x, params, *, num_heads: int, eps: float = 1e-5):
    """x: (B, N, H) float32. params: dict of weights (see init_params)."""
    B, N, H = x.shape
    M = params["w1"].shape[1]
    d = H // num_heads
    scale = float(d) ** -0.5
    bf = jnp.bfloat16

    vmem_limit, max_tile = _vmem_budget()
    T, N_pad = _pick_token_tile(N, B, max_tile)
    nt = N_pad // T
    pad = N_pad - N
    xp = jnp.pad(x, ((0, 0), (0, pad), (0, 0))) if pad else x

    hg = _pick_head_group(num_heads, d)      # heads per attention block
    G = num_heads // hg
    gw = hg * d                              # block lane width (128-mult or H)

    # Cast / split weights once (bf16 operands, f32 accumulation in-kernel).
    wqkv = params["wqkv"].astype(bf)
    wq, wk, wv = wqkv[:, :H], wqkv[:, H:2 * H], wqkv[:, 2 * H:]
    wo = params["wo"].astype(bf)
    w1 = params["w1"].astype(bf)
    w2 = params["w2"].astype(bf)

    def cparams(sem):
        return pltpu.CompilerParams(dimension_semantics=sem,
                                    vmem_limit_bytes=vmem_limit)

    def tok(last):
        return pl.BlockSpec((1, T, last), lambda b, t: (b, t, 0))

    # ---- 1) LN1 + QKV projection -> q, k, v each (B, N_pad, H) bf16 ----
    ce1 = pl.CostEstimate(
        flops=2 * B * N_pad * H * 3 * H + 8 * B * N_pad * H,
        transcendentals=B * N_pad,
        bytes_accessed=B * N_pad * H * 4 + 3 * H * H * 2 + 3 * B * N_pad * H * 2)
    q, k, v = pl.pallas_call(
        functools.partial(_ln1_qkv_kernel, eps=eps),
        out_shape=tuple(jax.ShapeDtypeStruct((B, N_pad, H), bf) for _ in range(3)),
        grid=(B, nt),
        in_specs=[tok(H),
                  _const_spec((1, H)), _const_spec((1, H)),
                  _const_spec((H, H)), _const_spec((H, H)), _const_spec((H, H))],
        out_specs=(tok(H), tok(H), tok(H)),
        compiler_params=cparams(("parallel", "parallel")),
        cost_estimate=ce1,
    )(xp, params["ln1_g"], params["ln1_b"], wq, wk, wv)

    # ---- 2) flash attention core: head-group column blocks, no transposes ----
    ce2 = pl.CostEstimate(
        flops=4 * B * num_heads * N_pad * N_pad * d
              + 5 * B * num_heads * N_pad * N_pad,
        transcendentals=2 * B * num_heads * N_pad * N_pad,
        bytes_accessed=4 * B * N_pad * H * 2)
    q_spec = pl.BlockSpec((1, T, gw), lambda b, g, qi, ki: (b, qi, g))
    kv_spec = pl.BlockSpec((1, T, gw), lambda b, g, qi, ki: (b, ki, g))
    o_spec = pl.BlockSpec((1, T, gw), lambda b, g, qi, ki: (b, qi, g))
    attn = pl.pallas_call(
        functools.partial(_attn_kernel, heads_per_blk=hg, head_dim=d,
                          scale=scale, n_tokens=N, kv_tile=T, masked=pad > 0),
        out_shape=jax.ShapeDtypeStruct((B, N_pad, H), bf),
        grid=(B, G, nt, nt),
        in_specs=[q_spec, kv_spec, kv_spec],
        out_specs=o_spec,
        scratch_shapes=[pltpu.VMEM((hg, T, 1), jnp.float32),   # m (running max)
                        pltpu.VMEM((hg, T, 1), jnp.float32),   # l (running sum)
                        pltpu.VMEM((hg, T, d), jnp.float32)],  # acc
        compiler_params=cparams(("parallel", "parallel", "parallel", "arbitrary")),
        cost_estimate=ce2,
    )(q, k, v)

    # ---- 3) Wo projection + residual + LN2 + MLP + residual ----
    ce3 = pl.CostEstimate(
        flops=2 * B * N_pad * (H * H + 2 * H * M),
        transcendentals=B * N_pad * M,
        bytes_accessed=2 * B * N_pad * H * 4 + B * N_pad * H * 2
                       + (H * H + 2 * H * M) * 2)
    out = pl.pallas_call(
        functools.partial(_proj_mlp_kernel, eps=eps),
        out_shape=jax.ShapeDtypeStruct((B, N_pad, H), x.dtype),
        grid=(B, nt),
        in_specs=[tok(H),                 # x (original input, residual)
                  tok(H),                 # attention context (bf16)
                  _const_spec((H, H)),    # Wo
                  _const_spec((1, H)),    # bo
                  _const_spec((1, H)),    # ln2 gamma
                  _const_spec((1, H)),    # ln2 beta
                  _const_spec((H, M)),    # W1
                  _const_spec((1, M)),    # b1
                  _const_spec((M, H)),    # W2
                  _const_spec((1, H))],   # b2
        out_specs=tok(H),
        compiler_params=cparams(("parallel", "parallel")),
        cost_estimate=ce3,
    )(xp, attn, wo, params["bo"], params["ln2_g"], params["ln2_b"],
      w1, params["b1"], w2, params["b2"])

    return out[:, :N, :] if pad else out


def init_params(key, hidden_size: int, mlp_dim: int):
    """Deterministic synthetic parameters (shapes per the PyTorch module)."""
    ks = jax.random.split(key, 8)
    s = 0.02
    return {
        "ln1_g": jnp.ones((1, hidden_size), jnp.float32),
        "ln1_b": jnp.zeros((1, hidden_size), jnp.float32),
        "wqkv": s * jax.random.normal(ks[0], (hidden_size, 3 * hidden_size), jnp.float32),
        "wo":   s * jax.random.normal(ks[1], (hidden_size, hidden_size), jnp.float32),
        "bo":   s * jax.random.normal(ks[2], (1, hidden_size), jnp.float32),
        "ln2_g": jnp.ones((1, hidden_size), jnp.float32),
        "ln2_b": jnp.zeros((1, hidden_size), jnp.float32),
        "w1":   s * jax.random.normal(ks[3], (hidden_size, mlp_dim), jnp.float32),
        "b1":   s * jax.random.normal(ks[4], (1, mlp_dim), jnp.float32),
        "w2":   s * jax.random.normal(ks[5], (mlp_dim, hidden_size), jnp.float32),
        "b2":   s * jax.random.normal(ks[6], (1, hidden_size), jnp.float32),
    }


def _reference(x, p, num_heads, eps=1e-5):
    """Pure-JAX f32 reference mirroring the PyTorch forward."""
    B, N, H = x.shape
    d = H // num_heads

    def ln(y, g, b):
        m = jnp.mean(y, -1, keepdims=True)
        v = jnp.mean((y - m) ** 2, -1, keepdims=True)
        return (y - m) / jnp.sqrt(v + eps) * g + b

    xn = ln(x, p["ln1_g"], p["ln1_b"])
    qkv = xn @ p["wqkv"]                                   # (B, N, 3H)
    qkv = qkv.reshape(B, N, 3, num_heads, d).transpose(2, 0, 3, 1, 4)
    q, k, v = qkv[0], qkv[1], qkv[2]                       # (B, h, N, d)
    att = jax.nn.softmax(jnp.einsum("bhxd,bhyd->bhxy", q, k) * d ** -0.5, axis=-1)
    o = jnp.einsum("bhxy,bhyd->bhxd", att, v).transpose(0, 2, 1, 3).reshape(B, N, H)
    x = x + (o @ p["wo"] + p["bo"])
    xn2 = ln(x, p["ln2_g"], p["ln2_b"])
    h1 = xn2 @ p["w1"] + p["b1"]
    g1 = 0.5 * h1 * (1.0 + jax.lax.erf(h1 / jnp.sqrt(2.0)))
    return x + (g1 @ p["w2"] + p["b2"])


if __name__ == "__main__":
    def run_case(B, N, hidden_size, mlp_dim, num_heads, seed):
        key = jax.random.PRNGKey(seed)
        kx, kp = jax.random.split(key)
        x = jax.random.normal(kx, (B, N, hidden_size), jnp.float32)
        params = init_params(kp, hidden_size, mlp_dim)
        fwd = jax.jit(functools.partial(transformer_block, num_heads=num_heads))
        out = jax.block_until_ready(fwd(x, params))
        ref = _reference(x, params, num_heads)
        assert out.shape == (B, N, hidden_size)
        # bf16 matmul operands + approx reciprocal -> loosened tolerance.
        assert jnp.allclose(out, ref, atol=2e-2, rtol=2e-2), \
            f"mismatch vs reference (B={B}, N={N})"

    # Primary small case (exact tiling, no padding path).
    run_case(B=2, N=8, hidden_size=32, mlp_dim=64, num_heads=4, seed=0)
    # Padded / masked path: B=1 (token tiles split for megacore), N % 8 != 0.
    run_case(B=1, N=13, hidden_size=32, mlp_dim=64, num_heads=4, seed=1)
    print("KERNEL_OK")
</pallas_src>

<mosaic_0001>
module attributes {stable_mosaic.version = 11 : i64} {
  func.func @_ln1_qkv_kernel(%arg0: i32, %arg1: i32, %arg2: memref<1x8x32xf32, #tpu.memory_space<vmem>>, %arg3: memref<1x32xf32, #tpu.memory_space<vmem>>, %arg4: memref<1x32xf32, #tpu.memory_space<vmem>>, %arg5: memref<32x32xbf16, #tpu.memory_space<vmem>>, %arg6: memref<32x32xbf16, #tpu.memory_space<vmem>>, %arg7: memref<32x32xbf16, #tpu.memory_space<vmem>>, %arg8: memref<1x8x32xbf16, #tpu.memory_space<vmem>>, %arg9: memref<1x8x32xbf16, #tpu.memory_space<vmem>>, %arg10: memref<1x8x32xbf16, #tpu.memory_space<vmem>>) attributes {dimension_semantics = [#tpu.dimension_semantics<parallel>, #tpu.dimension_semantics<parallel>], iteration_bounds = array<i64: 2, 1>, scalar_prefetch = 0 : i64, scratch_operands = 0 : i64, tpu.core_type = #tpu.core_type<tc>, window_params = [{transform_indices = @transform_0, window_bounds = array<i64: 1, 8, 32>}, {pipeline_mode = #tpu.pipeline_mode<synchronous>, transform_indices = @transform_1, window_bounds = array<i64: 1, 32>}, {pipeline_mode = #tpu.pipeline_mode<synchronous>, transform_indices = @transform_2, window_bounds = array<i64: 1, 32>}, {pipeline_mode = #tpu.pipeline_mode<synchronous>, transform_indices = @transform_3, window_bounds = array<i64: 32, 32>}, {pipeline_mode = #tpu.pipeline_mode<synchronous>, transform_indices = @transform_4, window_bounds = array<i64: 32, 32>}, {pipeline_mode = #tpu.pipeline_mode<synchronous>, transform_indices = @transform_5, window_bounds = array<i64: 32, 32>}, {transform_indices = @transform_6, window_bounds = array<i64: 1, 8, 32>}, {transform_indices = @transform_7, window_bounds = array<i64: 1, 8, 32>}, {transform_indices = @transform_8, window_bounds = array<i64: 1, 8, 32>}]} {
    %c0 = arith.constant 0 : index
    %c0_0 = arith.constant 0 : index
    %c0_1 = arith.constant 0 : index
    %0 = vector.load %arg2[%c0, %c0_0, %c0_1] : memref<1x8x32xf32, #tpu.memory_space<vmem>>, vector<1x8x32xf32>
    %1 = vector.shape_cast %0 : vector<1x8x32xf32> to vector<8x32xf32>
    %cst = arith.constant dense<0.000000e+00> : vector<8xf32>
    %2 = vector.multi_reduction <add>, %1, %cst [1] : vector<8x32xf32> to vector<8xf32>
    %3 = vector.shape_cast %2 : vector<8xf32> to vector<8x1xf32>
    %cst_2 = arith.constant 3.200000e+01 : f32
    %4 = vector.broadcast %cst_2 : f32 to vector<8x1xf32>
    %5 = arith.divf %3, %4 : vector<8x1xf32>
    %6 = vector.broadcast %5 : vector<8x1xf32> to vector<8x32xf32>
    %7 = arith.subf %1, %6 : vector<8x32xf32>
    %8 = arith.mulf %7, %7 : vector<8x32xf32>
    %cst_3 = arith.constant dense<0.000000e+00> : vector<8xf32>
    %9 = vector.multi_reduction <add>, %8, %cst_3 [1] : vector<8x32xf32> to vector<8xf32>
    %10 = vector.shape_cast %9 : vector<8xf32> to vector<8x1xf32>
    %cst_4 = arith.constant 3.200000e+01 : f32
    %11 = vector.broadcast %cst_4 : f32 to vector<8x1xf32>
    %12 = arith.divf %10, %11 : vector<8x1xf32>
    %13 = vector.broadcast %5 : vector<8x1xf32> to vector<8x32xf32>
    %14 = arith.subf %1, %13 : vector<8x32xf32>
    %cst_5 = arith.constant 9.99999974E-6 : f32
    %15 = vector.broadcast %cst_5 : f32 to vector<8x1xf32>
    %16 = arith.addf %12, %15 : vector<8x1xf32>
    %17 = math.rsqrt %16 : vector<8x1xf32>
    %18 = vector.broadcast %17 : vector<8x1xf32> to vector<8x32xf32>
    %19 = arith.mulf %14, %18 : vector<8x32xf32>
    %c0_6 = arith.constant 0 : index
    %c0_7 = arith.constant 0 : index
    %20 = vector.load %arg3[%c0_6, %c0_7] : memref<1x32xf32, #tpu.memory_space<vmem>>, vector<1x32xf32>
    %21 = vector.broadcast %20 : vector<1x32xf32> to vector<8x32xf32>
    %22 = arith.mulf %19, %21 : vector<8x32xf32>
    %c0_8 = arith.constant 0 : index
    %c0_9 = arith.constant 0 : index
    %23 = vector.load %arg4[%c0_8, %c0_9] : memref<1x32xf32, #tpu.memory_space<vmem>>, vector<1x32xf32>
    %24 = vector.broadcast %23 : vector<1x32xf32> to vector<8x32xf32>
    %25 = arith.addf %22, %24 : vector<8x32xf32>
    %26 = arith.truncf %25 : vector<8x32xf32> to vector<8x32xbf16>
    %c0_10 = arith.constant 0 : index
    %c0_11 = arith.constant 0 : index
    %27 = vector.load %arg5[%c0_10, %c0_11] : memref<32x32xbf16, #tpu.memory_space<vmem>>, vector<32x32xbf16>
    %cst_12 = arith.constant dense<0.000000e+00> : vector<8x32xf32>
    %28 = tpu.matmul %26, %27, %cst_12 {dimension_numbers = #tpu.dot_dimension_numbers<[1], [0], [0], [1], [0, 0, 1, 1], [], []>} : vector<8x32xbf16>, vector<32x32xbf16>, vector<8x32xf32> -> vector<8x32xf32>
    %29 = arith.truncf %28 : vector<8x32xf32> to vector<8x32xbf16>
    %c0_13 = arith.constant 0 : index
    %c0_14 = arith.constant 0 : index
    %c0_15 = arith.constant 0 : index
    %30 = vector.load %arg8[%c0_13, %c0_14, %c0_15] : memref<1x8x32xbf16, #tpu.memory_space<vmem>>, vector<1x8x32xbf16>
    %31 = vector.shape_cast %30 : vector<1x8x32xbf16> to vector<8x32xbf16>
    %32 = vector.shape_cast %29 : vector<8x32xbf16> to vector<1x8x32xbf16>
    tpu.vector_store %arg8[%c0_13, %c0_14, %c0_15], %32 {strides = array<i32>} : memref<1x8x32xbf16, #tpu.memory_space<vmem>>, vector<1x8x32xbf16>,
    %c0_16 = arith.constant 0 : index
    %c0_17 = arith.constant 0 : index
    %33 = vector.load %arg6[%c0_16, %c0_17] : memref<32x32xbf16, #tpu.memory_space<vmem>>, vector<32x32xbf16>
    %cst_18 = arith.constant dense<0.000000e+00> : vector<8x32xf32>
    %34 = tpu.matmul %26, %33, %cst_18 {dimension_numbers = #tpu.dot_dimension_numbers<[1], [0], [0], [1], [0, 0, 1, 1], [], []>} : vector<8x32xbf16>, vector<32x32xbf16>, vector<8x32xf32> -> vector<8x32xf32>
    %35 = arith.truncf %34 : vector<8x32xf32> to vector<8x32xbf16>
    %c0_19 = arith.constant 0 : index
    %c0_20 = arith.constant 0 : index
    %c0_21 = arith.constant 0 : index
    %36 = vector.load %arg9[%c0_19, %c0_20, %c0_21] : memref<1x8x32xbf16, #tpu.memory_space<vmem>>, vector<1x8x32xbf16>
    %37 = vector.shape_cast %36 : vector<1x8x32xbf16> to vector<8x32xbf16>
    %38 = vector.shape_cast %35 : vector<8x32xbf16> to vector<1x8x32xbf16>
    tpu.vector_store %arg9[%c0_19, %c0_20, %c0_21], %38 {strides = array<i32>} : memref<1x8x32xbf16, #tpu.memory_space<vmem>>, vector<1x8x32xbf16>,
    %c0_22 = arith.constant 0 : index
    %c0_23 = arith.constant 0 : index
    %39 = vector.load %arg7[%c0_22, %c0_23] : memref<32x32xbf16, #tpu.memory_space<vmem>>, vector<32x32xbf16>
    %cst_24 = arith.constant dense<0.000000e+00> : vector<8x32xf32>
    %40 = tpu.matmul %26, %39, %cst_24 {dimension_numbers = #tpu.dot_dimension_numbers<[1], [0], [0], [1], [0, 0, 1, 1], [], []>} : vector<8x32xbf16>, vector<32x32xbf16>, vector<8x32xf32> -> vector<8x32xf32>
    %41 = arith.truncf %40 : vector<8x32xf32> to vector<8x32xbf16>
    %c0_25 = arith.constant 0 : index
    %c0_26 = arith.constant 0 : index
    %c0_27 = arith.constant 0 : index
    %42 = vector.load %arg10[%c0_25, %c0_26, %c0_27] : memref<1x8x32xbf16, #tpu.memory_space<vmem>>, vector<1x8x32xbf16>
    %43 = vector.shape_cast %42 : vector<1x8x32xbf16> to vector<8x32xbf16>
    %44 = vector.shape_cast %41 : vector<8x32xbf16> to vector<1x8x32xbf16>
    tpu.vector_store %arg10[%c0_25, %c0_26, %c0_27], %44 {strides = array<i32>} : memref<1x8x32xbf16, #tpu.memory_space<vmem>>, vector<1x8x32xbf16>,
    return
  }
  func.func @transform_0(%arg0: i32, %arg1: i32) -> (i32, i32, i32) {
    %c0_i32 = arith.constant 0 : i32
    %c0_i32_0 = arith.constant 0 : i32
    return %arg0, %arg1, %c0_i32 : i32, i32, i32
  }
  func.func @transform_1(%arg0: i32, %arg1: i32) -> (i32, i32) {
    %c0_i32 = arith.constant 0 : i32
    %c0_i32_0 = arith.constant 0 : i32
    %c0_i32_1 = arith.constant 0 : i32
    return %c0_i32, %c0_i32_0 : i32, i32
  }
  func.func @transform_2(%arg0: i32, %arg1: i32) -> (i32, i32) {
    %c0_i32 = arith.constant 0 : i32
    %c0_i32_0 = arith.constant 0 : i32
    %c0_i32_1 = arith.constant 0 : i32
    return %c0_i32, %c0_i32_0 : i32, i32
  }
  func.func @transform_3(%arg0: i32, %arg1: i32) -> (i32, i32) {
    %c0_i32 = arith.constant 0 : i32
    %c0_i32_0 = arith.constant 0 : i32
    %c0_i32_1 = arith.constant 0 : i32
    return %c0_i32, %c0_i32_0 : i32, i32
  }
  func.func @transform_4(%arg0: i32, %arg1: i32) -> (i32, i32) {
    %c0_i32 = arith.constant 0 : i32
    %c0_i32_0 = arith.constant 0 : i32
    %c0_i32_1 = arith.constant 0 : i32
    return %c0_i32, %c0_i32_0 : i32, i32
  }
  func.func @transform_5(%arg0: i32, %arg1: i32) -> (i32, i32) {
    %c0_i32 = arith.constant 0 : i32
    %c0_i32_0 = arith.constant 0 : i32
    %c0_i32_1 = arith.constant 0 : i32
    return %c0_i32, %c0_i32_0 : i32, i32
  }
  func.func @transform_6(%arg0: i32, %arg1: i32) -> (i32, i32, i32) {
    %c0_i32 = arith.constant 0 : i32
    %c0_i32_0 = arith.constant 0 : i32
    return %arg0, %arg1, %c0_i32 : i32, i32, i32
  }
  func.func @transform_7(%arg0: i32, %arg1: i32) -> (i32, i32, i32) {
    %c0_i32 = arith.constant 0 : i32
    %c0_i32_0 = arith.constant 0 : i32
    return %arg0, %arg1, %c0_i32 : i32, i32, i32
  }
  func.func @transform_8(%arg0: i32, %arg1: i32) -> (i32, i32, i32) {
    %c0_i32 = arith.constant 0 : i32
    %c0_i32_0 = arith.constant 0 : i32
    return %arg0, %arg1, %c0_i32 : i32, i32, i32
  }
}

module attributes {stable_mosaic.version = 11 : i64} {
  func.func @_attn_kernel(%arg0: i32, %arg1: i32, %arg2: i32, %arg3: i32, %arg4: memref<1x8x32xbf16, #tpu.memory_space<vmem>>, %arg5: memref<1x8x32xbf16, #tpu.memory_space<vmem>>, %arg6: memref<1x8x32xbf16, #tpu.memory_space<vmem>>, %arg7: memref<1x8x32xbf16, #tpu.memory_space<vmem>>, %arg8: memref<4x8x1xf32, #tpu.memory_space<vmem>>, %arg9: memref<4x8x1xf32, #tpu.memory_space<vmem>>, %arg10: memref<4x8x8xf32, #tpu.memory_space<vmem>>) attributes {dimension_semantics = [#tpu.dimension_semantics<parallel>, #tpu.dimension_semantics<parallel>, #tpu.dimension_semantics<parallel>, #tpu.dimension_semantics<arbitrary>], iteration_bounds = array<i64: 2, 1, 1, 1>, scalar_prefetch = 0 : i64, scratch_operands = 3 : i64, tpu.core_type = #tpu.core_type<tc>, window_params = [{transform_indices = @transform_0, window_bounds = array<i64: 1, 8, 32>}, {transform_indices = @transform_1, window_bounds = array<i64: 1, 8, 32>}, {transform_indices = @transform_2, window_bounds = array<i64: 1, 8, 32>}, {transform_indices = @transform_3, window_bounds = array<i64: 1, 8, 32>}]} {
    %c0_i32 = arith.constant 0 : i32
    %0 = arith.cmpi eq, %arg3, %c0_i32 : i32
    %1 = arith.extui %0 : i1 to i32
    %c0_i32_0 = arith.constant 0 : i32
    %2 = arith.cmpi ne, %1, %c0_i32_0 : i32
    scf.if %2 {
      %cst_99 = arith.constant -1.000000e+30 : f32
      %164 = vector.broadcast %cst_99 : f32 to vector<4x8x1xf32>
      %c0_100 = arith.constant 0 : index
      %c0_101 = arith.constant 0 : index
      %c0_102 = arith.constant 0 : index
      %165 = vector.load %arg8[%c0_100, %c0_101, %c0_102] : memref<4x8x1xf32, #tpu.memory_space<vmem>>, vector<4x8x1xf32>
      tpu.vector_store %arg8[%c0_100, %c0_101, %c0_102], %164 {strides = array<i32>} : memref<4x8x1xf32, #tpu.memory_space<vmem>>, vector<4x8x1xf32>,
      %cst_103 = arith.constant 0.000000e+00 : f32
      %166 = vector.broadcast %cst_103 : f32 to vector<4x8x1xf32>
      %c0_104 = arith.constant 0 : index
      %c0_105 = arith.constant 0 : index
      %c0_106 = arith.constant 0 : index
      %167 = vector.load %arg9[%c0_104, %c0_105, %c0_106] : memref<4x8x1xf32, #tpu.memory_space<vmem>>, vector<4x8x1xf32>
      tpu.vector_store %arg9[%c0_104, %c0_105, %c0_106], %166 {strides = array<i32>} : memref<4x8x1xf32, #tpu.memory_space<vmem>>, vector<4x8x1xf32>,
      %cst_107 = arith.constant 0.000000e+00 : f32
      %168 = vector.broadcast %cst_107 : f32 to vector<4x8x8xf32>
      %c0_108 = arith.constant 0 : index
      %c0_109 = arith.constant 0 : index
      %c0_110 = arith.constant 0 : index
      %169 = vector.load %arg10[%c0_108, %c0_109, %c0_110] : memref<4x8x8xf32, #tpu.memory_space<vmem>>, vector<4x8x8xf32>
      tpu.vector_store %arg10[%c0_108, %c0_109, %c0_110], %168 {strides = array<i32>} : memref<4x8x8xf32, #tpu.memory_space<vmem>>, vector<4x8x8xf32>,
    } else {
    }
    %c0 = arith.constant 0 : index
    %c0_1 = arith.constant 0 : index
    %c0_2 = arith.constant 0 : index
    %3 = vector.load %arg4[%c0, %c0_1, %c0_2] : memref<1x8x32xbf16, #tpu.memory_space<vmem>>, vector<1x8x32xbf16>
    %4 = vector.shape_cast %3 : vector<1x8x32xbf16> to vector<8x32xbf16>
    %c0_3 = arith.constant 0 : index
    %c0_4 = arith.constant 0 : index
    %c0_5 = arith.constant 0 : index
    %5 = vector.load %arg5[%c0_3, %c0_4, %c0_5] : memref<1x8x32xbf16, #tpu.memory_space<vmem>>, vector<1x8x32xbf16>
    %6 = vector.shape_cast %5 : vector<1x8x32xbf16> to vector<8x32xbf16>
    %c0_6 = arith.constant 0 : index
    %c0_7 = arith.constant 0 : index
    %c0_8 = arith.constant 0 : index
    %7 = vector.load %arg6[%c0_6, %c0_7, %c0_8] : memref<1x8x32xbf16, #tpu.memory_space<vmem>>, vector<1x8x32xbf16>
    %8 = vector.shape_cast %7 : vector<1x8x32xbf16> to vector<8x32xbf16>
    %9 = vector.extract_strided_slice %4 {offsets = [0, 0], sizes = [8, 8], strides = [1, 1]} : vector<8x32xbf16> to vector<8x8xbf16>
    %10 = vector.extract_strided_slice %6 {offsets = [0, 0], sizes = [8, 8], strides = [1, 1]} : vector<8x32xbf16> to vector<8x8xbf16>
    %11 = vector.extract_strided_slice %8 {offsets = [0, 0], sizes = [8, 8], strides = [1, 1]} : vector<8x32xbf16> to vector<8x8xbf16>
    %cst = arith.constant dense<0.000000e+00> : vector<8x8xf32>
    %12 = tpu.matmul %9, %10, %cst {dimension_numbers = #tpu.dot_dimension_numbers<[1], [1], [0], [0], [0, 0, 1, 0], [], []>} : vector<8x8xbf16>, vector<8x8xbf16>, vector<8x8xf32> -> vector<8x8xf32>
    %cst_9 = arith.constant 0.353553385 : f32
    %13 = vector.broadcast %cst_9 : f32 to vector<8x8xf32>
    %14 = arith.mulf %12, %13 : vector<8x8xf32>
    %c0_10 = arith.constant 0 : index
    %c0_11 = arith.constant 0 : index
    %c0_12 = arith.constant 0 : index
    %15 = vector.load %arg8[%c0_10, %c0_11, %c0_12] : memref<4x8x1xf32, #tpu.memory_space<vmem>>, vector<1x8x1xf32>
    %16 = vector.shape_cast %15 : vector<1x8x1xf32> to vector<8x1xf32>
    %cst_13 = arith.constant dense<0xFF800000> : vector<8xf32>
    %17 = vector.multi_reduction <maximumf>, %14, %cst_13 [1] : vector<8x8xf32> to vector<8xf32>
    %18 = vector.shape_cast %17 : vector<8xf32> to vector<8x1xf32>
    %19 = arith.maximumf %16, %18 : vector<8x1xf32>
    %20 = arith.subf %16, %19 : vector<8x1xf32>
    %21 = math.exp %20 : vector<8x1xf32>
    %22 = vector.broadcast %19 : vector<8x1xf32> to vector<8x8xf32>
    %23 = arith.subf %14, %22 : vector<8x8xf32>
    %24 = math.exp %23 : vector<8x8xf32>
    %c0_14 = arith.constant 0 : index
    %c0_15 = arith.constant 0 : index
    %c0_16 = arith.constant 0 : index
    %25 = vector.load %arg9[%c0_14, %c0_15, %c0_16] : memref<4x8x1xf32, #tpu.memory_space<vmem>>, vector<1x8x1xf32>
    %26 = vector.shape_cast %25 : vector<1x8x1xf32> to vector<8x1xf32>
    %27 = arith.mulf %21, %26 : vector<8x1xf32>
    %cst_17 = arith.constant dense<0.000000e+00> : vector<8xf32>
    %28 = vector.multi_reduction <add>, %24, %cst_17 [1] : vector<8x8xf32> to vector<8xf32>
    %29 = vector.shape_cast %28 : vector<8xf32> to vector<8x1xf32>
    %30 = arith.addf %27, %29 : vector<8x1xf32>
    %c0_18 = arith.constant 0 : index
    %c0_19 = arith.constant 0 : index
    %c0_20 = arith.constant 0 : index
    %31 = vector.load %arg9[%c0_18, %c0_19, %c0_20] : memref<4x8x1xf32, #tpu.memory_space<vmem>>, vector<1x8x1xf32>
    %32 = vector.shape_cast %31 : vector<1x8x1xf32> to vector<8x1xf32>
    %33 = vector.shape_cast %30 : vector<8x1xf32> to vector<1x8x1xf32>
    tpu.vector_store %arg9[%c0_18, %c0_19, %c0_20], %33 {strides = array<i32>} : memref<4x8x1xf32, #tpu.memory_space<vmem>>, vector<1x8x1xf32>,
    %c0_21 = arith.constant 0 : index
    %c0_22 = arith.constant 0 : index
    %c0_23 = arith.constant 0 : index
    %34 = vector.load %arg10[%c0_21, %c0_22, %c0_23] : memref<4x8x8xf32, #tpu.memory_space<vmem>>, vector<1x8x8xf32>
    %35 = vector.shape_cast %34 : vector<1x8x8xf32> to vector<8x8xf32>
    %36 = vector.broadcast %21 : vector<8x1xf32> to vector<8x8xf32>
    %37 = arith.mulf %36, %35 : vector<8x8xf32>
    %38 = arith.truncf %24 : vector<8x8xf32> to vector<8x8xbf16>
    %cst_24 = arith.constant dense<0.000000e+00> : vector<8x8xf32>
    %39 = tpu.matmul %38, %11, %cst_24 {dimension_numbers = #tpu.dot_dimension_numbers<[1], [0], [0], [1], [0, 0, 1, 1], [], []>} : vector<8x8xbf16>, vector<8x8xbf16>, vector<8x8xf32> -> vector<8x8xf32>
    %40 = arith.addf %37, %39 : vector<8x8xf32>
    %c0_25 = arith.constant 0 : index
    %c0_26 = arith.constant 0 : index
    %c0_27 = arith.constant 0 : index
    %41 = vector.load %arg10[%c0_25, %c0_26, %c0_27] : memref<4x8x8xf32, #tpu.memory_space<vmem>>, vector<1x8x8xf32>
    %42 = vector.shape_cast %41 : vector<1x8x8xf32> to vector<8x8xf32>
    %43 = vector.shape_cast %40 : vector<8x8xf32> to vector<1x8x8xf32>
    tpu.vector_store %arg10[%c0_25, %c0_26, %c0_27], %43 {strides = array<i32>} : memref<4x8x8xf32, #tpu.memory_space<vmem>>, vector<1x8x8xf32>,
    %c0_28 = arith.constant 0 : index
    %c0_29 = arith.constant 0 : index
    %c0_30 = arith.constant 0 : index
    %44 = vector.load %arg8[%c0_28, %c0_29, %c0_30] : memref<4x8x1xf32, #tpu.memory_space<vmem>>, vector<1x8x1xf32>
    %45 = vector.shape_cast %44 : vector<1x8x1xf32> to vector<8x1xf32>
    %46 = vector.shape_cast %19 : vector<8x1xf32> to vector<1x8x1xf32>
    tpu.vector_store %arg8[%c0_28, %c0_29, %c0_30], %46 {strides = array<i32>} : memref<4x8x1xf32, #tpu.memory_space<vmem>>, vector<1x8x1xf32>,
    %47 = vector.extract_strided_slice %4 {offsets = [0, 8], sizes = [8, 8], strides = [1, 1]} : vector<8x32xbf16> to vector<8x8xbf16>
    %48 = vector.extract_strided_slice %6 {offsets = [0, 8], sizes = [8, 8], strides = [1, 1]} : vector<8x32xbf16> to vector<8x8xbf16>
    %49 = vector.extract_strided_slice %8 {offsets = [0, 8], sizes = [8, 8], strides = [1, 1]} : vector<8x32xbf16> to vector<8x8xbf16>
    %cst_31 = arith.constant dense<0.000000e+00> : vector<8x8xf32>
    %50 = tpu.matmul %47, %48, %cst_31 {dimension_numbers = #tpu.dot_dimension_numbers<[1], [1], [0], [0], [0, 0, 1, 0], [], []>} : vector<8x8xbf16>, vector<8x8xbf16>, vector<8x8xf32> -> vector<8x8xf32>
    %cst_32 = arith.constant 0.353553385 : f32
    %51 = vector.broadcast %cst_32 : f32 to vector<8x8xf32>
    %52 = arith.mulf %50, %51 : vector<8x8xf32>
    %c1 = arith.constant 1 : index
    %c0_33 = arith.constant 0 : index
    %c0_34 = arith.constant 0 : index
    %53 = vector.load %arg8[%c1, %c0_33, %c0_34] : memref<4x8x1xf32, #tpu.memory_space<vmem>>, vector<1x8x1xf32>
    %54 = vector.shape_cast %53 : vector<1x8x1xf32> to vector<8x1xf32>
    %cst_35 = arith.constant dense<0xFF800000> : vector<8xf32>
    %55 = vector.multi_reduction <maximumf>, %52, %cst_35 [1] : vector<8x8xf32> to vector<8xf32>
    %56 = vector.shape_cast %55 : vector<8xf32> to vector<8x1xf32>
    %57 = arith.maximumf %54, %56 : vector<8x1xf32>
    %58 = arith.subf %54, %57 : vector<8x1xf32>
    %59 = math.exp %58 : vector<8x1xf32>
    %60 = vector.broadcast %57 : vector<8x1xf32> to vector<8x8xf32>
    %61 = arith.subf %52, %60 : vector<8x8xf32>
    %62 = math.exp %61 : vector<8x8xf32>
    %c1_36 = arith.constant 1 : index
    %c0_37 = arith.constant 0 : index
    %c0_38 = arith.constant 0 : index
    %63 = vector.load %arg9[%c1_36, %c0_37, %c0_38] : memref<4x8x1xf32, #tpu.memory_space<vmem>>, vector<1x8x1xf32>
    %64 = vector.shape_cast %63 : vector<1x8x1xf32> to vector<8x1xf32>
    %65 = arith.mulf %59, %64 : vector<8x1xf32>
    %cst_39 = arith.constant dense<0.000000e+00> : vector<8xf32>
    %66 = vector.multi_reduction <add>, %62, %cst_39 [1] : vector<8x8xf32> to vector<8xf32>
    %67 = vector.shape_cast %66 : vector<8xf32> to vector<8x1xf32>
    %68 = arith.addf %65, %67 : vector<8x1xf32>
    %c1_40 = arith.constant 1 : index
    %c0_41 = arith.constant 0 : index
    %c0_42 = arith.constant 0 : index
    %69 = vector.load %arg9[%c1_40, %c0_41, %c0_42] : memref<4x8x1xf32, #tpu.memory_space<vmem>>, vector<1x8x1xf32>
    %70 = vector.shape_cast %69 : vector<1x8x1xf32> to vector<8x1xf32>
    %71 = vector.shape_cast %68 : vector<8x1xf32> to vector<1x8x1xf32>
    tpu.vector_store %arg9[%c1_40, %c0_41, %c0_42], %71 {strides = array<i32>} : memref<4x8x1xf32, #tpu.memory_space<vmem>>, vector<1x8x1xf32>,
    %c1_43 = arith.constant 1 : index
    %c0_44 = arith.constant 0 : index
    %c0_45 = arith.constant 0 : index
    %72 = vector.load %arg10[%c1_43, %c0_44, %c0_45] : memref<4x8x8xf32, #tpu.memory_space<vmem>>, vector<1x8x8xf32>
    %73 = vector.shape_cast %72 : vector<1x8x8xf32> to vector<8x8xf32>
    %74 = vector.broadcast %59 : vector<8x1xf32> to vector<8x8xf32>
    %75 = arith.mulf %74, %73 : vector<8x8xf32>
    %76 = arith.truncf %62 : vector<8x8xf32> to vector<8x8xbf16>
    %cst_46 = arith.constant dense<0.000000e+00> : vector<8x8xf32>
    %77 = tpu.matmul %76, %49, %cst_46 {dimension_numbers = #tpu.dot_dimension_numbers<[1], [0], [0], [1], [0, 0, 1, 1], [], []>} : vector<8x8xbf16>, vector<8x8xbf16>, vector<8x8xf32> -> vector<8x8xf32>
    %78 = arith.addf %75, %77 : vector<8x8xf32>
    %c1_47 = arith.constant 1 : index
    %c0_48 = arith.constant 0 : index
    %c0_49 = arith.constant 0 : index
    %79 = vector.load %arg10[%c1_47, %c0_48, %c0_49] : memref<4x8x8xf32, #tpu.memory_space<vmem>>, vector<1x8x8xf32>
    %80 = vector.shape_cast %79 : vector<1x8x8xf32> to vector<8x8xf32>
    %81 = vector.shape_cast %78 : vector<8x8xf32> to vector<1x8x8xf32>
    tpu.vector_store %arg10[%c1_47, %c0_48, %c0_49], %81 {strides = array<i32>} : memref<4x8x8xf32, #tpu.memory_space<vmem>>, vector<1x8x8xf32>,
    %c1_50 = arith.constant 1 : index
    %c0_51 = arith.constant 0 : index
    %c0_52 = arith.constant 0 : index
    %82 = vector.load %arg8[%c1_50, %c0_51, %c0_52] : memref<4x8x1xf32, #tpu.memory_space<vmem>>, vector<1x8x1xf32>
    %83 = vector.shape_cast %82 : vector<1x8x1xf32> to vector<8x1xf32>
    %84 = vector.shape_cast %57 : vector<8x1xf32> to vector<1x8x1xf32>
    tpu.vector_store %arg8[%c1_50, %c0_51, %c0_52], %84 {strides = array<i32>} : memref<4x8x1xf32, #tpu.memory_space<vmem>>, vector<1x8x1xf32>,
    %85 = vector.extract_strided_slice %4 {offsets = [0, 16], sizes = [8, 8], strides = [1, 1]} : vector<8x32xbf16> to vector<8x8xbf16>
    %86 = vector.extract_strided_slice %6 {offsets = [0, 16], sizes = [8, 8], strides = [1, 1]} : vector<8x32xbf16> to vector<8x8xbf16>
    %87 = vector.extract_strided_slice %8 {offsets = [0, 16], sizes = [8, 8], strides = [1, 1]} : vector<8x32xbf16> to vector<8x8xbf16>
    %cst_53 = arith.constant dense<0.000000e+00> : vector<8x8xf32>
    %88 = tpu.matmul %85, %86, %cst_53 {dimension_numbers = #tpu.dot_dimension_numbers<[1], [1], [0], [0], [0, 0, 1, 0], [], []>} : vector<8x8xbf16>, vector<8x8xbf16>, vector<8x8xf32> -> vector<8x8xf32>
    %cst_54 = arith.constant 0.353553385 : f32
    %89 = vector.broadcast %cst_54 : f32 to vector<8x8xf32>
    %90 = arith.mulf %88, %89 : vector<8x8xf32>
    %c2 = arith.constant 2 : index
    %c0_55 = arith.constant 0 : index
    %c0_56 = arith.constant 0 : index
    %91 = vector.load %arg8[%c2, %c0_55, %c0_56] : memref<4x8x1xf32, #tpu.memory_space<vmem>>, vector<1x8x1xf32>
    %92 = vector.shape_cast %91 : vector<1x8x1xf32> to vector<8x1xf32>
    %cst_57 = arith.constant dense<0xFF800000> : vector<8xf32>
    %93 = vector.multi_reduction <maximumf>, %90, %cst_57 [1] : vector<8x8xf32> to vector<8xf32>
    %94 = vector.shape_cast %93 : vector<8xf32> to vector<8x1xf32>
    %95 = arith.maximumf %92, %94 : vector<8x1xf32>
    %96 = arith.subf %92, %95 : vector<8x1xf32>
    %97 = math.exp %96 : vector<8x1xf32>
    %98 = vector.broadcast %95 : vector<8x1xf32> to vector<8x8xf32>
    %99 = arith.subf %90, %98 : vector<8x8xf32>
    %100 = math.exp %99 : vector<8x8xf32>
    %c2_58 = arith.constant 2 : index
    %c0_59 = arith.constant 0 : index
    %c0_60 = arith.constant 0 : index
    %101 = vector.load %arg9[%c2_58, %c0_59, %c0_60] : memref<4x8x1xf32, #tpu.memory_space<vmem>>, vector<1x8x1xf32>
    %102 = vector.shape_cast %101 : vector<1x8x1xf32> to vector<8x1xf32>
    %103 = arith.mulf %97, %102 : vector<8x1xf32>
    %cst_61 = arith.constant dense<0.000000e+00> : vector<8xf32>
    %104 = vector.multi_reduction <add>, %100, %cst_61 [1] : vector<8x8xf32> to vector<8xf32>
    %105 = vector.shape_cast %104 : vector<8xf32> to vector<8x1xf32>
    %106 = arith.addf %103, %105 : vector<8x1xf32>
    %c2_62 = arith.constant 2 : index
    %c0_63 = arith.constant 0 : index
    %c0_64 = arith.constant 0 : index
    %107 = vector.load %arg9[%c2_62, %c0_63, %c0_64] : memref<4x8x1xf32, #tpu.memory_space<vmem>>, vector<1x8x1xf32>
    %108 = vector.shape_cast %107 : vector<1x8x1xf32> to vector<8x1xf32>
    %109 = vector.shape_cast %106 : vector<8x1xf32> to vector<1x8x1xf32>
    tpu.vector_store %arg9[%c2_62, %c0_63, %c0_64], %109 {strides = array<i32>} : memref<4x8x1xf32, #tpu.memory_space<vmem>>, vector<1x8x1xf32>,
    %c2_65 = arith.constant 2 : index
    %c0_66 = arith.constant 0 : index
    %c0_67 = arith.constant 0 : index
    %110 = vector.load %arg10[%c2_65, %c0_66, %c0_67] : memref<4x8x8xf32, #tpu.memory_space<vmem>>, vector<1x8x8xf32>
    %111 = vector.shape_cast %110 : vector<1x8x8xf32> to vector<8x8xf32>
    %112 = vector.broadcast %97 : vector<8x1xf32> to vector<8x8xf32>
    %113 = arith.mulf %112, %111 : vector<8x8xf32>
    %114 = arith.truncf %100 : vector<8x8xf32> to vector<8x8xbf16>
    %cst_68 = arith.constant dense<0.000000e+00> : vector<8x8xf32>
    %115 = tpu.matmul %114, %87, %cst_68 {dimension_numbers = #tpu.dot_dimension_numbers<[1], [0], [0], [1], [0, 0, 1, 1], [], []>} : vector<8x8xbf16>, vector<8x8xbf16>, vector<8x8xf32> -> vector<8x8xf32>
    %116 = arith.addf %113, %115 : vector<8x8xf32>
    %c2_69 = arith.constant 2 : index
    %c0_70 = arith.constant 0 : index
    %c0_71 = arith.constant 0 : index
    %117 = vector.load %arg10[%c2_69, %c0_70, %c0_71] : memref<4x8x8xf32, #tpu.memory_space<vmem>>, vector<1x8x8xf32>
    %118 = vector.shape_cast %117 : vector<1x8x8xf32> to vector<8x8xf32>
    %119 = vector.shape_cast %116 : vector<8x8xf32> to vector<1x8x8xf32>
    tpu.vector_store %arg10[%c2_69, %c0_70, %c0_71], %119 {strides = array<i32>} : memref<4x8x8xf32, #tpu.memory_space<vmem>>, vector<1x8x8xf32>,
    %c2_72 = arith.constant 2 : index
    %c0_73 = arith.constant 0 : index
    %c0_74 = arith.constant 0 : index
    %120 = vector.load %arg8[%c2_72, %c0_73, %c0_74] : memref<4x8x1xf32, #tpu.memory_space<vmem>>, vector<1x8x1xf32>
    %121 = vector.shape_cast %120 : vector<1x8x1xf32> to vector<8x1xf32>
    %122 = vector.shape_cast %95 : vector<8x1xf32> to vector<1x8x1xf32>
    tpu.vector_store %arg8[%c2_72, %c0_73, %c0_74], %122 {strides = array<i32>} : memref<4x8x1xf32, #tpu.memory_space<vmem>>, vector<1x8x1xf32>,
    %123 = vector.extract_strided_slice %4 {offsets = [0, 24], sizes = [8, 8], strides = [1, 1]} : vector<8x32xbf16> to vector<8x8xbf16>
    %124 = vector.extract_strided_slice %6 {offsets = [0, 24], sizes = [8, 8], strides = [1, 1]} : vector<8x32xbf16> to vector<8x8xbf16>
    %125 = vector.extract_strided_slice %8 {offsets = [0, 24], sizes = [8, 8], strides = [1, 1]} : vector<8x32xbf16> to vector<8x8xbf16>
    %cst_75 = arith.constant dense<0.000000e+00> : vector<8x8xf32>
    %126 = tpu.matmul %123, %124, %cst_75 {dimension_numbers = #tpu.dot_dimension_numbers<[1], [1], [0], [0], [0, 0, 1, 0], [], []>} : vector<8x8xbf16>, vector<8x8xbf16>, vector<8x8xf32> -> vector<8x8xf32>
    %cst_76 = arith.constant 0.353553385 : f32
    %127 = vector.broadcast %cst_76 : f32 to vector<8x8xf32>
    %128 = arith.mulf %126, %127 : vector<8x8xf32>
    %c3 = arith.constant 3 : index
    %c0_77 = arith.constant 0 : index
    %c0_78 = arith.constant 0 : index
    %129 = vector.load %arg8[%c3, %c0_77, %c0_78] : memref<4x8x1xf32, #tpu.memory_space<vmem>>, vector<1x8x1xf32>
    %130 = vector.shape_cast %129 : vector<1x8x1xf32> to vector<8x1xf32>
    %cst_79 = arith.constant dense<0xFF800000> : vector<8xf32>
    %131 = vector.multi_reduction <maximumf>, %128, %cst_79 [1] : vector<8x8xf32> to vector<8xf32>
    %132 = vector.shape_cast %131 : vector<8xf32> to vector<8x1xf32>
    %133 = arith.maximumf %130, %132 : vector<8x1xf32>
    %134 = arith.subf %130, %133 : vector<8x1xf32>
    %135 = math.exp %134 : vector<8x1xf32>
    %136 = vector.broadcast %133 : vector<8x1xf32> to vector<8x8xf32>
    %137 = arith.subf %128, %136 : vector<8x8xf32>
    %138 = math.exp %137 : vector<8x8xf32>
    %c3_80 = arith.constant 3 : index
    %c0_81 = arith.constant 0 : index
    %c0_82 = arith.constant 0 : index
    %139 = vector.load %arg9[%c3_80, %c0_81, %c0_82] : memref<4x8x1xf32, #tpu.memory_space<vmem>>, vector<1x8x1xf32>
    %140 = vector.shape_cast %139 : vector<1x8x1xf32> to vector<8x1xf32>
    %141 = arith.mulf %135, %140 : vector<8x1xf32>
    %cst_83 = arith.constant dense<0.000000e+00> : vector<8xf32>
    %142 = vector.multi_reduction <add>, %138, %cst_83 [1] : vector<8x8xf32> to vector<8xf32>
    %143 = vector.shape_cast %142 : vector<8xf32> to vector<8x1xf32>
    %144 = arith.addf %141, %143 : vector<8x1xf32>
    %c3_84 = arith.constant 3 : index
    %c0_85 = arith.constant 0 : index
    %c0_86 = arith.constant 0 : index
    %145 = vector.load %arg9[%c3_84, %c0_85, %c0_86] : memref<4x8x1xf32, #tpu.memory_space<vmem>>, vector<1x8x1xf32>
    %146 = vector.shape_cast %145 : vector<1x8x1xf32> to vector<8x1xf32>
    %147 = vector.shape_cast %144 : vector<8x1xf32> to vector<1x8x1xf32>
    tpu.vector_store %arg9[%c3_84, %c0_85, %c0_86], %147 {strides = array<i32>} : memref<4x8x1xf32, #tpu.memory_space<vmem>>, vector<1x8x1xf32>,
    %c3_87 = arith.constant 3 : index
    %c0_88 = arith.constant 0 : index
    %c0_89 = arith.constant 0 : index
    %148 = vector.load %arg10[%c3_87, %c0_88, %c0_89] : memref<4x8x8xf32, #tpu.memory_space<vmem>>, vector<1x8x8xf32>
    %149 = vector.shape_cast %148 : vector<1x8x8xf32> to vector<8x8xf32>
    %150 = vector.broadcast %135 : vector<8x1xf32> to vector<8x8xf32>
    %151 = arith.mulf %150, %149 : vector<8x8xf32>
    %152 = arith.truncf %138 : vector<8x8xf32> to vector<8x8xbf16>
    %cst_90 = arith.constant dense<0.000000e+00> : vector<8x8xf32>
    %153 = tpu.matmul %152, %125, %cst_90 {dimension_numbers = #tpu.dot_dimension_numbers<[1], [0], [0], [1], [0, 0, 1, 1], [], []>} : vector<8x8xbf16>, vector<8x8xbf16>, vector<8x8xf32> -> vector<8x8xf32>
    %154 = arith.addf %151, %153 : vector<8x8xf32>
    %c3_91 = arith.constant 3 : index
    %c0_92 = arith.constant 0 : index
    %c0_93 = arith.constant 0 : index
    %155 = vector.load %arg10[%c3_91, %c0_92, %c0_93] : memref<4x8x8xf32, #tpu.memory_space<vmem>>, vector<1x8x8xf32>
    %156 = vector.shape_cast %155 : vector<1x8x8xf32> to vector<8x8xf32>
    %157 = vector.shape_cast %154 : vector<8x8xf32> to vector<1x8x8xf32>
    tpu.vector_store %arg10[%c3_91, %c0_92, %c0_93], %157 {strides = array<i32>} : memref<4x8x8xf32, #tpu.memory_space<vmem>>, vector<1x8x8xf32>,
    %c3_94 = arith.constant 3 : index
    %c0_95 = arith.constant 0 : index
    %c0_96 = arith.constant 0 : index
    %158 = vector.load %arg8[%c3_94, %c0_95, %c0_96] : memref<4x8x1xf32, #tpu.memory_space<vmem>>, vector<1x8x1xf32>
    %159 = vector.shape_cast %158 : vector<1x8x1xf32> to vector<8x1xf32>
    %160 = vector.shape_cast %133 : vector<8x1xf32> to vector<1x8x1xf32>
    tpu.vector_store %arg8[%c3_94, %c0_95, %c0_96], %160 {strides = array<i32>} : memref<4x8x1xf32, #tpu.memory_space<vmem>>, vector<1x8x1xf32>,
    %c0_i32_97 = arith.constant 0 : i32
    %161 = arith.cmpi eq, %arg3, %c0_i32_97 : i32
    %162 = arith.extui %161 : i1 to i32
    %c0_i32_98 = arith.constant 0 : i32
    %163 = arith.cmpi ne, %162, %c0_i32_98 : i32
    scf.if %163 {
      %c0_99 = arith.constant 0 : index
      %c0_100 = arith.constant 0 : index
      %c0_101 = arith.constant 0 : index
      %164 = vector.load %arg9[%c0_99, %c0_100, %c0_101] : memref<4x8x1xf32, #tpu.memory_space<vmem>>, vector<1x8x1xf32>
      %165 = vector.shape_cast %164 : vector<1x8x1xf32> to vector<8x1xf32>
      %166 = tpu.reciprocal %165 {approx = true} : vector<8x1xf32> -> vector<8x1xf32>
      %c0_102 = arith.constant 0 : index
      %c0_103 = arith.constant 0 : index
      %c0_104 = arith.constant 0 : index
      %167 = vector.load %arg10[%c0_102, %c0_103, %c0_104] : memref<4x8x8xf32, #tpu.memory_space<vmem>>, vector<1x8x8xf32>
      %168 = vector.shape_cast %167 : vector<1x8x8xf32> to vector<8x8xf32>
      %169 = vector.broadcast %166 : vector<8x1xf32> to vector<8x8xf32>
      %170 = arith.mulf %168, %169 : vector<8x8xf32>
      %171 = arith.truncf %170 : vector<8x8xf32> to vector<8x8xbf16>
      %c1_105 = arith.constant 1 : index
      %c0_106 = arith.constant 0 : index
      %c0_107 = arith.constant 0 : index
      %172 = vector.load %arg9[%c1_105, %c0_106, %c0_107] : memref<4x8x1xf32, #tpu.memory_space<vmem>>, vector<1x8x1xf32>
      %173 = vector.shape_cast %172 : vector<1x8x1xf32> to vector<8x1xf32>
      %174 = tpu.reciprocal %173 {approx = true} : vector<8x1xf32> -> vector<8x1xf32>
      %c1_108 = arith.constant 1 : index
      %c0_109 = arith.constant 0 : index
      %c0_110 = arith.constant 0 : index
      %175 = vector.load %arg10[%c1_108, %c0_109, %c0_110] : memref<4x8x8xf32, #tpu.memory_space<vmem>>, vector<1x8x8xf32>
      %176 = vector.shape_cast %175 : vector<1x8x8xf32> to vector<8x8xf32>
      %177 = vector.broadcast %174 : vector<8x1xf32> to vector<8x8xf32>
      %178 = arith.mulf %176, %177 : vector<8x8xf32>
      %179 = arith.truncf %178 : vector<8x8xf32> to vector<8x8xbf16>
      %c2_111 = arith.constant 2 : index
      %c0_112 = arith.constant 0 : index
      %c0_113 = arith.constant 0 : index
      %180 = vector.load %arg9[%c2_111, %c0_112, %c0_113] : memref<4x8x1xf32, #tpu.memory_space<vmem>>, vector<1x8x1xf32>
      %181 = vector.shape_cast %180 : vector<1x8x1xf32> to vector<8x1xf32>
      %182 = tpu.reciprocal %181 {approx = true} : vector<8x1xf32> -> vector<8x1xf32>
      %c2_114 = arith.constant 2 : index
      %c0_115 = arith.constant 0 : index
      %c0_116 = arith.constant 0 : index
      %183 = vector.load %arg10[%c2_114, %c0_115, %c0_116] : memref<4x8x8xf32, #tpu.memory_space<vmem>>, vector<1x8x8xf32>
      %184 = vector.shape_cast %183 : vector<1x8x8xf32> to vector<8x8xf32>
      %185 = vector.broadcast %182 : vector<8x1xf32> to vector<8x8xf32>
      %186 = arith.mulf %184, %185 : vector<8x8xf32>
      %187 = arith.truncf %186 : vector<8x8xf32> to vector<8x8xbf16>
      %c3_117 = arith.constant 3 : index
      %c0_118 = arith.constant 0 : index
      %c0_119 = arith.constant 0 : index
      %188 = vector.load %arg9[%c3_117, %c0_118, %c0_119] : memref<4x8x1xf32, #tpu.memory_space<vmem>>, vector<1x8x1xf32>
      %189 = vector.shape_cast %188 : vector<1x8x1xf32> to vector<8x1xf32>
      %190 = tpu.reciprocal %189 {approx = true} : vector<8x1xf32> -> vector<8x1xf32>
      %c3_120 = arith.constant 3 : index
      %c0_121 = arith.constant 0 : index
      %c0_122 = arith.constant 0 : index
      %191 = vector.load %arg10[%c3_120, %c0_121, %c0_122] : memref<4x8x8xf32, #tpu.memory_space<vmem>>, vector<1x8x8xf32>
      %192 = vector.shape_cast %191 : vector<1x8x8xf32> to vector<8x8xf32>
      %193 = vector.broadcast %190 : vector<8x1xf32> to vector<8x8xf32>
      %194 = arith.mulf %192, %193 : vector<8x8xf32>
      %195 = arith.truncf %194 : vector<8x8xf32> to vector<8x8xbf16>
      %196 = tpu.concatenate %171, %179, %187, %195 in 1 : vector<8x8xbf16>, vector<8x8xbf16>, vector<8x8xbf16>, vector<8x8xbf16> -> vector<8x32xbf16>
      %c0_123 = arith.constant 0 : index
      %c0_124 = arith.constant 0 : index
      %c0_125 = arith.constant 0 : index
      %197 = vector.load %arg7[%c0_123, %c0_124, %c0_125] : memref<1x8x32xbf16, #tpu.memory_space<vmem>>, vector<1x8x32xbf16>
      %198 = vector.shape_cast %197 : vector<1x8x32xbf16> to vector<8x32xbf16>
      %199 = vector.shape_cast %196 : vector<8x32xbf16> to vector<1x8x32xbf16>
      tpu.vector_store %arg7[%c0_123, %c0_124, %c0_125], %199 {strides = array<i32>} : memref<1x8x32xbf16, #tpu.memory_space<vmem>>, vector<1x8x32xbf16>,
    } else {
    }
    return
  }
  func.func @transform_0(%arg0: i32, %arg1: i32, %arg2: i32, %arg3: i32) -> (i32, i32, i32) {
    %c0_i32 = arith.constant 0 : i32
    return %arg0, %arg2, %arg1 : i32, i32, i32
  }
  func.func @transform_1(%arg0: i32, %arg1: i32, %arg2: i32, %arg3: i32) -> (i32, i32, i32) {
    %c0_i32 = arith.constant 0 : i32
    return %arg0, %arg3, %arg1 : i32, i32, i32
  }
  func.func @transform_2(%arg0: i32, %arg1: i32, %arg2: i32, %arg3: i32) -> (i32, i32, i32) {
    %c0_i32 = arith.constant 0 : i32
    return %arg0, %arg3, %arg1 : i32, i32, i32
  }
  func.func @transform_3(%arg0: i32, %arg1: i32, %arg2: i32, %arg3: i32) -> (i32, i32, i32) {
    %c0_i32 = arith.constant 0 : i32
    return %arg0, %arg2, %arg1 : i32, i32, i32
  }
}

module attributes {stable_mosaic.version = 11 : i64} {
  func.func @_proj_mlp_kernel(%arg0: i32, %arg1: i32, %arg2: memref<1x8x32xf32, #tpu.memory_space<vmem>>, %arg3: memref<1x8x32xbf16, #tpu.memory_space<vmem>>, %arg4: memref<32x32xbf16, #tpu.memory_space<vmem>>, %arg5: memref<1x32xf32, #tpu.memory_space<vmem>>, %arg6: memref<1x32xf32, #tpu.memory_space<vmem>>, %arg7: memref<1x32xf32, #tpu.memory_space<vmem>>, %arg8: memref<32x64xbf16, #tpu.memory_space<vmem>>, %arg9: memref<1x64xf32, #tpu.memory_space<vmem>>, %arg10: memref<64x32xbf16, #tpu.memory_space<vmem>>, %arg11: memref<1x32xf32, #tpu.memory_space<vmem>>, %arg12: memref<1x8x32xf32, #tpu.memory_space<vmem>>) attributes {dimension_semantics = [#tpu.dimension_semantics<parallel>, #tpu.dimension_semantics<parallel>], iteration_bounds = array<i64: 2, 1>, scalar_prefetch = 0 : i64, scratch_operands = 0 : i64, tpu.core_type = #tpu.core_type<tc>, window_params = [{transform_indices = @transform_0, window_bounds = array<i64: 1, 8, 32>}, {transform_indices = @transform_1, window_bounds = array<i64: 1, 8, 32>}, {pipeline_mode = #tpu.pipeline_mode<synchronous>, transform_indices = @transform_2, window_bounds = array<i64: 32, 32>}, {pipeline_mode = #tpu.pipeline_mode<synchronous>, transform_indices = @transform_3, window_bounds = array<i64: 1, 32>}, {pipeline_mode = #tpu.pipeline_mode<synchronous>, transform_indices = @transform_4, window_bounds = array<i64: 1, 32>}, {pipeline_mode = #tpu.pipeline_mode<synchronous>, transform_indices = @transform_5, window_bounds = array<i64: 1, 32>}, {pipeline_mode = #tpu.pipeline_mode<synchronous>, transform_indices = @transform_6, window_bounds = array<i64: 32, 64>}, {pipeline_mode = #tpu.pipeline_mode<synchronous>, transform_indices = @transform_7, window_bounds = array<i64: 1, 64>}, {pipeline_mode = #tpu.pipeline_mode<synchronous>, transform_indices = @transform_8, window_bounds = array<i64: 64, 32>}, {pipeline_mode = #tpu.pipeline_mode<synchronous>, transform_indices = @transform_9, window_bounds = array<i64: 1, 32>}, {transform_indices = @transform_10, window_bounds = array<i64: 1, 8, 32>}]} {
    %c0 = arith.constant 0 : index
    %c0_0 = arith.constant 0 : index
    %c0_1 = arith.constant 0 : index
    %0 = vector.load %arg2[%c0, %c0_0, %c0_1] : memref<1x8x32xf32, #tpu.memory_space<vmem>>, vector<1x8x32xf32>
    %1 = vector.shape_cast %0 : vector<1x8x32xf32> to vector<8x32xf32>
    %c0_2 = arith.constant 0 : index
    %c0_3 = arith.constant 0 : index
    %c0_4 = arith.constant 0 : index
    %2 = vector.load %arg3[%c0_2, %c0_3, %c0_4] : memref<1x8x32xbf16, #tpu.memory_space<vmem>>, vector<1x8x32xbf16>
    %3 = vector.shape_cast %2 : vector<1x8x32xbf16> to vector<8x32xbf16>
    %c0_5 = arith.constant 0 : index
    %c0_6 = arith.constant 0 : index
    %4 = vector.load %arg4[%c0_5, %c0_6] : memref<32x32xbf16, #tpu.memory_space<vmem>>, vector<32x32xbf16>
    %cst = arith.constant dense<0.000000e+00> : vector<8x32xf32>
    %5 = tpu.matmul %3, %4, %cst {dimension_numbers = #tpu.dot_dimension_numbers<[1], [0], [0], [1], [0, 0, 1, 1], [], []>} : vector<8x32xbf16>, vector<32x32xbf16>, vector<8x32xf32> -> vector<8x32xf32>
    %c0_7 = arith.constant 0 : index
    %c0_8 = arith.constant 0 : index
    %6 = vector.load %arg5[%c0_7, %c0_8] : memref<1x32xf32, #tpu.memory_space<vmem>>, vector<1x32xf32>
    %7 = vector.broadcast %6 : vector<1x32xf32> to vector<8x32xf32>
    %8 = arith.addf %5, %7 : vector<8x32xf32>
    %9 = arith.addf %1, %8 : vector<8x32xf32>
    %cst_9 = arith.constant dense<0.000000e+00> : vector<8xf32>
    %10 = vector.multi_reduction <add>, %9, %cst_9 [1] : vector<8x32xf32> to vector<8xf32>
    %11 = vector.shape_cast %10 : vector<8xf32> to vector<8x1xf32>
    %cst_10 = arith.constant 3.200000e+01 : f32
    %12 = vector.broadcast %cst_10 : f32 to vector<8x1xf32>
    %13 = arith.divf %11, %12 : vector<8x1xf32>
    %14 = vector.broadcast %13 : vector<8x1xf32> to vector<8x32xf32>
    %15 = arith.subf %9, %14 : vector<8x32xf32>
    %16 = arith.mulf %15, %15 : vector<8x32xf32>
    %cst_11 = arith.constant dense<0.000000e+00> : vector<8xf32>
    %17 = vector.multi_reduction <add>, %16, %cst_11 [1] : vector<8x32xf32> to vector<8xf32>
    %18 = vector.shape_cast %17 : vector<8xf32> to vector<8x1xf32>
    %cst_12 = arith.constant 3.200000e+01 : f32
    %19 = vector.broadcast %cst_12 : f32 to vector<8x1xf32>
    %20 = arith.divf %18, %19 : vector<8x1xf32>
    %21 = vector.broadcast %13 : vector<8x1xf32> to vector<8x32xf32>
    %22 = arith.subf %9, %21 : vector<8x32xf32>
    %cst_13 = arith.constant 9.99999974E-6 : f32
    %23 = vector.broadcast %cst_13 : f32 to vector<8x1xf32>
    %24 = arith.addf %20, %23 : vector<8x1xf32>
    %25 = math.rsqrt %24 : vector<8x1xf32>
    %26 = vector.broadcast %25 : vector<8x1xf32> to vector<8x32xf32>
    %27 = arith.mulf %22, %26 : vector<8x32xf32>
    %c0_14 = arith.constant 0 : index
    %c0_15 = arith.constant 0 : index
    %28 = vector.load %arg6[%c0_14, %c0_15] : memref<1x32xf32, #tpu.memory_space<vmem>>, vector<1x32xf32>
    %29 = vector.broadcast %28 : vector<1x32xf32> to vector<8x32xf32>
    %30 = arith.mulf %27, %29 : vector<8x32xf32>
    %c0_16 = arith.constant 0 : index
    %c0_17 = arith.constant 0 : index
    %31 = vector.load %arg7[%c0_16, %c0_17] : memref<1x32xf32, #tpu.memory_space<vmem>>, vector<1x32xf32>
    %32 = vector.broadcast %31 : vector<1x32xf32> to vector<8x32xf32>
    %33 = arith.addf %30, %32 : vector<8x32xf32>
    %34 = arith.truncf %33 : vector<8x32xf32> to vector<8x32xbf16>
    %c0_18 = arith.constant 0 : index
    %c0_19 = arith.constant 0 : index
    %35 = vector.load %arg8[%c0_18, %c0_19] : memref<32x64xbf16, #tpu.memory_space<vmem>>, vector<32x64xbf16>
    %cst_20 = arith.constant dense<0.000000e+00> : vector<8x64xf32>
    %36 = tpu.matmul %34, %35, %cst_20 {dimension_numbers = #tpu.dot_dimension_numbers<[1], [0], [0], [1], [0, 0, 1, 1], [], []>} : vector<8x32xbf16>, vector<32x64xbf16>, vector<8x64xf32> -> vector<8x64xf32>
    %c0_21 = arith.constant 0 : index
    %c0_22 = arith.constant 0 : index
    %37 = vector.load %arg9[%c0_21, %c0_22] : memref<1x64xf32, #tpu.memory_space<vmem>>, vector<1x64xf32>
    %38 = vector.broadcast %37 : vector<1x64xf32> to vector<8x64xf32>
    %39 = arith.addf %36, %38 : vector<8x64xf32>
    %cst_23 = arith.constant 5.000000e-01 : f32
    %40 = vector.broadcast %cst_23 : f32 to vector<8x64xf32>
    %41 = arith.mulf %40, %39 : vector<8x64xf32>
    %cst_24 = arith.constant 0.707106769 : f32
    %42 = vector.broadcast %cst_24 : f32 to vector<8x64xf32>
    %43 = arith.mulf %39, %42 : vector<8x64xf32>
    %44 = math.erf %43 : vector<8x64xf32>
    %cst_25 = arith.constant 1.000000e+00 : f32
    %45 = vector.broadcast %cst_25 : f32 to vector<8x64xf32>
    %46 = arith.addf %45, %44 : vector<8x64xf32>
    %47 = arith.mulf %41, %46 : vector<8x64xf32>
    %48 = arith.truncf %47 : vector<8x64xf32> to vector<8x64xbf16>
    %c0_26 = arith.constant 0 : index
    %c0_27 = arith.constant 0 : index
    %49 = vector.load %arg10[%c0_26, %c0_27] : memref<64x32xbf16, #tpu.memory_space<vmem>>, vector<64x32xbf16>
    %cst_28 = arith.constant dense<0.000000e+00> : vector<8x32xf32>
    %50 = tpu.matmul %48, %49, %cst_28 {dimension_numbers = #tpu.dot_dimension_numbers<[1], [0], [0], [1], [0, 0, 1, 1], [], []>} : vector<8x64xbf16>, vector<64x32xbf16>, vector<8x32xf32> -> vector<8x32xf32>
    %c0_29 = arith.constant 0 : index
    %c0_30 = arith.constant 0 : index
    %51 = vector.load %arg11[%c0_29, %c0_30] : memref<1x32xf32, #tpu.memory_space<vmem>>, vector<1x32xf32>
    %52 = vector.broadcast %51 : vector<1x32xf32> to vector<8x32xf32>
    %53 = arith.addf %50, %52 : vector<8x32xf32>
    %54 = arith.addf %9, %53 : vector<8x32xf32>
    %c0_31 = arith.constant 0 : index
    %c0_32 = arith.constant 0 : index
    %c0_33 = arith.constant 0 : index
    %55 = vector.load %arg12[%c0_31, %c0_32, %c0_33] : memref<1x8x32xf32, #tpu.memory_space<vmem>>, vector<1x8x32xf32>
    %56 = vector.shape_cast %55 : vector<1x8x32xf32> to vector<8x32xf32>
    %57 = vector.shape_cast %54 : vector<8x32xf32> to vector<1x8x32xf32>
    tpu.vector_store %arg12[%c0_31, %c0_32, %c0_33], %57 {strides = array<i32>} : memref<1x8x32xf32, #tpu.memory_space<vmem>>, vector<1x8x32xf32>,
    return
  }
  func.func @transform_0(%arg0: i32, %arg1: i32) -> (i32, i32, i32) {
    %c0_i32 = arith.constant 0 : i32
    %c0_i32_0 = arith.constant 0 : i32
    return %arg0, %arg1, %c0_i32 : i32, i32, i32
  }
  func.func @transform_1(%arg0: i32, %arg1: i32) -> (i32, i32, i32) {
    %c0_i32 = arith.constant 0 : i32
    %c0_i32_0 = arith.constant 0 : i32
    return %arg0, %arg1, %c0_i32 : i32, i32, i32
  }
  func.func @transform_2(%arg0: i32, %arg1: i32) -> (i32, i32) {
    %c0_i32 = arith.constant 0 : i32
    %c0_i32_0 = arith.constant 0 : i32
    %c0_i32_1 = arith.constant 0 : i32
    return %c0_i32, %c0_i32_0 : i32, i32
  }
  func.func @transform_3(%arg0: i32, %arg1: i32) -> (i32, i32) {
    %c0_i32 = arith.constant 0 : i32
    %c0_i32_0 = arith.constant 0 : i32
    %c0_i32_1 = arith.constant 0 : i32
    return %c0_i32, %c0_i32_0 : i32, i32
  }
  func.func @transform_4(%arg0: i32, %arg1: i32) -> (i32, i32) {
    %c0_i32 = arith.constant 0 : i32
    %c0_i32_0 = arith.constant 0 : i32
    %c0_i32_1 = arith.constant 0 : i32
    return %c0_i32, %c0_i32_0 : i32, i32
  }
  func.func @transform_5(%arg0: i32, %arg1: i32) -> (i32, i32) {
    %c0_i32 = arith.constant 0 : i32
    %c0_i32_0 = arith.constant 0 : i32
    %c0_i32_1 = arith.constant 0 : i32
    return %c0_i32, %c0_i32_0 : i32, i32
  }
  func.func @transform_6(%arg0: i32, %arg1: i32) -> (i32, i32) {
    %c0_i32 = arith.constant 0 : i32
    %c0_i32_0 = arith.constant 0 : i32
    %c0_i32_1 = arith.constant 0 : i32
    return %c0_i32, %c0_i32_0 : i32, i32
  }
  func.func @transform_7(%arg0: i32, %arg1: i32) -> (i32, i32) {
    %c0_i32 = arith.constant 0 : i32
    %c0_i32_0 = arith.constant 0 : i32
    %c0_i32_1 = arith.constant 0 : i32
    return %c0_i32, %c0_i32_0 : i32, i32
  }
  func.func @transform_8(%arg0: i32, %arg1: i32) -> (i32, i32) {
    %c0_i32 = arith.constant 0 : i32
    %c0_i32_0 = arith.constant 0 : i32
    %c0_i32_1 = arith.constant 0 : i32
    return %c0_i32, %c0_i32_0 : i32, i32
  }
  func.func @transform_9(%arg0: i32, %arg1: i32) -> (i32, i32) {
    %c0_i32 = arith.constant 0 : i32
    %c0_i32_0 = arith.constant 0 : i32
    %c0_i32_1 = arith.constant 0 : i32
    return %c0_i32, %c0_i32_0 : i32, i32
  }
  func.func @transform_10(%arg0: i32, %arg1: i32) -> (i32, i32, i32) {
    %c0_i32 = arith.constant 0 : i32
    %c0_i32_0 = arith.constant 0 : i32
    return %arg0, %arg1, %c0_i32 : i32, i32, i32
  }
}

</mosaic_0001>

<llo_original>
// kernel: transformer_block.3
$region0: #{transformer_block.3}
  #allocation0 [shape = 'u32[]', space=smem, size = 0x4, offset = 0x4, fixed_abs, tag = 'smem constant byte address 0x4 - core index']
  #allocation1 [shape = 'u32[144,128]{1,0:T(1,128)}', space=vmem, size = 0x12000, scoped, tag = 'internal scratch']
  %s0 = inlined_call_operand.vmem [shape: f32[2,8,32], index: 0, kind: input, shape index: {}]
  %s1 = inlined_call_operand.vmem [shape: f32[1,32], index: 1, kind: input, shape index: {}]
  %s2 = inlined_call_operand.vmem [shape: f32[1,32], index: 2, kind: input, shape index: {}]
  %s3 = inlined_call_operand.vmem [shape: bf16[32,32], index: 3, kind: input, shape index: {}]
  %s4 = inlined_call_operand.vmem [shape: bf16[32,32], index: 4, kind: input, shape index: {}]
  %s5 = inlined_call_operand.vmem [shape: bf16[32,32], index: 5, kind: input, shape index: {}]
  %s6 = inlined_call_operand.vmem [shape: bf16[2,8,32], index: 6, kind: output, shape index: {0}]
  %s7 = inlined_call_operand.vmem [shape: bf16[2,8,32], index: 7, kind: output, shape index: {1}]
  %s8 = inlined_call_operand.vmem [shape: bf16[2,8,32], index: 8, kind: output, shape index: {2}]
  %9 = xla_tuple %s6, %s7, %s8
  %s10 = sld [smem:[#allocation0]]
  $region73: #{transformer_block.3} parent=0
    _
  %s12 = ssub.s32 1, %s10
  %s13 = scalar_select 0, %s12, %s10
  loop: start=0, step=1, limit=4
  $region2: #{transformer_block.3} parent=0 // loop_pre_header
    _
  $region3: #{transformer_block.3} parent=0 // loop_header
    %s15 = sphi 0, %s19
    %p16 = scmp.ge.s32.totalorder %s15, 4
    %s22 = sphi 0, %s34
    %s23 = sphi 0, %s30
    %s24 = sphi 0, %s22
    %s25 = sphi 0, %s23
    %s26 = sphi 0, %s24
    %s27 = sphi 0, %s25
    %s39 = sphi 0, %s41
    %s42 = sphi 0, %s39
    %s43 = sphi 0, %s42
    %s59 = sphi 0, %s43
    %s63 = sphi 0, %s63
    %s65 = sphi 0, %s63
    %s66 = sphi 0, %s65
    %s80 = sphi 0, %s66
    %s84 = sphi 0, %s84
    %s86 = sphi 0, %s84
    %s87 = sphi 0, %s86
    %s101 = sphi 0, %s87
    %s105 = sphi 0, %s105
    %s107 = sphi 0, %s105
    %s108 = sphi 0, %s107
    %s122 = sphi 0, %s108
    %s126 = sphi 0, %s126
    %s128 = sphi 0, %s126
    %s129 = sphi 0, %s128
    %s143 = sphi 0, %s129
    %s147 = sphi 0, %s147
    %s149 = sphi 0, %s147
    %s150 = sphi 0, %s149
    %s164 = sphi 0, %s150
    %s172 = sphi 0, %s174
    %s175 = sphi 0, %s172
    %s176 = sphi 0, %s175
    %s192 = sphi 0, %s176
    %s200 = sphi 0, %s202
    %s203 = sphi 0, %s200
    %s204 = sphi 0, %s203
    %s220 = sphi 0, %s204
    %s228 = sphi 0, %s230
    %s231 = sphi 0, %s228
    %s232 = sphi 0, %s231
    %s248 = sphi 0, %s232
  $region4: #{transformer_block.3} parent=0 // loop_header_branch
    %18 = sbr.rel (%p16) target = $region8
  $region5: #{transformer_block.3} parent=0 // loop_body
    %s20 = ssub.s32 %s15, 1
    %s21 = ssub.s32 %s15, 2
    %s28 = sadd.s32 1, %s23
    %p29 = scmp.ge.s32.totalorder %s28, 1
    %s30 = scalar_select %p29, 0, %s28
    %s31 = sadd.s32 1, %s22
    %s32 = scalar_select %p29, %s31, %s22
    %p33 = scmp.ge.s32.totalorder %s32, 2
    %s34 = scalar_select %p33, 0, %s32
    %s35 = ssub.s32 %s22, %s34
    %s36 = ssub.s32 %s23, %s30
    %s37 = sor.u32 %s35, %s36
    %p38 = scmp.eq.s32.totalorder %s37, 0
    %s40 = sadd.s32 %s39, 1
    %s41 = scalar_select %p38, %s39, %s40
    %p44 = pneg %p38
    %p45 = scmp.eq.s32.totalorder %s15, 1
    %p46 = por %p44, %p45
    %p47 = scmp.ne.s32.totalorder %s39, %s42
    %p48 = scmp.eq.s32.totalorder %s15, 0
    %p49 = por %p47, %p48
    %p50 = scmp.ne.s32.totalorder %s39, %s42
    %p51 = scmp.eq.s32.totalorder %s20, 1
    %p52 = por %p50, %p51
    %p53 = scmp.ne.s32.totalorder %s42, %s43
    %p54 = scmp.eq.s32.totalorder %s20, 0
    %p55 = por %p53, %p54
    %p56 = scmp.ne.s32.totalorder %s42, %s43
    %p57 = scmp.eq.s32.totalorder %s21, 1
    %p58 = por %p56, %p57
    %p60 = scmp.ne.s32.totalorder %s43, %s59
    %p61 = scmp.eq.s32.totalorder %s21, 0
    %p62 = por %p60, %p61
    %s64 = sadd.s32 %s63, 1
    %p67 = scmp.eq.s32.totalorder %s15, 1
    %p68 = scmp.ne.s32.totalorder %s63, %s65
    %p69 = scmp.eq.s32.totalorder %s15, 0
    %p70 = por %p68, %p69
    %p71 = scmp.ne.s32.totalorder %s63, %s65
    %p72 = scmp.eq.s32.totalorder %s20, 1
    %p73 = por %p71, %p72
    %p74 = scmp.ne.s32.totalorder %s65, %s66
    %p75 = scmp.eq.s32.totalorder %s20, 0
    %p76 = por %p74, %p75
    %p77 = scmp.ne.s32.totalorder %s65, %s66
    %p78 = scmp.eq.s32.totalorder %s21, 1
    %p79 = por %p77, %p78
    %p81 = scmp.ne.s32.totalorder %s66, %s80
    %p82 = scmp.eq.s32.totalorder %s21, 0
    %p83 = por %p81, %p82
    %s85 = sadd.s32 %s84, 1
    %p88 = scmp.eq.s32.totalorder %s15, 1
    %p89 = scmp.ne.s32.totalorder %s84, %s86
    %p90 = scmp.eq.s32.totalorder %s15, 0
    %p91 = por %p89, %p90
    %p92 = scmp.ne.s32.totalorder %s84, %s86
    %p93 = scmp.eq.s32.totalorder %s20, 1
    %p94 = por %p92, %p93
    %p95 = scmp.ne.s32.totalorder %s86, %s87
    %p96 = scmp.eq.s32.totalorder %s20, 0
    %p97 = por %p95, %p96
    %p98 = scmp.ne.s32.totalorder %s86, %s87
    %p99 = scmp.eq.s32.totalorder %s21, 1
    %p100 = por %p98, %p99
    %p102 = scmp.ne.s32.totalorder %s87, %s101
    %p103 = scmp.eq.s32.totalorder %s21, 0
    %p104 = por %p102, %p103
    %s106 = sadd.s32 %s105, 1
    %p109 = scmp.eq.s32.totalorder %s15, 1
    %p110 = scmp.ne.s32.totalorder %s105, %s107
    %p111 = scmp.eq.s32.totalorder %s15, 0
    %p112 = por %p110, %p111
    %p113 = scmp.ne.s32.totalorder %s105, %s107
    %p114 = scmp.eq.s32.totalorder %s20, 1
    %p115 = por %p113, %p114
    %p116 = scmp.ne.s32.totalorder %s107, %s108
    %p117 = scmp.eq.s32.totalorder %s20, 0
    %p118 = por %p116, %p117
    %p119 = scmp.ne.s32.totalorder %s107, %s108
    %p120 = scmp.eq.s32.totalorder %s21, 1
    %p121 = por %p119, %p120
    %p123 = scmp.ne.s32.totalorder %s108, %s122
    %p124 = scmp.eq.s32.totalorder %s21, 0
    %p125 = por %p123, %p124
    %s127 = sadd.s32 %s126, 1
    %p130 = scmp.eq.s32.totalorder %s15, 1
    %p131 = scmp.ne.s32.totalorder %s126, %s128
    %p132 = scmp.eq.s32.totalorder %s15, 0
    %p133 = por %p131, %p132
    %p134 = scmp.ne.s32.totalorder %s126, %s128
    %p135 = scmp.eq.s32.totalorder %s20, 1
    %p136 = por %p134, %p135
    %p137 = scmp.ne.s32.totalorder %s128, %s129
    %p138 = scmp.eq.s32.totalorder %s20, 0
    %p139 = por %p137, %p138
    %p140 = scmp.ne.s32.totalorder %s128, %s129
    %p141 = scmp.eq.s32.totalorder %s21, 1
    %p142 = por %p140, %p141
    %p144 = scmp.ne.s32.totalorder %s129, %s143
    %p145 = scmp.eq.s32.totalorder %s21, 0
    %p146 = por %p144, %p145
    %s148 = sadd.s32 %s147, 1
    %p151 = scmp.eq.s32.totalorder %s15, 1
    %p152 = scmp.ne.s32.totalorder %s147, %s149
    %p153 = scmp.eq.s32.totalorder %s15, 0
    %p154 = por %p152, %p153
    %p155 = scmp.ne.s32.totalorder %s147, %s149
    %p156 = scmp.eq.s32.totalorder %s20, 1
    %p157 = por %p155, %p156
    %p158 = scmp.ne.s32.totalorder %s149, %s150
    %p159 = scmp.eq.s32.totalorder %s20, 0
    %p160 = por %p158, %p159
    %p161 = scmp.ne.s32.totalorder %s149, %s150
    %p162 = scmp.eq.s32.totalorder %s21, 1
    %p163 = por %p161, %p162
    %p165 = scmp.ne.s32.totalorder %s150, %s164
    %p166 = scmp.eq.s32.totalorder %s21, 0
    %p167 = por %p165, %p166
    %s168 = ssub.s32 %s22, %s34
    %s169 = ssub.s32 %s23, %s30
    %s170 = sor.u32 %s168, %s169
    %p171 = scmp.eq.s32.totalorder %s170, 0
    %s173 = sadd.s32 %s172, 1
    %s174 = scalar_select %p171, %s172, %s173
    %p177 = pneg %p171
    %p178 = scmp.eq.s32.totalorder %s15, 1
    %p179 = por %p177, %p178
    %p180 = scmp.ne.s32.totalorder %s172, %s175
    %p181 = scmp.eq.s32.totalorder %s15, 0
    %p182 = por %p180, %p181
    %p183 = scmp.ne.s32.totalorder %s172, %s175
    %p184 = scmp.eq.s32.totalorder %s20, 1
    %p185 = por %p183, %p184
    %p186 = scmp.ne.s32.totalorder %s175, %s176
    %p187 = scmp.eq.s32.totalorder %s20, 0
    %p188 = por %p186, %p187
    %p189 = scmp.ne.s32.totalorder %s175, %s176
    %p190 = scmp.eq.s32.totalorder %s21, 1
    %p191 = por %p189, %p190
    %p193 = scmp.ne.s32.totalorder %s176, %s192
    %p194 = scmp.eq.s32.totalorder %s21, 0
    %p195 = por %p193, %p194
    %s196 = ssub.s32 %s22, %s34
    %s197 = ssub.s32 %s23, %s30
    %s198 = sor.u32 %s196, %s197
    %p199 = scmp.eq.s32.totalorder %s198, 0
    %s201 = sadd.s32 %s200, 1
    %s202 = scalar_select %p199, %s200, %s201
    %p205 = pneg %p199
    %p206 = scmp.eq.s32.totalorder %s15, 1
    %p207 = por %p205, %p206
    %p208 = scmp.ne.s32.totalorder %s200, %s203
    %p209 = scmp.eq.s32.totalorder %s15, 0
    %p210 = por %p208, %p209
    %p211 = scmp.ne.s32.totalorder %s200, %s203
    %p212 = scmp.eq.s32.totalorder %s20, 1
    %p213 = por %p211, %p212
    %p214 = scmp.ne.s32.totalorder %s203, %s204
    %p215 = scmp.eq.s32.totalorder %s20, 0
    %p216 = por %p214, %p215
    %p217 = scmp.ne.s32.totalorder %s203, %s204
    %p218 = scmp.eq.s32.totalorder %s21, 1
    %p219 = por %p217, %p218
    %p221 = scmp.ne.s32.totalorder %s204, %s220
    %p222 = scmp.eq.s32.totalorder %s21, 0
    %p223 = por %p221, %p222
    %s224 = ssub.s32 %s22, %s34
    %s225 = ssub.s32 %s23, %s30
    %s226 = sor.u32 %s224, %s225
    %p227 = scmp.eq.s32.totalorder %s226, 0
    %s229 = sadd.s32 %s228, 1
    %s230 = scalar_select %p227, %s228, %s229
    %p233 = pneg %p227
    %p234 = scmp.eq.s32.totalorder %s15, 1
    %p235 = por %p233, %p234
    %p236 = scmp.ne.s32.totalorder %s228, %s231
    %p237 = scmp.eq.s32.totalorder %s15, 0
    %p238 = por %p236, %p237
    %p239 = scmp.ne.s32.totalorder %s228, %s231
    %p240 = scmp.eq.s32.totalorder %s20, 1
    %p241 = por %p239, %p240
    %p242 = scmp.ne.s32.totalorder %s231, %s232
    %p243 = scmp.eq.s32.totalorder %s20, 0
    %p244 = por %p242, %p243
    %p245 = scmp.ne.s32.totalorder %s231, %s232
    %p246 = scmp.eq.s32.totalorder %s21, 1
    %p247 = por %p245, %p246
    %p249 = scmp.ne.s32.totalorder %s232, %s248
    %p250 = scmp.eq.s32.totalorder %s21, 0
    %p251 = por %p249, %p250
    %p252 = scmp.le.s32.totalorder 1, %s15
    %p253 = scmp.lt.s32.totalorder %s15, 3
    %p254 = pnand %p252, %p253
    %p255 = pneg %p254
    // Predicated region
    $region9: #{transformer_block.3} parent=5 // pred_check
      _
    $region10: #{transformer_block.3} parent=5 // pred_check_branch
      %257 = sbr.rel (%p254) target = $region12
    $region11: #{transformer_block.3} parent=5 // pred_region
      %s258 = ssub.s32 %s15, 1
      // Predicated region
      $region13: #{transformer_block.3} parent=11 // pred_check
        %p259 = pneg %p76
      $region14: #{transformer_block.3} parent=11 // pred_check_branch
        %261 = sbr.rel (%p259) target = $region16
      $region15: #{transformer_block.3} parent=11 // pred_region
        _
      $region16: #{transformer_block.3} parent=11 // pred_fallthru
        _
      // Predicated region
      $region17: #{transformer_block.3} parent=11 // pred_check
        %p262 = pneg %p97
      $region18: #{transformer_block.3} parent=11 // pred_check_branch
        %264 = sbr.rel (%p262) target = $region20
      $region19: #{transformer_block.3} parent=11 // pred_region
        _
      $region20: #{transformer_block.3} parent=11 // pred_fallthru
        _
      // Predicated region
      $region21: #{transformer_block.3} parent=11 // pred_check
        %p265 = pneg %p118
      $region22: #{transformer_block.3} parent=11 // pred_check_branch
        %267 = sbr.rel (%p265) target = $region24
      $region23: #{transformer_block.3} parent=11 // pred_region
        _
      $region24: #{transformer_block.3} parent=11 // pred_fallthru
        _
      // Predicated region
      $region25: #{transformer_block.3} parent=11 // pred_check
        %p268 = pneg %p139
      $region26: #{transformer_block.3} parent=11 // pred_check_branch
        %270 = sbr.rel (%p268) target = $region28
      $region27: #{transformer_block.3} parent=11 // pred_region
        _
      $region28: #{transformer_block.3} parent=11 // pred_fallthru
        _
      // Predicated region
      $region29: #{transformer_block.3} parent=11 // pred_check
        %p271 = pneg %p160
      $region30: #{transformer_block.3} parent=11 // pred_check_branch
        %273 = sbr.rel (%p271) target = $region32
      $region31: #{transformer_block.3} parent=11 // pred_region
        _
      $region32: #{transformer_block.3} parent=11 // pred_fallthru
        _
    $region12: #{transformer_block.3} parent=5 // pred_fallthru
      _
    %p274 = scmp.lt.s32.totalorder %s15, 2
    // Predicated region
    $region33: #{transformer_block.3} parent=5 // pred_check
      %p275 = pneg %p274
    $region34: #{transformer_block.3} parent=5 // pred_check_branch
      %277 = sbr.rel (%p275) target = $region36
    $region35: #{transformer_block.3} parent=5 // pred_region
      // Predicated region
      $region37: #{transformer_block.3} parent=35 // pred_check
        %p278 = pneg %p49
      $region38: #{transformer_block.3} parent=35 // pred_check_branch
        %280 = sbr.rel (%p278) target = $region40
      $region39: #{transformer_block.3} parent=35 // pred_region
        %p281 = scmp.lt.s32.totalorder %s22, 1
        %s282 = scalar_select %p281, %s22, 1
        %p283 = scmp.lt.s32.totalorder %s23, 0
        %s284 = scalar_select %p283, %s23, 0
        %s285 = sadd.s32 %s284, %s282
        %s286 = smul.addr %s285, 8
        %s287 = scalar_lea.vmem %s0, %s286
      $region40: #{transformer_block.3} parent=35 // pred_fallthru
        _
    $region36: #{transformer_block.3} parent=5 // pred_fallthru
      _
    %p288 = scmp.le.s32.totalorder 1, %s15
    %p289 = scmp.lt.s32.totalorder %s15, 3
    %p290 = pnand %p288, %p289
    %p291 = pneg %p290
    // Predicated region
    $region41: #{transformer_block.3} parent=5 // pred_check
      _
    $region42: #{transformer_block.3} parent=5 // pred_check_branch
      %293 = sbr.rel (%p290) target = $region44
    $region43: #{transformer_block.3} parent=5 // pred_region
      %s294 = ssub.s32 %s15, 1
      %p295 = scmp.lt.s32.totalorder %s24, 1
      %s296 = scalar_select %p295, %s24, 1
      %p297 = scmp.lt.s32.totalorder %s25, 0
      %s298 = scalar_select %p297, %s25, 0
      %s299 = sadd.s32 %s298, %s296
      %s300 = smul.addr %s299, 8
      %s301 = scalar_lea.vmem %s0, %s300
      %p302 = pneg %p55
      %p303 = pneg %p52
      %p304 = pneg %p76
      %p305 = pneg %p73
      %p306 = pneg %p97
      %p307 = pneg %p94
      %p308 = pneg %p118
      %p309 = pneg %p115
      %p310 = pneg %p139
      %p311 = pneg %p136
      %p312 = pneg %p160
      %p313 = pneg %p157
      %p314 = pneg %p188
      %p315 = pneg %p185
      %p316 = scmp.lt.s32.totalorder %s24, 1
      %s317 = scalar_select %p316, %s24, 1
      %p318 = scmp.lt.s32.totalorder %s25, 0
      %s319 = scalar_select %p318, %s25, 0
      %s320 = sadd.s32 %s319, %s317
      %s321 = smul.addr %s320, 4
      %s322 = scalar_lea.vmem %s6, %s321
      %p323 = pneg %p216
      %p324 = pneg %p213
      %p325 = scmp.lt.s32.totalorder %s24, 1
      %s326 = scalar_select %p325, %s24, 1
      %p327 = scmp.lt.s32.totalorder %s25, 0
      %s328 = scalar_select %p327, %s25, 0
      %s329 = sadd.s32 %s328, %s326
      %s330 = smul.addr %s329, 4
      %s331 = scalar_lea.vmem %s7, %s330
      %p332 = pneg %p244
      %p333 = pneg %p241
      %p334 = scmp.lt.s32.totalorder %s24, 1
      %s335 = scalar_select %p334, %s24, 1
      %p336 = scmp.lt.s32.totalorder %s25, 0
      %s337 = scalar_select %p336, %s25, 0
      %s338 = sadd.s32 %s337, %s335
      %s339 = smul.addr %s338, 4
      %s340 = scalar_lea.vmem %s8, %s339
      %p341 = scmp.lt.s32.totalorder %s24, 1
      %s342 = scalar_select %p341, %s24, 1
      %p343 = scmp.lt.s32.totalorder %s25, 0
      %s344 = scalar_select %p343, %s25, 0
      %s345 = sadd.s32 %s344, %s342
      %s346 = smul.addr %s345, 8
      %s347 = scalar_lea.vmem %s0, %s346
      %p348 = scmp.lt.s32.totalorder %s24, 1
      %s349 = scalar_select %p348, %s24, 1
      %p350 = scmp.lt.s32.totalorder %s25, 0
      %s351 = scalar_select %p350, %s25, 0
      %s352 = sadd.s32 %s351, %s349
      %s353 = smul.addr %s352, 4
      %s354 = scalar_lea.vmem %s6, %s353
      %p355 = scmp.lt.s32.totalorder %s24, 1
      %s356 = scalar_select %p355, %s24, 1
      %p357 = scmp.lt.s32.totalorder %s25, 0
      %s358 = scalar_select %p357, %s25, 0
      %s359 = sadd.s32 %s358, %s356
      %s360 = smul.addr %s359, 4
      %s361 = scalar_lea.vmem %s7, %s360
      %p362 = scmp.lt.s32.totalorder %s24, 1
      %s363 = scalar_select %p362, %s24, 1
      %p364 = scmp.lt.s32.totalorder %s25, 0
      %s365 = scalar_select %p364, %s25, 0
      %s366 = sadd.s32 %s365, %s363
      %s367 = smul.addr %s366, 4
      %s368 = scalar_lea.vmem %s8, %s367
      %v370 = vld [vmem:[%s347] sm:$0xff]
      %vm371 = vcmask 261120
      %v372 = vsel %vm371, %v370, 0.0
      %373 = vadd.xlane.f32.xlu0 %v372
      %v374 = vpop.xlane.xlu0 %373
      %v375 = vrcp.pop 32.0
      %v376 = vmul.f32 %v374, %v375
      %v377 = vsub.f32 %v370, %v376
      %v378 = vmul.f32 %v377, %v377
      %v379 = vsel %vm371, %v378, 0.0
      %380 = vadd.xlane.f32.xlu0 %v379
      %v381 = vpop.xlane.xlu0 %380
      %v382 = vmul.f32 %v381, %v375
      %v383 = vadd.f32 %v382, 1e-05
      %v384 = vrsqrt.pop %v383
      %v385 = vmul.f32 %v377, %v384
      %v386 = vld [vmem:[%s1] sm:$0x1]
      %v388 = vlaneseq
      %v389 = vshrl.u32 %v388, 7
      %v390 = vsub.s32 0, %v389
      %v391 = vrot.slane %v386, %v390
      %v393 = vmul.f32 %v385, %v391
      %v394 = vld [vmem:[%s2] sm:$0x1]
      %v396 = vlaneseq
      %v397 = vshrl.u32 %v396, 7
      %v398 = vsub.s32 0, %v397
      %v399 = vrot.slane %v394, %v398
      %v401 = vadd.f32 %v393, %v399
      %v402 = vpack.c.bf16 %v401, %v401
      %v403 = vld [vmem:[%s3] sm:$0xf]
      %v404 = vld [vmem:[%s3 + $0x4] sm:$0xf]
      %v405 = vld [vmem:[%s3 + $0x8] sm:$0xf]
      %v406 = vld [vmem:[%s3 + $0xc] sm:$0xf]
      %v411 = vunpack.c.l.b16 %v403
      %v412 = vunpack.c.l.b16 %v404
      %v413 = vunpack.c.l.b16 %v405
      %v414 = vunpack.c.l.b16 %v406
      %v415 = vpack.c.b16 %v412, %v411
      %v416 = vpack.c.b16 %v414, %v413
      %v420 = vsel %vm371, %v402, 0
      %422 = vmatprep.subr.bf16.mxu0 0
      %423 = vmatpush1.bf16.msra.mxu0 0
      %424 = vmatprep.subr.bf16.mxu0 0
      %425 = vmatpush1.bf16.msra.mxu0 0
      %426 = vmatprep.subr.bf16.mxu0 0
      %427 = vmatpush1.bf16.msra.mxu0 0
      %428 = vmatprep.subr.bf16.mxu0 0
      %429 = vmatpush1.bf16.msra.mxu0 0
      %430 = vmatprep.subr.bf16.mxu0 0
      %431 = vmatpush1.bf16.msra.mxu0 0
      %432 = vmatprep.subr.bf16.mxu0 0
      %433 = vmatpush1.bf16.msra.mxu0 0
      %434 = vmatprep.subr.bf16.mxu0 0
      %435 = vmatpush1.bf16.msra.mxu0 %v416
      %436 = vmatprep.subr.bf16.mxu0 0
      %437 = vmatpush1.bf16.msra.mxu0 %v415
      %438 = vmatprep.subr.bf16.mxu0 0
      %439 = vmatpush2.bf16.msra.mxu0 0
      %440 = vmatprep.subr.bf16.mxu0 0
      %441 = vmatpush2.bf16.msra.mxu0 0
      %442 = vmatprep.subr.bf16.mxu0 0
      %443 = vmatpush2.bf16.msra.mxu0 0
      %444 = vmatprep.subr.bf16.mxu0 0
      %445 = vmatpush2.bf16.msra.mxu0 0
      %446 = vmatprep.subr.bf16.mxu0 0
      %447 = vmatpush2.bf16.msra.mxu0 0
      %448 = vmatprep.subr.bf16.mxu0 0
      %449 = vmatpush2.bf16.msra.mxu0 0
      %450 = vmatprep.subr.bf16.mxu0 0
      %451 = vmatpush2.bf16.msra.mxu0 0
      %452 = vmatprep.subr.bf16.mxu0 0
      %453 = vmatpush2.bf16.msra.mxu0 0
      %454 = vmatprep.mubr.bf16.mxu0 0
      %455 = vmatmul.mubr.bf16.gmra.mxu0 %v420
      %v456 = vpop.f32.mrf.mxu0
      %v457 = vadd.f32 0.0, %v456
      %v458 = vpop.f32.mrf.mxu0
      %v459 = vpop.f32.mrf.mxu0
      %v460 = vpop.f32.mrf.mxu0
      %461 = vdwg.mxu0
      %v462 = vpack.c.bf16 %v457, %v457
      %vm463 = vcmask 257024
      %464 = vst.msk [vmem:[%s354] sm:$0xf] %vm463, %v462
      %v465 = vld [vmem:[%s4] sm:$0xf]
      %v466 = vld [vmem:[%s4 + $0x4] sm:$0xf]
      %v467 = vld [vmem:[%s4 + $0x8] sm:$0xf]
      %v468 = vld [vmem:[%s4 + $0xc] sm:$0xf]
      %v473 = vunpack.c.l.b16 %v465
      %v474 = vunpack.c.l.b16 %v466
      %v475 = vunpack.c.l.b16 %v467
      %v476 = vunpack.c.l.b16 %v468
      %v477 = vpack.c.b16 %v474, %v473
      %v478 = vpack.c.b16 %v476, %v475
      %481 = vmatprep.subr.bf16.mxu0 0
      %482 = vmatpush1.bf16.msra.mxu0 0
      %483 = vmatprep.subr.bf16.mxu0 0
      %484 = vmatpush1.bf16.msra.mxu0 0
      %485 = vmatprep.subr.bf16.mxu0 0
      %486 = vmatpush1.bf16.msra.mxu0 0
      %487 = vmatprep.subr.bf16.mxu0 0
      %488 = vmatpush1.bf16.msra.mxu0 0
      %489 = vmatprep.subr.bf16.mxu0 0
      %490 = vmatpush1.bf16.msra.mxu0 0
      %491 = vmatprep.subr.bf16.mxu0 0
      %492 = vmatpush1.bf16.msra.mxu0 0
      %493 = vmatprep.subr.bf16.mxu0 0
      %494 = vmatpush1.bf16.msra.mxu0 %v478
      %495 = vmatprep.subr.bf16.mxu0 0
      %496 = vmatpush1.bf16.msra.mxu0 %v477
      %497 = vmatprep.subr.bf16.mxu0 0
      %498 = vmatpush2.bf16.msra.mxu0 0
      %499 = vmatprep.subr.bf16.mxu0 0
      %500 = vmatpush2.bf16.msra.mxu0 0
      %501 = vmatprep.subr.bf16.mxu0 0
      %502 = vmatpush2.bf16.msra.mxu0 0
      %503 = vmatprep.subr.bf16.mxu0 0
      %504 = vmatpush2.bf16.msra.mxu0 0
      %505 = vmatprep.subr.bf16.mxu0 0
      %506 = vmatpush2.bf16.msra.mxu0 0
      %507 = vmatprep.subr.bf16.mxu0 0
      %508 = vmatpush2.bf16.msra.mxu0 0
      %509 = vmatprep.subr.bf16.mxu0 0
      %510 = vmatpush2.bf16.msra.mxu0 0
      %511 = vmatprep.subr.bf16.mxu0 0
      %512 = vmatpush2.bf16.msra.mxu0 0
      %513 = vmatprep.mubr.bf16.mxu0 0
      %514 = vmatmul.mubr.bf16.gmra.mxu0 %v420
      %v515 = vpop.f32.mrf.mxu0
      %v516 = vadd.f32 0.0, %v515
      %v517 = vpop.f32.mrf.mxu0
      %v518 = vpop.f32.mrf.mxu0
      %v519 = vpop.f32.mrf.mxu0
      %520 = vdwg.mxu0
      %v521 = vpack.c.bf16 %v516, %v516
      %522 = vst.msk [vmem:[%s361] sm:$0xf] %vm463, %v521
      %v523 = vld [vmem:[%s5] sm:$0xf]
      %v524 = vld [vmem:[%s5 + $0x4] sm:$0xf]
      %v525 = vld [vmem:[%s5 + $0x8] sm:$0xf]
      %v526 = vld [vmem:[%s5 + $0xc] sm:$0xf]
      %v531 = vunpack.c.l.b16 %v523
      %v532 = vunpack.c.l.b16 %v524
      %v533 = vunpack.c.l.b16 %v525
      %v534 = vunpack.c.l.b16 %v526
      %v535 = vpack.c.b16 %v532, %v531
      %v536 = vpack.c.b16 %v534, %v533
      %539 = vmatprep.subr.bf16.mxu0 0
      %540 = vmatpush1.bf16.msra.mxu0 0
      %541 = vmatprep.subr.bf16.mxu0 0
      %542 = vmatpush1.bf16.msra.mxu0 0
      %543 = vmatprep.subr.bf16.mxu0 0
      %544 = vmatpush1.bf16.msra.mxu0 0
      %545 = vmatprep.subr.bf16.mxu0 0
      %546 = vmatpush1.bf16.msra.mxu0 0
      %547 = vmatprep.subr.bf16.mxu0 0
      %548 = vmatpush1.bf16.msra.mxu0 0
      %549 = vmatprep.subr.bf16.mxu0 0
      %550 = vmatpush1.bf16.msra.mxu0 0
      %551 = vmatprep.subr.bf16.mxu0 0
      %552 = vmatpush1.bf16.msra.mxu0 %v536
      %553 = vmatprep.subr.bf16.mxu0 0
      %554 = vmatpush1.bf16.msra.mxu0 %v535
      %555 = vmatprep.subr.bf16.mxu0 0
      %556 = vmatpush2.bf16.msra.mxu0 0
      %557 = vmatprep.subr.bf16.mxu0 0
      %558 = vmatpush2.bf16.msra.mxu0 0
      %559 = vmatprep.subr.bf16.mxu0 0
      %560 = vmatpush2.bf16.msra.mxu0 0
      %561 = vmatprep.subr.bf16.mxu0 0
      %562 = vmatpush2.bf16.msra.mxu0 0
      %563 = vmatprep.subr.bf16.mxu0 0
      %564 = vmatpush2.bf16.msra.mxu0 0
      %565 = vmatprep.subr.bf16.mxu0 0
      %566 = vmatpush2.bf16.msra.mxu0 0
      %567 = vmatprep.subr.bf16.mxu0 0
      %568 = vmatpush2.bf16.msra.mxu0 0
      %569 = vmatprep.subr.bf16.mxu0 0
      %570 = vmatpush2.bf16.msra.mxu0 0
      %571 = vmatprep.mubr.bf16.mxu0 0
      %572 = vmatmul.mubr.bf16.gmra.mxu0 %v420
      %v573 = vpop.f32.mrf.mxu0
      %v574 = vadd.f32 0.0, %v573
      %v575 = vpop.f32.mrf.mxu0
      %v576 = vpop.f32.mrf.mxu0
      %v577 = vpop.f32.mrf.mxu0
      %578 = vdwg.mxu0
      %v579 = vpack.c.bf16 %v574, %v574
      %580 = vst.msk [vmem:[%s368] sm:$0xf] %vm463, %v579
      %p581 = scmp.lt.s32.totalorder %s24, 1
      %s582 = scalar_select %p581, %s24, 1
      %p583 = scmp.lt.s32.totalorder %s25, 0
      %s584 = scalar_select %p583, %s25, 0
      %s585 = sadd.s32 %s584, %s582
      %s586 = smul.addr %s585, 4
      %s587 = scalar_lea.vmem %s6, %s586
      %p588 = scmp.lt.s32.totalorder %s24, 1
      %s589 = scalar_select %p588, %s24, 1
      %p590 = scmp.lt.s32.totalorder %s25, 0
      %s591 = scalar_select %p590, %s25, 0
      %s592 = sadd.s32 %s591, %s589
      %s593 = smul.addr %s592, 4
      %s594 = scalar_lea.vmem %s7, %s593
      %p595 = scmp.lt.s32.totalorder %s24, 1
      %s596 = scalar_select %p595, %s24, 1
      %p597 = scmp.lt.s32.totalorder %s25, 0
      %s598 = scalar_select %p597, %s25, 0
      %s599 = sadd.s32 %s598, %s596
      %s600 = smul.addr %s599, 4
      %s601 = scalar_lea.vmem %s8, %s600
      // Predicated region
      $region45: #{transformer_block.3} parent=43 // pred_check
        %p602 = pneg %p185
      $region46: #{transformer_block.3} parent=43 // pred_check_branch
        %604 = sbr.rel (%p602) target = $region48
      $region47: #{transformer_block.3} parent=43 // pred_region
        _
      $region48: #{transformer_block.3} parent=43 // pred_fallthru
        _
      // Predicated region
      $region49: #{transformer_block.3} parent=43 // pred_check
        %p605 = pneg %p213
      $region50: #{transformer_block.3} parent=43 // pred_check_branch
        %607 = sbr.rel (%p605) target = $region52
      $region51: #{transformer_block.3} parent=43 // pred_region
        _
      $region52: #{transformer_block.3} parent=43 // pred_fallthru
        _
      // Predicated region
      $region53: #{transformer_block.3} parent=43 // pred_check
        %p608 = pneg %p241
      $region54: #{transformer_block.3} parent=43 // pred_check_branch
        %610 = sbr.rel (%p608) target = $region56
      $region55: #{transformer_block.3} parent=43 // pred_region
        _
      $region56: #{transformer_block.3} parent=43 // pred_fallthru
        _
    $region44: #{transformer_block.3} parent=5 // pred_fallthru
      _
    %p611 = scmp.le.s32.totalorder 2, %s15
    // Predicated region
    $region57: #{transformer_block.3} parent=5 // pred_check
      %p612 = pneg %p611
    $region58: #{transformer_block.3} parent=5 // pred_check_branch
      %614 = sbr.rel (%p612) target = $region60
    $region59: #{transformer_block.3} parent=5 // pred_region
      %s615 = ssub.s32 %s15, 2
      // Predicated region
      $region61: #{transformer_block.3} parent=59 // pred_check
        %p616 = pneg %p191
      $region62: #{transformer_block.3} parent=59 // pred_check_branch
        %618 = sbr.rel (%p616) target = $region64
      $region63: #{transformer_block.3} parent=59 // pred_region
        %p619 = scmp.lt.s32.totalorder %s26, 1
        %s620 = scalar_select %p619, %s26, 1
        %p621 = scmp.lt.s32.totalorder %s27, 0
        %s622 = scalar_select %p621, %s27, 0
        %s623 = sadd.s32 %s622, %s620
        %s624 = smul.addr %s623, 4
        %s625 = scalar_lea.vmem %s6, %s624
      $region64: #{transformer_block.3} parent=59 // pred_fallthru
        _
      // Predicated region
      $region65: #{transformer_block.3} parent=59 // pred_check
        %p626 = pneg %p219
      $region66: #{transformer_block.3} parent=59 // pred_check_branch
        %628 = sbr.rel (%p626) target = $region68
      $region67: #{transformer_block.3} parent=59 // pred_region
        %p629 = scmp.lt.s32.totalorder %s26, 1
        %s630 = scalar_select %p629, %s26, 1
        %p631 = scmp.lt.s32.totalorder %s27, 0
        %s632 = scalar_select %p631, %s27, 0
        %s633 = sadd.s32 %s632, %s630
        %s634 = smul.addr %s633, 4
        %s635 = scalar_lea.vmem %s7, %s634
      $region68: #{transformer_block.3} parent=59 // pred_fallthru
        _
      // Predicated region
      $region69: #{transformer_block.3} parent=59 // pred_check
        %p636 = pneg %p247
      $region70: #{transformer_block.3} parent=59 // pred_check_branch
        %638 = sbr.rel (%p636) target = $region72
      $region71: #{transformer_block.3} parent=59 // pred_region
        %p639 = scmp.lt.s32.totalorder %s26, 1
        %s640 = scalar_select %p639, %s26, 1
        %p641 = scmp.lt.s32.totalorder %s27, 0
        %s642 = scalar_select %p641, %s27, 0
        %s643 = sadd.s32 %s642, %s640
        %s644 = smul.addr %s643, 4
        %s645 = scalar_lea.vmem %s8, %s644
      $region72: #{transformer_block.3} parent=59 // pred_fallthru
        _
    $region60: #{transformer_block.3} parent=5 // pred_fallthru
      _
  $region6: #{transformer_block.3} parent=0 // loop_footer
    %s19 = sadd.s32 1, %s15
  $region7: #{transformer_block.3} parent=0 // loop_footer_branch
    %14 = sbr.rel target = $region3
  $region8: #{transformer_block.3} parent=0 // loop_exit
    _

// kernel: transformer_block.4
$region0: #{transformer_block.4}
  #allocation0 [shape = 'u32[]', space=smem, size = 0x4, offset = 0x4, fixed_abs, tag = 'smem constant byte address 0x4 - core index']
  #allocation1 [shape = 'u32[144,128]{1,0:T(1,128)}', space=vmem, size = 0x12000, scoped, tag = 'internal scratch']
  #allocation2 [shape = 'f32[4,8,1]{2,1,0:T(8,128)}', space=vmem, size = 0x4000, scoped, tag = 'scratch operand']
  #allocation3 [shape = 'f32[4,8,1]{2,1,0:T(8,128)}', space=vmem, size = 0x4000, scoped, tag = 'scratch operand']
  #allocation4 [shape = 'f32[4,8,8]{2,1,0:T(8,128)}', space=vmem, size = 0x4000, scoped, tag = 'scratch operand']
  %s0 = inlined_call_operand.vmem [shape: bf16[2,8,32], index: 0, kind: input, shape index: {}]
  %s1 = inlined_call_operand.vmem [shape: bf16[2,8,32], index: 1, kind: input, shape index: {}]
  %s2 = inlined_call_operand.vmem [shape: bf16[2,8,32], index: 2, kind: input, shape index: {}]
  %s3 = inlined_call_operand.vmem [shape: bf16[2,8,32], index: 3, kind: output, shape index: {}]
  %s4 = sld [smem:[#allocation0]]
  $region53: #{transformer_block.4} parent=0
    _
  %s6 = ssub.s32 1, %s4
  %s7 = scalar_select 0, %s6, %s4
  loop: start=0, step=1, limit=4
  $region2: #{transformer_block.4} parent=0 // loop_pre_header
    _
  $region3: #{transformer_block.4} parent=0 // loop_header
    %s9 = sphi 0, %s13
    %p10 = scmp.ge.s32.totalorder %s9, 4
    %s16 = sphi 0, %s42
    %s17 = sphi 0, %s38
    %s18 = sphi 0, %s34
    %s19 = sphi 0, %s30
    %s20 = sphi 0, %s16
    %s21 = sphi 0, %s17
    %s22 = sphi 0, %s18
    %s23 = sphi 0, %s19
    %s24 = sphi 0, %s20
    %s25 = sphi 0, %s21
    %s26 = sphi 0, %s22
    %s27 = sphi 0, %s23
    %s49 = sphi 0, %s51
    %s52 = sphi 0, %s49
    %s53 = sphi 0, %s52
    %s69 = sphi 0, %s53
    %s79 = sphi 0, %s81
    %s82 = sphi 0, %s79
    %s83 = sphi 0, %s82
    %s99 = sphi 0, %s83
    %s109 = sphi 0, %s111
    %s112 = sphi 0, %s109
    %s113 = sphi 0, %s112
    %s129 = sphi 0, %s113
    %s139 = sphi 0, %s141
    %s142 = sphi 0, %s139
    %s143 = sphi 0, %s142
    %s159 = sphi 0, %s143
  $region4: #{transformer_block.4} parent=0 // loop_header_branch
    %12 = sbr.rel (%p10) target = $region8
  $region5: #{transformer_block.4} parent=0 // loop_body
    %s14 = ssub.s32 %s9, 1
    %s15 = ssub.s32 %s9, 2
    %s28 = sadd.s32 1, %s19
    %p29 = scmp.ge.s32.totalorder %s28, 1
    %s30 = scalar_select %p29, 0, %s28
    %s31 = sadd.s32 1, %s18
    %s32 = scalar_select %p29, %s31, %s18
    %p33 = scmp.ge.s32.totalorder %s32, 1
    %s34 = scalar_select %p33, 0, %s32
    %s35 = sadd.s32 1, %s17
    %s36 = scalar_select %p33, %s35, %s17
    %p37 = scmp.ge.s32.totalorder %s36, 1
    %s38 = scalar_select %p37, 0, %s36
    %s39 = sadd.s32 1, %s16
    %s40 = scalar_select %p37, %s39, %s16
    %p41 = scmp.ge.s32.totalorder %s40, 2
    %s42 = scalar_select %p41, 0, %s40
    %s43 = ssub.s32 %s16, %s42
    %s44 = ssub.s32 %s18, %s34
    %s45 = sor.u32 %s43, %s44
    %s46 = ssub.s32 %s17, %s38
    %s47 = sor.u32 %s45, %s46
    %p48 = scmp.eq.s32.totalorder %s47, 0
    %s50 = sadd.s32 %s49, 1
    %s51 = scalar_select %p48, %s49, %s50
    %p54 = pneg %p48
    %p55 = scmp.eq.s32.totalorder %s9, 1
    %p56 = por %p54, %p55
    %p57 = scmp.ne.s32.totalorder %s49, %s52
    %p58 = scmp.eq.s32.totalorder %s9, 0
    %p59 = por %p57, %p58
    %p60 = scmp.ne.s32.totalorder %s49, %s52
    %p61 = scmp.eq.s32.totalorder %s14, 1
    %p62 = por %p60, %p61
    %p63 = scmp.ne.s32.totalorder %s52, %s53
    %p64 = scmp.eq.s32.totalorder %s14, 0
    %p65 = por %p63, %p64
    %p66 = scmp.ne.s32.totalorder %s52, %s53
    %p67 = scmp.eq.s32.totalorder %s15, 1
    %p68 = por %p66, %p67
    %p70 = scmp.ne.s32.totalorder %s53, %s69
    %p71 = scmp.eq.s32.totalorder %s15, 0
    %p72 = por %p70, %p71
    %s73 = ssub.s32 %s16, %s42
    %s74 = ssub.s32 %s19, %s30
    %s75 = sor.u32 %s73, %s74
    %s76 = ssub.s32 %s17, %s38
    %s77 = sor.u32 %s75, %s76
    %p78 = scmp.eq.s32.totalorder %s77, 0
    %s80 = sadd.s32 %s79, 1
    %s81 = scalar_select %p78, %s79, %s80
    %p84 = pneg %p78
    %p85 = scmp.eq.s32.totalorder %s9, 1
    %p86 = por %p84, %p85
    %p87 = scmp.ne.s32.totalorder %s79, %s82
    %p88 = scmp.eq.s32.totalorder %s9, 0
    %p89 = por %p87, %p88
    %p90 = scmp.ne.s32.totalorder %s79, %s82
    %p91 = scmp.eq.s32.totalorder %s14, 1
    %p92 = por %p90, %p91
    %p93 = scmp.ne.s32.totalorder %s82, %s83
    %p94 = scmp.eq.s32.totalorder %s14, 0
    %p95 = por %p93, %p94
    %p96 = scmp.ne.s32.totalorder %s82, %s83
    %p97 = scmp.eq.s32.totalorder %s15, 1
    %p98 = por %p96, %p97
    %p100 = scmp.ne.s32.totalorder %s83, %s99
    %p101 = scmp.eq.s32.totalorder %s15, 0
    %p102 = por %p100, %p101
    %s103 = ssub.s32 %s16, %s42
    %s104 = ssub.s32 %s19, %s30
    %s105 = sor.u32 %s103, %s104
    %s106 = ssub.s32 %s17, %s38
    %s107 = sor.u32 %s105, %s106
    %p108 = scmp.eq.s32.totalorder %s107, 0
    %s110 = sadd.s32 %s109, 1
    %s111 = scalar_select %p108, %s109, %s110
    %p114 = pneg %p108
    %p115 = scmp.eq.s32.totalorder %s9, 1
    %p116 = por %p114, %p115
    %p117 = scmp.ne.s32.totalorder %s109, %s112
    %p118 = scmp.eq.s32.totalorder %s9, 0
    %p119 = por %p117, %p118
    %p120 = scmp.ne.s32.totalorder %s109, %s112
    %p121 = scmp.eq.s32.totalorder %s14, 1
    %p122 = por %p120, %p121
    %p123 = scmp.ne.s32.totalorder %s112, %s113
    %p124 = scmp.eq.s32.totalorder %s14, 0
    %p125 = por %p123, %p124
    %p126 = scmp.ne.s32.totalorder %s112, %s113
    %p127 = scmp.eq.s32.totalorder %s15, 1
    %p128 = por %p126, %p127
    %p130 = scmp.ne.s32.totalorder %s113, %s129
    %p131 = scmp.eq.s32.totalorder %s15, 0
    %p132 = por %p130, %p131
    %s133 = ssub.s32 %s16, %s42
    %s134 = ssub.s32 %s18, %s34
    %s135 = sor.u32 %s133, %s134
    %s136 = ssub.s32 %s17, %s38
    %s137 = sor.u32 %s135, %s136
    %p138 = scmp.eq.s32.totalorder %s137, 0
    %s140 = sadd.s32 %s139, 1
    %s141 = scalar_select %p138, %s139, %s140
    %p144 = pneg %p138
    %p145 = scmp.eq.s32.totalorder %s9, 1
    %p146 = por %p144, %p145
    %p147 = scmp.ne.s32.totalorder %s139, %s142
    %p148 = scmp.eq.s32.totalorder %s9, 0
    %p149 = por %p147, %p148
    %p150 = scmp.ne.s32.totalorder %s139, %s142
    %p151 = scmp.eq.s32.totalorder %s14, 1
    %p152 = por %p150, %p151
    %p153 = scmp.ne.s32.totalorder %s142, %s143
    %p154 = scmp.eq.s32.totalorder %s14, 0
    %p155 = por %p153, %p154
    %p156 = scmp.ne.s32.totalorder %s142, %s143
    %p157 = scmp.eq.s32.totalorder %s15, 1
    %p158 = por %p156, %p157
    %p160 = scmp.ne.s32.totalorder %s143, %s159
    %p161 = scmp.eq.s32.totalorder %s15, 0
    %p162 = por %p160, %p161
    %p163 = scmp.le.s32.totalorder 1, %s9
    %p164 = scmp.lt.s32.totalorder %s9, 3
    %p165 = pnand %p163, %p164
    %p166 = pneg %p165
    // Predicated region
    $region9: #{transformer_block.4} parent=5 // pred_check
      _
    $region10: #{transformer_block.4} parent=5 // pred_check_branch
      %168 = sbr.rel (%p165) target = $region12
    $region11: #{transformer_block.4} parent=5 // pred_region
      %s169 = ssub.s32 %s9, 1
    $region12: #{transformer_block.4} parent=5 // pred_fallthru
      _
    %p170 = scmp.lt.s32.totalorder %s9, 2
    // Predicated region
    $region13: #{transformer_block.4} parent=5 // pred_check
      %p171 = pneg %p170
    $region14: #{transformer_block.4} parent=5 // pred_check_branch
      %173 = sbr.rel (%p171) target = $region16
    $region15: #{transformer_block.4} parent=5 // pred_region
      // Predicated region
      $region17: #{transformer_block.4} parent=15 // pred_check
        %p174 = pneg %p59
      $region18: #{transformer_block.4} parent=15 // pred_check_branch
        %176 = sbr.rel (%p174) target = $region20
      $region19: #{transformer_block.4} parent=15 // pred_region
        %p177 = scmp.lt.s32.totalorder %s16, 1
        %s178 = scalar_select %p177, %s16, 1
        %p179 = scmp.lt.s32.totalorder %s18, 0
        %s180 = scalar_select %p179, %s18, 0
        %p181 = scmp.lt.s32.totalorder %s17, 0
        %s182 = scalar_select %p181, %s17, 0
        %s183 = sadd.s32 %s182, %s180
        %s184 = sadd.s32 %s183, %s178
        %s185 = smul.addr %s184, 4
        %s186 = scalar_lea.vmem %s0, %s185
      $region20: #{transformer_block.4} parent=15 // pred_fallthru
        _
      // Predicated region
      $region21: #{transformer_block.4} parent=15 // pred_check
        %p187 = pneg %p89
      $region22: #{transformer_block.4} parent=15 // pred_check_branch
        %189 = sbr.rel (%p187) target = $region24
      $region23: #{transformer_block.4} parent=15 // pred_region
        %p190 = scmp.lt.s32.totalorder %s16, 1
        %s191 = scalar_select %p190, %s16, 1
        %p192 = scmp.lt.s32.totalorder %s19, 0
        %s193 = scalar_select %p192, %s19, 0
        %p194 = scmp.lt.s32.totalorder %s17, 0
        %s195 = scalar_select %p194, %s17, 0
        %s196 = sadd.s32 %s195, %s193
        %s197 = sadd.s32 %s196, %s191
        %s198 = smul.addr %s197, 4
        %s199 = scalar_lea.vmem %s1, %s198
      $region24: #{transformer_block.4} parent=15 // pred_fallthru
        _
      // Predicated region
      $region25: #{transformer_block.4} parent=15 // pred_check
        %p200 = pneg %p119
      $region26: #{transformer_block.4} parent=15 // pred_check_branch
        %202 = sbr.rel (%p200) target = $region28
      $region27: #{transformer_block.4} parent=15 // pred_region
        %p203 = scmp.lt.s32.totalorder %s16, 1
        %s204 = scalar_select %p203, %s16, 1
        %p205 = scmp.lt.s32.totalorder %s19, 0
        %s206 = scalar_select %p205, %s19, 0
        %p207 = scmp.lt.s32.totalorder %s17, 0
        %s208 = scalar_select %p207, %s17, 0
        %s209 = sadd.s32 %s208, %s206
        %s210 = sadd.s32 %s209, %s204
        %s211 = smul.addr %s210, 4
        %s212 = scalar_lea.vmem %s2, %s211
      $region28: #{transformer_block.4} parent=15 // pred_fallthru
        _
    $region16: #{transformer_block.4} parent=5 // pred_fallthru
      _
    %p213 = scmp.le.s32.totalorder 1, %s9
    %p214 = scmp.lt.s32.totalorder %s9, 3
    %p215 = pnand %p213, %p214
    %p216 = pneg %p215
    // Predicated region
    $region29: #{transformer_block.4} parent=5 // pred_check
      _
    $region30: #{transformer_block.4} parent=5 // pred_check_branch
      %218 = sbr.rel (%p215) target = $region32
    $region31: #{transformer_block.4} parent=5 // pred_region
      %s219 = ssub.s32 %s9, 1
      %p220 = scmp.lt.s32.totalorder %s20, 1
      %s221 = scalar_select %p220, %s20, 1
      %p222 = scmp.lt.s32.totalorder %s22, 0
      %s223 = scalar_select %p222, %s22, 0
      %p224 = scmp.lt.s32.totalorder %s21, 0
      %s225 = scalar_select %p224, %s21, 0
      %s226 = sadd.s32 %s225, %s223
      %s227 = sadd.s32 %s226, %s221
      %s228 = smul.addr %s227, 4
      %s229 = scalar_lea.vmem %s0, %s228
      %p230 = pneg %p65
      %p231 = pneg %p62
      %p232 = scmp.lt.s32.totalorder %s20, 1
      %s233 = scalar_select %p232, %s20, 1
      %p234 = scmp.lt.s32.totalorder %s23, 0
      %s235 = scalar_select %p234, %s23, 0
      %p236 = scmp.lt.s32.totalorder %s21, 0
      %s237 = scalar_select %p236, %s21, 0
      %s238 = sadd.s32 %s237, %s235
      %s239 = sadd.s32 %s238, %s233
      %s240 = smul.addr %s239, 4
      %s241 = scalar_lea.vmem %s1, %s240
      %p242 = pneg %p95
      %p243 = pneg %p92
      %p244 = scmp.lt.s32.totalorder %s20, 1
      %s245 = scalar_select %p244, %s20, 1
      %p246 = scmp.lt.s32.totalorder %s23, 0
      %s247 = scalar_select %p246, %s23, 0
      %p248 = scmp.lt.s32.totalorder %s21, 0
      %s249 = scalar_select %p248, %s21, 0
      %s250 = sadd.s32 %s249, %s247
      %s251 = sadd.s32 %s250, %s245
      %s252 = smul.addr %s251, 4
      %s253 = scalar_lea.vmem %s2, %s252
      %p254 = pneg %p125
      %p255 = pneg %p122
      %p256 = pneg %p155
      %p257 = pneg %p152
      %p258 = scmp.lt.s32.totalorder %s20, 1
      %s259 = scalar_select %p258, %s20, 1
      %p260 = scmp.lt.s32.totalorder %s22, 0
      %s261 = scalar_select %p260, %s22, 0
      %p262 = scmp.lt.s32.totalorder %s21, 0
      %s263 = scalar_select %p262, %s21, 0
      %s264 = sadd.s32 %s263, %s261
      %s265 = sadd.s32 %s264, %s259
      %s266 = smul.addr %s265, 4
      %s267 = scalar_lea.vmem %s3, %s266
      %p268 = scmp.lt.s32.totalorder %s20, 1
      %s269 = scalar_select %p268, %s20, 1
      %p270 = scmp.lt.s32.totalorder %s22, 0
      %s271 = scalar_select %p270, %s22, 0
      %p272 = scmp.lt.s32.totalorder %s21, 0
      %s273 = scalar_select %p272, %s21, 0
      %s274 = sadd.s32 %s273, %s271
      %s275 = sadd.s32 %s274, %s269
      %s276 = smul.addr %s275, 4
      %s277 = scalar_lea.vmem %s0, %s276
      %p278 = scmp.lt.s32.totalorder %s20, 1
      %s279 = scalar_select %p278, %s20, 1
      %p280 = scmp.lt.s32.totalorder %s23, 0
      %s281 = scalar_select %p280, %s23, 0
      %p282 = scmp.lt.s32.totalorder %s21, 0
      %s283 = scalar_select %p282, %s21, 0
      %s284 = sadd.s32 %s283, %s281
      %s285 = sadd.s32 %s284, %s279
      %s286 = smul.addr %s285, 4
      %s287 = scalar_lea.vmem %s1, %s286
      %p288 = scmp.lt.s32.totalorder %s20, 1
      %s289 = scalar_select %p288, %s20, 1
      %p290 = scmp.lt.s32.totalorder %s23, 0
      %s291 = scalar_select %p290, %s23, 0
      %p292 = scmp.lt.s32.totalorder %s21, 0
      %s293 = scalar_select %p292, %s21, 0
      %s294 = sadd.s32 %s293, %s291
      %s295 = sadd.s32 %s294, %s289
      %s296 = smul.addr %s295, 4
      %s297 = scalar_lea.vmem %s2, %s296
      %p298 = scmp.lt.s32.totalorder %s20, 1
      %s299 = scalar_select %p298, %s20, 1
      %p300 = scmp.lt.s32.totalorder %s22, 0
      %s301 = scalar_select %p300, %s22, 0
      %p302 = scmp.lt.s32.totalorder %s21, 0
      %s303 = scalar_select %p302, %s21, 0
      %s304 = sadd.s32 %s303, %s301
      %s305 = sadd.s32 %s304, %s299
      %s306 = smul.addr %s305, 4
      %s307 = scalar_lea.vmem %s3, %s306
      %p309 = scmp.eq.s32.totalorder %s23, 0
      // Predicated region
      $region33: #{transformer_block.4} parent=31 // pred_check
        %p310 = pneg %p309
      $region34: #{transformer_block.4} parent=31 // pred_check_branch
        %312 = sbr.rel (%p310) target = $region36
      $region35: #{transformer_block.4} parent=31 // pred_region
        %vm313 = vcmask 7168
        %314 = vst.msk [vmem:[#allocation2] sm:$0xff] %vm313, -1e+30
        %315 = vst.msk [vmem:[#allocation2 + $0x8] sm:$0xff] %vm313, -1e+30
        %316 = vst.msk [vmem:[#allocation2 + $0x10] sm:$0xff] %vm313, -1e+30
        %317 = vst.msk [vmem:[#allocation2 + $0x18] sm:$0xff] %vm313, -1e+30
        %318 = vst.msk [vmem:[#allocation3] sm:$0xff] %vm313, 0.0
        %319 = vst.msk [vmem:[#allocation3 + $0x8] sm:$0xff] %vm313, 0.0
        %320 = vst.msk [vmem:[#allocation3 + $0x10] sm:$0xff] %vm313, 0.0
        %321 = vst.msk [vmem:[#allocation3 + $0x18] sm:$0xff] %vm313, 0.0
        %vm322 = vcmask 64512
        %323 = vst.msk [vmem:[#allocation4] sm:$0xff] %vm322, 0.0
        %324 = vst.msk [vmem:[#allocation4 + $0x8] sm:$0xff] %vm322, 0.0
        %325 = vst.msk [vmem:[#allocation4 + $0x10] sm:$0xff] %vm322, 0.0
        %326 = vst.msk [vmem:[#allocation4 + $0x18] sm:$0xff] %vm322, 0.0
      $region36: #{transformer_block.4} parent=31 // pred_fallthru
        _
      %v327 = vld [vmem:[%s277] sm:$0xf]
      %v328 = vld [vmem:[%s287] sm:$0xf]
      %v329 = vld [vmem:[%s297] sm:$0xf]
      %vm330 = vcmask 64512
      %v332 = vsel %vm330, %v327, 0
      %v335 = vsel %vm330, %v328, 0
      %337 = vmatprep.subr.bf16.mxu0 0
      %338 = vmatpush1.bf16.xpose.msra.mxu0 0
      %339 = vmatprep.subr.bf16.mxu0 0
      %340 = vmatpush1.bf16.xpose.msra.mxu0 0
      %341 = vmatprep.subr.bf16.mxu0 0
      %342 = vmatpush1.bf16.xpose.msra.mxu0 0
      %343 = vmatprep.subr.bf16.mxu0 0
      %344 = vmatpush1.bf16.xpose.msra.mxu0 0
      %345 = vmatprep.subr.bf16.mxu0 0
      %346 = vmatpush1.bf16.xpose.msra.mxu0 0
      %347 = vmatprep.subr.bf16.mxu0 0
      %348 = vmatpush1.bf16.xpose.msra.mxu0 0
      %349 = vmatprep.subr.bf16.mxu0 0
      %350 = vmatpush1.bf16.xpose.msra.mxu0 0
      %351 = vmatprep.subr.bf16.mxu0 0
      %352 = vmatpush1.bf16.xpose.msra.mxu0 %v335
      %353 = vmatprep.subr.bf16.mxu0 0
      %354 = vmatpush2.bf16.xpose.msra.mxu0 0
      %355 = vmatprep.subr.bf16.mxu0 0
      %356 = vmatpush2.bf16.xpose.msra.mxu0 0
      %357 = vmatprep.subr.bf16.mxu0 0
      %358 = vmatpush2.bf16.xpose.msra.mxu0 0
      %359 = vmatprep.subr.bf16.mxu0 0
      %360 = vmatpush2.bf16.xpose.msra.mxu0 0
      %361 = vmatprep.subr.bf16.mxu0 0
      %362 = vmatpush2.bf16.xpose.msra.mxu0 0
      %363 = vmatprep.subr.bf16.mxu0 0
      %364 = vmatpush2.bf16.xpose.msra.mxu0 0
      %365 = vmatprep.subr.bf16.mxu0 0
      %366 = vmatpush2.bf16.xpose.msra.mxu0 0
      %367 = vmatprep.subr.bf16.mxu0 0
      %368 = vmatpush2.bf16.xpose.msra.mxu0 0
      %369 = vmatprep.mubr.bf16.mxu0 0
      %370 = vmatmul.mubr.bf16.gmra.mxu0 %v332
      %v371 = vpop.f32.mrf.mxu0
      %v372 = vadd.f32 0.0, %v371
      %v373 = vpop.f32.mrf.mxu0
      %v374 = vpop.f32.mrf.mxu0
      %v375 = vpop.f32.mrf.mxu0
      %376 = vdwg.mxu0
      %v377 = vmul.f32 %v372, 0.35355338
      %v378 = vld [vmem:[#allocation2] sm:$0xff]
      %v379 = vsel %vm330, %v377, -inf
      %380 = vmax.xlane.f32.xlu0 %v379
      %v381 = vpop.xlane.xlu0 %380
      %v382 = vmax.f32 %v378, %v381
      %v383 = vsub.f32 %v378, %v382
      %v384 = vmul.f32 %v383, 1.442695
      %v385 = vpow.pop %v384
      %387 = vset.pattern.permute.xlu0 0
      %388 = vperm.xlu0 %387, %v382
      %v389 = vpop.permute.xlu0 %388
      %v391 = vsub.f32 %v377, %v389
      %v392 = vmul.f32 %v391, 1.442695
      %v393 = vpow.pop %v392
      %v394 = vld [vmem:[#allocation3] sm:$0xff]
      %v395 = vmul.f32 %v385, %v394
      %v396 = vsel %vm330, %v393, 0.0
      %397 = vadd.xlane.f32.xlu0 %v396
      %v398 = vpop.xlane.xlu0 %397
      %v399 = vadd.f32 %v395, %v398
      %vm400 = vcmask 7168
      %401 = vst.msk [vmem:[#allocation3] sm:$0xff] %vm400, %v399
      %v402 = vld [vmem:[#allocation4] sm:$0xff]
      %404 = vset.pattern.permute.xlu0 0
      %405 = vperm.xlu0 %404, %v385
      %v406 = vpop.permute.xlu0 %405
      %v408 = vmul.f32 %v406, %v402
      %v409 = vpack.c.bf16 %v393, %v393
      %v411 = vsel %vm330, %v409, 0
      %vm413 = vcmask 1043456
      %v415 = vsel %vm413, %v329, 0
      %417 = vmatprep.subr.bf16.mxu0 0
      %418 = vmatpush1.bf16.msra.mxu0 0
      %419 = vmatprep.subr.bf16.mxu0 0
      %420 = vmatpush1.bf16.msra.mxu0 0
      %421 = vmatprep.subr.bf16.mxu0 0
      %422 = vmatpush1.bf16.msra.mxu0 0
      %423 = vmatprep.subr.bf16.mxu0 0
      %424 = vmatpush1.bf16.msra.mxu0 0
      %425 = vmatprep.subr.bf16.mxu0 0
      %426 = vmatpush1.bf16.msra.mxu0 0
      %427 = vmatprep.subr.bf16.mxu0 0
      %428 = vmatpush1.bf16.msra.mxu0 0
      %429 = vmatprep.subr.bf16.mxu0 0
      %430 = vmatpush1.bf16.msra.mxu0 0
      %431 = vmatprep.subr.bf16.mxu0 0
      %432 = vmatpush1.bf16.msra.mxu0 %v415
      %433 = vmatprep.subr.bf16.mxu0 0
      %434 = vmatpush2.bf16.msra.mxu0 0
      %435 = vmatprep.subr.bf16.mxu0 0
      %436 = vmatpush2.bf16.msra.mxu0 0
      %437 = vmatprep.subr.bf16.mxu0 0
      %438 = vmatpush2.bf16.msra.mxu0 0
      %439 = vmatprep.subr.bf16.mxu0 0
      %440 = vmatpush2.bf16.msra.mxu0 0
      %441 = vmatprep.subr.bf16.mxu0 0
      %442 = vmatpush2.bf16.msra.mxu0 0
      %443 = vmatprep.subr.bf16.mxu0 0
      %444 = vmatpush2.bf16.msra.mxu0 0
      %445 = vmatprep.subr.bf16.mxu0 0
      %446 = vmatpush2.bf16.msra.mxu0 0
      %447 = vmatprep.subr.bf16.mxu0 0
      %448 = vmatpush2.bf16.msra.mxu0 0
      %449 = vmatprep.mubr.bf16.mxu0 0
      %450 = vmatmul.mubr.bf16.gmra.mxu0 %v411
      %v451 = vpop.f32.mrf.mxu0
      %v452 = vadd.f32 0.0, %v451
      %v453 = vpop.f32.mrf.mxu0
      %v454 = vpop.f32.mrf.mxu0
      %v455 = vpop.f32.mrf.mxu0
      %456 = vdwg.mxu0
      %v457 = vadd.f32 %v408, %v452
      %458 = vst.msk [vmem:[#allocation4] sm:$0xff] %vm330, %v457
      %459 = vst.msk [vmem:[#allocation2] sm:$0xff] %vm400, %v382
      %v461 = vunpack.c.l.b16 %v327
      %v462 = vpack.c.b16 %v461, %v461
      %463 = vrot.lane.b32.xlu0 %v462, 120
      %v464 = vpop.permute.xlu0 %463
      %v466 = vunpack.c.l.b16 %v328
      %v467 = vpack.c.b16 %v466, %v466
      %468 = vrot.lane.b32.xlu0 %v467, 120
      %v469 = vpop.permute.xlu0 %468
      %v471 = vsel %vm330, %v464, 0
      %v474 = vsel %vm330, %v469, 0
      %476 = vmatprep.subr.bf16.mxu0 0
      %477 = vmatpush1.bf16.xpose.msra.mxu0 0
      %478 = vmatprep.subr.bf16.mxu0 0
      %479 = vmatpush1.bf16.xpose.msra.mxu0 0
      %480 = vmatprep.subr.bf16.mxu0 0
      %481 = vmatpush1.bf16.xpose.msra.mxu0 0
      %482 = vmatprep.subr.bf16.mxu0 0
      %483 = vmatpush1.bf16.xpose.msra.mxu0 0
      %484 = vmatprep.subr.bf16.mxu0 0
      %485 = vmatpush1.bf16.xpose.msra.mxu0 0
      %486 = vmatprep.subr.bf16.mxu0 0
      %487 = vmatpush1.bf16.xpose.msra.mxu0 0
      %488 = vmatprep.subr.bf16.mxu0 0
      %489 = vmatpush1.bf16.xpose.msra.mxu0 0
      %490 = vmatprep.subr.bf16.mxu0 0
      %491 = vmatpush1.bf16.xpose.msra.mxu0 %v474
      %492 = vmatprep.subr.bf16.mxu0 0
      %493 = vmatpush2.bf16.xpose.msra.mxu0 0
      %494 = vmatprep.subr.bf16.mxu0 0
      %495 = vmatpush2.bf16.xpose.msra.mxu0 0
      %496 = vmatprep.subr.bf16.mxu0 0
      %497 = vmatpush2.bf16.xpose.msra.mxu0 0
      %498 = vmatprep.subr.bf16.mxu0 0
      %499 = vmatpush2.bf16.xpose.msra.mxu0 0
      %500 = vmatprep.subr.bf16.mxu0 0
      %501 = vmatpush2.bf16.xpose.msra.mxu0 0
      %502 = vmatprep.subr.bf16.mxu0 0
      %503 = vmatpush2.bf16.xpose.msra.mxu0 0
      %504 = vmatprep.subr.bf16.mxu0 0
      %505 = vmatpush2.bf16.xpose.msra.mxu0 0
      %506 = vmatprep.subr.bf16.mxu0 0
      %507 = vmatpush2.bf16.xpose.msra.mxu0 0
      %508 = vmatprep.mubr.bf16.mxu0 0
      %509 = vmatmul.mubr.bf16.gmra.mxu0 %v471
      %v510 = vpop.f32.mrf.mxu0
      %v511 = vadd.f32 0.0, %v510
      %v512 = vpop.f32.mrf.mxu0
      %v513 = vpop.f32.mrf.mxu0
      %v514 = vpop.f32.mrf.mxu0
      %515 = vdwg.mxu0
      %v516 = vmul.f32 %v511, 0.35355338
      %s517 = scalar_lea.vmem [#allocation2], 8
      %v518 = vld [vmem:[%s517] sm:$0xff]
      %v519 = vsel %vm330, %v516, -inf
      %520 = vmax.xlane.f32.xlu0 %v519
      %v521 = vpop.xlane.xlu0 %520
      %v522 = vmax.f32 %v518, %v521
      %v523 = vsub.f32 %v518, %v522
      %v524 = vmul.f32 %v523, 1.442695
      %v525 = vpow.pop %v524
      %527 = vset.pattern.permute.xlu0 0
      %528 = vperm.xlu0 %527, %v522
      %v529 = vpop.permute.xlu0 %528
      %v531 = vsub.f32 %v516, %v529
      %v532 = vmul.f32 %v531, 1.442695
      %v533 = vpow.pop %v532
      %s534 = scalar_lea.vmem [#allocation3], 8
      %v535 = vld [vmem:[%s534] sm:$0xff]
      %v536 = vmul.f32 %v525, %v535
      %v537 = vsel %vm330, %v533, 0.0
      %538 = vadd.xlane.f32.xlu0 %v537
      %v539 = vpop.xlane.xlu0 %538
      %v540 = vadd.f32 %v536, %v539
      %541 = vst.msk [vmem:[%s534] sm:$0xff] %vm400, %v540
      %s542 = scalar_lea.vmem [#allocation4], 8
      %v543 = vld [vmem:[%s542] sm:$0xff]
      %545 = vset.pattern.permute.xlu0 0
      %546 = vperm.xlu0 %545, %v525
      %v547 = vpop.permute.xlu0 %546
      %v549 = vmul.f32 %v547, %v543
      %v550 = vpack.c.bf16 %v533, %v533
      %v552 = vunpack.c.l.b16 %v329
      %v553 = vpack.c.b16 %v552, %v552
      %554 = vrot.lane.b32.xlu0 %v553, 120
      %v555 = vpop.permute.xlu0 %554
      %v557 = vsel %vm330, %v550, 0
      %v560 = vsel %vm413, %v555, 0
      %562 = vmatprep.subr.bf16.mxu0 0
      %563 = vmatpush1.bf16.msra.mxu0 0
      %564 = vmatprep.subr.bf16.mxu0 0
      %565 = vmatpush1.bf16.msra.mxu0 0
      %566 = vmatprep.subr.bf16.mxu0 0
      %567 = vmatpush1.bf16.msra.mxu0 0
      %568 = vmatprep.subr.bf16.mxu0 0
      %569 = vmatpush1.bf16.msra.mxu0 0
      %570 = vmatprep.subr.bf16.mxu0 0
      %571 = vmatpush1.bf16.msra.mxu0 0
      %572 = vmatprep.subr.bf16.mxu0 0
      %573 = vmatpush1.bf16.msra.mxu0 0
      %574 = vmatprep.subr.bf16.mxu0 0
      %575 = vmatpush1.bf16.msra.mxu0 0
      %576 = vmatprep.subr.bf16.mxu0 0
      %577 = vmatpush1.bf16.msra.mxu0 %v560
      %578 = vmatprep.subr.bf16.mxu0 0
      %579 = vmatpush2.bf16.msra.mxu0 0
      %580 = vmatprep.subr.bf16.mxu0 0
      %581 = vmatpush2.bf16.msra.mxu0 0
      %582 = vmatprep.subr.bf16.mxu0 0
      %583 = vmatpush2.bf16.msra.mxu0 0
      %584 = vmatprep.subr.bf16.mxu0 0
      %585 = vmatpush2.bf16.msra.mxu0 0
      %586 = vmatprep.subr.bf16.mxu0 0
      %587 = vmatpush2.bf16.msra.mxu0 0
      %588 = vmatprep.subr.bf16.mxu0 0
      %589 = vmatpush2.bf16.msra.mxu0 0
      %590 = vmatprep.subr.bf16.mxu0 0
      %591 = vmatpush2.bf16.msra.mxu0 0
      %592 = vmatprep.subr.bf16.mxu0 0
      %593 = vmatpush2.bf16.msra.mxu0 0
      %594 = vmatprep.mubr.bf16.mxu0 0
      %595 = vmatmul.mubr.bf16.gmra.mxu0 %v557
      %v596 = vpop.f32.mrf.mxu0
      %v597 = vadd.f32 0.0, %v596
      %v598 = vpop.f32.mrf.mxu0
      %v599 = vpop.f32.mrf.mxu0
      %v600 = vpop.f32.mrf.mxu0
      %601 = vdwg.mxu0
      %v602 = vadd.f32 %v549, %v597
      %603 = vst.msk [vmem:[%s542] sm:$0xff] %vm330, %v602
      %604 = vst.msk [vmem:[%s517] sm:$0xff] %vm400, %v522
      %605 = vrot.lane.b32.xlu0 %v462, 112
      %v606 = vpop.permute.xlu0 %605
      %607 = vrot.lane.b32.xlu0 %v467, 112
      %v608 = vpop.permute.xlu0 %607
      %v610 = vsel %vm330, %v606, 0
      %v613 = vsel %vm330, %v608, 0
      %615 = vmatprep.subr.bf16.mxu0 0
      %616 = vmatpush1.bf16.xpose.msra.mxu0 0
      %617 = vmatprep.subr.bf16.mxu0 0
      %618 = vmatpush1.bf16.xpose.msra.mxu0 0
      %619 = vmatprep.subr.bf16.mxu0 0
      %620 = vmatpush1.bf16.xpose.msra.mxu0 0
      %621 = vmatprep.subr.bf16.mxu0 0
      %622 = vmatpush1.bf16.xpose.msra.mxu0 0
      %623 = vmatprep.subr.bf16.mxu0 0
      %624 = vmatpush1.bf16.xpose.msra.mxu0 0
      %625 = vmatprep.subr.bf16.mxu0 0
      %626 = vmatpush1.bf16.xpose.msra.mxu0 0
      %627 = vmatprep.subr.bf16.mxu0 0
      %628 = vmatpush1.bf16.xpose.msra.mxu0 0
      %629 = vmatprep.subr.bf16.mxu0 0
      %630 = vmatpush1.bf16.xpose.msra.mxu0 %v613
      %631 = vmatprep.subr.bf16.mxu0 0
      %632 = vmatpush2.bf16.xpose.msra.mxu0 0
      %633 = vmatprep.subr.bf16.mxu0 0
      %634 = vmatpush2.bf16.xpose.msra.mxu0 0
      %635 = vmatprep.subr.bf16.mxu0 0
      %636 = vmatpush2.bf16.xpose.msra.mxu0 0
      %637 = vmatprep.subr.bf16.mxu0 0
      %638 = vmatpush2.bf16.xpose.msra.mxu0 0
      %639 = vmatprep.subr.bf16.mxu0 0
      %640 = vmatpush2.bf16.xpose.msra.mxu0 0
      %641 = vmatprep.subr.bf16.mxu0 0
      %642 = vmatpush2.bf16.xpose.msra.mxu0 0
      %643 = vmatprep.subr.bf16.mxu0 0
      %644 = vmatpush2.bf16.xpose.msra.mxu0 0
      %645 = vmatprep.subr.bf16.mxu0 0
      %646 = vmatpush2.bf16.xpose.msra.mxu0 0
      %647 = vmatprep.mubr.bf16.mxu0 0
      %648 = vmatmul.mubr.bf16.gmra.mxu0 %v610
      %v649 = vpop.f32.mrf.mxu0
      %v650 = vadd.f32 0.0, %v649
      %v651 = vpop.f32.mrf.mxu0
      %v652 = vpop.f32.mrf.mxu0
      %v653 = vpop.f32.mrf.mxu0
      %654 = vdwg.mxu0
      %v655 = vmul.f32 %v650, 0.35355338
      %s656 = scalar_lea.vmem [#allocation2], 16
      %v657 = vld [vmem:[%s656] sm:$0xff]
      %v658 = vsel %vm330, %v655, -inf
      %659 = vmax.xlane.f32.xlu0 %v658
      %v660 = vpop.xlane.xlu0 %659
      %v661 = vmax.f32 %v657, %v660
      %v662 = vsub.f32 %v657, %v661
      %v663 = vmul.f32 %v662, 1.442695
      %v664 = vpow.pop %v663
      %666 = vset.pattern.permute.xlu0 0
      %667 = vperm.xlu0 %666, %v661
      %v668 = vpop.permute.xlu0 %667
      %v670 = vsub.f32 %v655, %v668
      %v671 = vmul.f32 %v670, 1.442695
      %v672 = vpow.pop %v671
      %s673 = scalar_lea.vmem [#allocation3], 16
      %v674 = vld [vmem:[%s673] sm:$0xff]
      %v675 = vmul.f32 %v664, %v674
      %v676 = vsel %vm330, %v672, 0.0
      %677 = vadd.xlane.f32.xlu0 %v676
      %v678 = vpop.xlane.xlu0 %677
      %v679 = vadd.f32 %v675, %v678
      %680 = vst.msk [vmem:[%s673] sm:$0xff] %vm400, %v679
      %s681 = scalar_lea.vmem [#allocation4], 16
      %v682 = vld [vmem:[%s681] sm:$0xff]
      %684 = vset.pattern.permute.xlu0 0
      %685 = vperm.xlu0 %684, %v664
      %v686 = vpop.permute.xlu0 %685
      %v688 = vmul.f32 %v686, %v682
      %v689 = vpack.c.bf16 %v672, %v672
      %690 = vrot.lane.b32.xlu0 %v553, 112
      %v691 = vpop.permute.xlu0 %690
      %v693 = vsel %vm330, %v689, 0
      %v696 = vsel %vm413, %v691, 0
      %698 = vmatprep.subr.bf16.mxu0 0
      %699 = vmatpush1.bf16.msra.mxu0 0
      %700 = vmatprep.subr.bf16.mxu0 0
      %701 = vmatpush1.bf16.msra.mxu0 0
      %702 = vmatprep.subr.bf16.mxu0 0
      %703 = vmatpush1.bf16.msra.mxu0 0
      %704 = vmatprep.subr.bf16.mxu0 0
      %705 = vmatpush1.bf16.msra.mxu0 0
      %706 = vmatprep.subr.bf16.mxu0 0
      %707 = vmatpush1.bf16.msra.mxu0 0
      %708 = vmatprep.subr.bf16.mxu0 0
      %709 = vmatpush1.bf16.msra.mxu0 0
      %710 = vmatprep.subr.bf16.mxu0 0
      %711 = vmatpush1.bf16.msra.mxu0 0
      %712 = vmatprep.subr.bf16.mxu0 0
      %713 = vmatpush1.bf16.msra.mxu0 %v696
      %714 = vmatprep.subr.bf16.mxu0 0
      %715 = vmatpush2.bf16.msra.mxu0 0
      %716 = vmatprep.subr.bf16.mxu0 0
      %717 = vmatpush2.bf16.msra.mxu0 0
      %718 = vmatprep.subr.bf16.mxu0 0
      %719 = vmatpush2.bf16.msra.mxu0 0
      %720 = vmatprep.subr.bf16.mxu0 0
      %721 = vmatpush2.bf16.msra.mxu0 0
      %722 = vmatprep.subr.bf16.mxu0 0
      %723 = vmatpush2.bf16.msra.mxu0 0
      %724 = vmatprep.subr.bf16.mxu0 0
      %725 = vmatpush2.bf16.msra.mxu0 0
      %726 = vmatprep.subr.bf16.mxu0 0
      %727 = vmatpush2.bf16.msra.mxu0 0
      %728 = vmatprep.subr.bf16.mxu0 0
      %729 = vmatpush2.bf16.msra.mxu0 0
      %730 = vmatprep.mubr.bf16.mxu0 0
      %731 = vmatmul.mubr.bf16.gmra.mxu0 %v693
      %v732 = vpop.f32.mrf.mxu0
      %v733 = vadd.f32 0.0, %v732
      %v734 = vpop.f32.mrf.mxu0
      %v735 = vpop.f32.mrf.mxu0
      %v736 = vpop.f32.mrf.mxu0
      %737 = vdwg.mxu0
      %v738 = vadd.f32 %v688, %v733
      %739 = vst.msk [vmem:[%s681] sm:$0xff] %vm330, %v738
      %740 = vst.msk [vmem:[%s656] sm:$0xff] %vm400, %v661
      %741 = vrot.lane.b32.xlu0 %v462, 104
      %v742 = vpop.permute.xlu0 %741
      %743 = vrot.lane.b32.xlu0 %v467, 104
      %v744 = vpop.permute.xlu0 %743
      %v746 = vsel %vm330, %v742, 0
      %v749 = vsel %vm330, %v744, 0
      %751 = vmatprep.subr.bf16.mxu0 0
      %752 = vmatpush1.bf16.xpose.msra.mxu0 0
      %753 = vmatprep.subr.bf16.mxu0 0
      %754 = vmatpush1.bf16.xpose.msra.mxu0 0
      %755 = vmatprep.subr.bf16.mxu0 0
      %756 = vmatpush1.bf16.xpose.msra.mxu0 0
      %757 = vmatprep.subr.bf16.mxu0 0
      %758 = vmatpush1.bf16.xpose.msra.mxu0 0
      %759 = vmatprep.subr.bf16.mxu0 0
      %760 = vmatpush1.bf16.xpose.msra.mxu0 0
      %761 = vmatprep.subr.bf16.mxu0 0
      %762 = vmatpush1.bf16.xpose.msra.mxu0 0
      %763 = vmatprep.subr.bf16.mxu0 0
      %764 = vmatpush1.bf16.xpose.msra.mxu0 0
      %765 = vmatprep.subr.bf16.mxu0 0
      %766 = vmatpush1.bf16.xpose.msra.mxu0 %v749
      %767 = vmatprep.subr.bf16.mxu0 0
      %768 = vmatpush2.bf16.xpose.msra.mxu0 0
      %769 = vmatprep.subr.bf16.mxu0 0
      %770 = vmatpush2.bf16.xpose.msra.mxu0 0
      %771 = vmatprep.subr.bf16.mxu0 0
      %772 = vmatpush2.bf16.xpose.msra.mxu0 0
      %773 = vmatprep.subr.bf16.mxu0 0
      %774 = vmatpush2.bf16.xpose.msra.mxu0 0
      %775 = vmatprep.subr.bf16.mxu0 0
      %776 = vmatpush2.bf16.xpose.msra.mxu0 0
      %777 = vmatprep.subr.bf16.mxu0 0
      %778 = vmatpush2.bf16.xpose.msra.mxu0 0
      %779 = vmatprep.subr.bf16.mxu0 0
      %780 = vmatpush2.bf16.xpose.msra.mxu0 0
      %781 = vmatprep.subr.bf16.mxu0 0
      %782 = vmatpush2.bf16.xpose.msra.mxu0 0
      %783 = vmatprep.mubr.bf16.mxu0 0
      %784 = vmatmul.mubr.bf16.gmra.mxu0 %v746
      %v785 = vpop.f32.mrf.mxu0
      %v786 = vadd.f32 0.0, %v785
      %v787 = vpop.f32.mrf.mxu0
      %v788 = vpop.f32.mrf.mxu0
      %v789 = vpop.f32.mrf.mxu0
      %790 = vdwg.mxu0
      %v791 = vmul.f32 %v786, 0.35355338
      %s792 = scalar_lea.vmem [#allocation2], 24
      %v793 = vld [vmem:[%s792] sm:$0xff]
      %v794 = vsel %vm330, %v791, -inf
      %795 = vmax.xlane.f32.xlu0 %v794
      %v796 = vpop.xlane.xlu0 %795
      %v797 = vmax.f32 %v793, %v796
      %v798 = vsub.f32 %v793, %v797
      %v799 = vmul.f32 %v798, 1.442695
      %v800 = vpow.pop %v799
      %802 = vset.pattern.permute.xlu0 0
      %803 = vperm.xlu0 %802, %v797
      %v804 = vpop.permute.xlu0 %803
      %v806 = vsub.f32 %v791, %v804
      %v807 = vmul.f32 %v806, 1.442695
      %v808 = vpow.pop %v807
      %s809 = scalar_lea.vmem [#allocation3], 24
      %v810 = vld [vmem:[%s809] sm:$0xff]
      %v811 = vmul.f32 %v800, %v810
      %v812 = vsel %vm330, %v808, 0.0
      %813 = vadd.xlane.f32.xlu0 %v812
      %v814 = vpop.xlane.xlu0 %813
      %v815 = vadd.f32 %v811, %v814
      %816 = vst.msk [vmem:[%s809] sm:$0xff] %vm400, %v815
      %s817 = scalar_lea.vmem [#allocation4], 24
      %v818 = vld [vmem:[%s817] sm:$0xff]
      %820 = vset.pattern.permute.xlu0 0
      %821 = vperm.xlu0 %820, %v800
      %v822 = vpop.permute.xlu0 %821
      %v824 = vmul.f32 %v822, %v818
      %v825 = vpack.c.bf16 %v808, %v808
      %826 = vrot.lane.b32.xlu0 %v553, 104
      %v827 = vpop.permute.xlu0 %826
      %v829 = vsel %vm330, %v825, 0
      %v832 = vsel %vm413, %v827, 0
      %834 = vmatprep.subr.bf16.mxu0 0
      %835 = vmatpush1.bf16.msra.mxu0 0
      %836 = vmatprep.subr.bf16.mxu0 0
      %837 = vmatpush1.bf16.msra.mxu0 0
      %838 = vmatprep.subr.bf16.mxu0 0
      %839 = vmatpush1.bf16.msra.mxu0 0
      %840 = vmatprep.subr.bf16.mxu0 0
      %841 = vmatpush1.bf16.msra.mxu0 0
      %842 = vmatprep.subr.bf16.mxu0 0
      %843 = vmatpush1.bf16.msra.mxu0 0
      %844 = vmatprep.subr.bf16.mxu0 0
      %845 = vmatpush1.bf16.msra.mxu0 0
      %846 = vmatprep.subr.bf16.mxu0 0
      %847 = vmatpush1.bf16.msra.mxu0 0
      %848 = vmatprep.subr.bf16.mxu0 0
      %849 = vmatpush1.bf16.msra.mxu0 %v832
      %850 = vmatprep.subr.bf16.mxu0 0
      %851 = vmatpush2.bf16.msra.mxu0 0
      %852 = vmatprep.subr.bf16.mxu0 0
      %853 = vmatpush2.bf16.msra.mxu0 0
      %854 = vmatprep.subr.bf16.mxu0 0
      %855 = vmatpush2.bf16.msra.mxu0 0
      %856 = vmatprep.subr.bf16.mxu0 0
      %857 = vmatpush2.bf16.msra.mxu0 0
      %858 = vmatprep.subr.bf16.mxu0 0
      %859 = vmatpush2.bf16.msra.mxu0 0
      %860 = vmatprep.subr.bf16.mxu0 0
      %861 = vmatpush2.bf16.msra.mxu0 0
      %862 = vmatprep.subr.bf16.mxu0 0
      %863 = vmatpush2.bf16.msra.mxu0 0
      %864 = vmatprep.subr.bf16.mxu0 0
      %865 = vmatpush2.bf16.msra.mxu0 0
      %866 = vmatprep.mubr.bf16.mxu0 0
      %867 = vmatmul.mubr.bf16.gmra.mxu0 %v829
      %v868 = vpop.f32.mrf.mxu0
      %v869 = vadd.f32 0.0, %v868
      %v870 = vpop.f32.mrf.mxu0
      %v871 = vpop.f32.mrf.mxu0
      %v872 = vpop.f32.mrf.mxu0
      %873 = vdwg.mxu0
      %v874 = vadd.f32 %v824, %v869
      %875 = vst.msk [vmem:[%s817] sm:$0xff] %vm330, %v874
      %876 = vst.msk [vmem:[%s792] sm:$0xff] %vm400, %v797
      // Predicated region
      $region37: #{transformer_block.4} parent=31 // pred_check
        %p877 = pneg %p309
      $region38: #{transformer_block.4} parent=31 // pred_check_branch
        %879 = sbr.rel (%p877) target = $region40
      $region39: #{transformer_block.4} parent=31 // pred_region
        %v880 = vld [vmem:[#allocation3] sm:$0xff]
        %v881 = vrcp.pop %v880
        %v882 = vld [vmem:[#allocation4] sm:$0xff]
        %884 = vset.pattern.permute.xlu0 0
        %885 = vperm.xlu0 %884, %v881
        %v886 = vpop.permute.xlu0 %885
        %v888 = vmul.f32 %v882, %v886
        %v889 = vpack.c.bf16 %v888, %v888
        %v890 = vld [vmem:[%s534] sm:$0xff]
        %v891 = vrcp.pop %v890
        %v892 = vld [vmem:[%s542] sm:$0xff]
        %894 = vset.pattern.permute.xlu0 0
        %895 = vperm.xlu0 %894, %v891
        %v896 = vpop.permute.xlu0 %895
        %v898 = vmul.f32 %v892, %v896
        %v899 = vpack.c.bf16 %v898, %v898
        %v900 = vld [vmem:[%s673] sm:$0xff]
        %v901 = vrcp.pop %v900
        %v902 = vld [vmem:[%s681] sm:$0xff]
        %904 = vset.pattern.permute.xlu0 0
        %905 = vperm.xlu0 %904, %v901
        %v906 = vpop.permute.xlu0 %905
        %v908 = vmul.f32 %v902, %v906
        %v909 = vpack.c.bf16 %v908, %v908
        %v910 = vld [vmem:[%s809] sm:$0xff]
        %v911 = vrcp.pop %v910
        %v912 = vld [vmem:[%s817] sm:$0xff]
        %914 = vset.pattern.permute.xlu0 0
        %915 = vperm.xlu0 %914, %v911
        %v916 = vpop.permute.xlu0 %915
        %v918 = vmul.f32 %v912, %v916
        %v919 = vpack.c.bf16 %v918, %v918
        %921 = vrot.lane.b32.xlu0 %v899, 8
        %v922 = vpop.permute.xlu0 %921
        %924 = vrot.lane.b32.xlu0 %v909, 16
        %v925 = vpop.permute.xlu0 %924
        %927 = vrot.lane.b32.xlu0 %v919, 24
        %v928 = vpop.permute.xlu0 %927
        %v931 = vsel %vm330, %v889, %v922
        %vm932 = vcmask 130048
        %v934 = vsel %vm932, %v931, %v925
        %vm935 = vcmask 195584
        %v937 = vsel %vm935, %v934, %v928
        %vm939 = vcmask 257024
        %940 = vst.msk [vmem:[%s307] sm:$0xf] %vm939, %v937
      $region40: #{transformer_block.4} parent=31 // pred_fallthru
        _
      %p941 = scmp.lt.s32.totalorder %s20, 1
      %s942 = scalar_select %p941, %s20, 1
      %p943 = scmp.lt.s32.totalorder %s22, 0
      %s944 = scalar_select %p943, %s22, 0
      %p945 = scmp.lt.s32.totalorder %s21, 0
      %s946 = scalar_select %p945, %s21, 0
      %s947 = sadd.s32 %s946, %s944
      %s948 = sadd.s32 %s947, %s942
      %s949 = smul.addr %s948, 4
      %s950 = scalar_lea.vmem %s3, %s949
      // Predicated region
      $region41: #{transformer_block.4} parent=31 // pred_check
        %p951 = pneg %p152
      $region42: #{transformer_block.4} parent=31 // pred_check_branch
        %953 = sbr.rel (%p951) target = $region44
      $region43: #{transformer_block.4} parent=31 // pred_region
        _
      $region44: #{transformer_block.4} parent=31 // pred_fallthru
        _
    $region32: #{transformer_block.4} parent=5 // pred_fallthru
      _
    %p954 = scmp.le.s32.totalorder 2, %s9
    // Predicated region
    $region45: #{transformer_block.4} parent=5 // pred_check
      %p955 = pneg %p954
    $region46: #{transformer_block.4} parent=5 // pred_check_branch
      %957 = sbr.rel (%p955) target = $region48
    $region47: #{transformer_block.4} parent=5 // pred_region
      %s958 = ssub.s32 %s9, 2
      // Predicated region
      $region49: #{transformer_block.4} parent=47 // pred_check
        %p959 = pneg %p158
      $region50: #{transformer_block.4} parent=47 // pred_check_branch
        %961 = sbr.rel (%p959) target = $region52
      $region51: #{transformer_block.4} parent=47 // pred_region
        %p962 = scmp.lt.s32.totalorder %s24, 1
        %s963 = scalar_select %p962, %s24, 1
        %p964 = scmp.lt.s32.totalorder %s26, 0
        %s965 = scalar_select %p964, %s26, 0
        %p966 = scmp.lt.s32.totalorder %s25, 0
        %s967 = scalar_select %p966, %s25, 0
        %s968 = sadd.s32 %s967, %s965
        %s969 = sadd.s32 %s968, %s963
        %s970 = smul.addr %s969, 4
        %s971 = scalar_lea.vmem %s3, %s970
      $region52: #{transformer_block.4} parent=47 // pred_fallthru
        _
    $region48: #{transformer_block.4} parent=5 // pred_fallthru
      _
  $region6: #{transformer_block.4} parent=0 // loop_footer
    %s13 = sadd.s32 1, %s9
  $region7: #{transformer_block.4} parent=0 // loop_footer_branch
    %8 = sbr.rel target = $region3
  $region8: #{transformer_block.4} parent=0 // loop_exit
    _

// kernel: transformer_block.5
$region0: #{transformer_block.5}
  #allocation0 [shape = 'u32[]', space=smem, size = 0x4, offset = 0x4, fixed_abs, tag = 'smem constant byte address 0x4 - core index']
  #allocation1 [shape = 'u32[144,128]{1,0:T(1,128)}', space=vmem, size = 0x12000, scoped, tag = 'internal scratch']
  %s0 = inlined_call_operand.vmem [shape: f32[2,8,32], index: 0, kind: input, shape index: {}]
  %s1 = inlined_call_operand.vmem [shape: bf16[2,8,32], index: 1, kind: input, shape index: {}]
  %s2 = inlined_call_operand.vmem [shape: bf16[32,32], index: 2, kind: input, shape index: {}]
  %s3 = inlined_call_operand.vmem [shape: f32[1,32], index: 3, kind: input, shape index: {}]
  %s4 = inlined_call_operand.vmem [shape: f32[1,32], index: 4, kind: input, shape index: {}]
  %s5 = inlined_call_operand.vmem [shape: f32[1,32], index: 5, kind: input, shape index: {}]
  %s6 = inlined_call_operand.vmem [shape: bf16[32,64], index: 6, kind: input, shape index: {}]
  %s7 = inlined_call_operand.vmem [shape: f32[1,64], index: 7, kind: input, shape index: {}]
  %s8 = inlined_call_operand.vmem [shape: bf16[64,32], index: 8, kind: input, shape index: {}]
  %s9 = inlined_call_operand.vmem [shape: f32[1,32], index: 9, kind: input, shape index: {}]
  %s10 = inlined_call_operand.hbm [shape: f32[2,8,32], index: 10, kind: output, shape index: {}]
  %s11 = sld [smem:[#allocation0]]
  $region73: #{transformer_block.5} parent=0
    _
  %s13 = ssub.s32 1, %s11
  %s14 = scalar_select 0, %s13, %s11
  $region1: #{transformer_block.5} parent=0
    #allocation2 [shape = 'u8[8192]{0}', space=vmem, size = 0x2000, scoped, tag = 'output window, operand 0']
    #allocation3 [shape = 's32[2]{0}', space=sflag, size = 0x8, scoped, tag = 'scoped memory for transformer_block.5']
    %15 = vsyncpa [#allocation3], 0
    %s16 = scalar_lea.sflag [#allocation3], 1
    %17 = vsyncpa %s16, 0
    loop: start=0, step=1, limit=4
    $region2: #{transformer_block.5} parent=1 // loop_pre_header
      _
    $region3: #{transformer_block.5} parent=1 // loop_header
      %s19 = sphi 0, %s23
      %p20 = scmp.ge.s32.totalorder %s19, 4
      %s26 = sphi 0, %s38
      %s27 = sphi 0, %s34
      %s28 = sphi 0, %s26
      %s29 = sphi 0, %s27
      %s30 = sphi 0, %s28
      %s31 = sphi 0, %s29
      %s43 = sphi 0, %s45
      %s46 = sphi 0, %s43
      %s47 = sphi 0, %s46
      %s63 = sphi 0, %s47
      %s71 = sphi 0, %s73
      %s74 = sphi 0, %s71
      %s75 = sphi 0, %s74
      %s91 = sphi 0, %s75
      %s95 = sphi 0, %s95
      %s97 = sphi 0, %s95
      %s98 = sphi 0, %s97
      %s112 = sphi 0, %s98
      %s116 = sphi 0, %s116
      %s118 = sphi 0, %s116
      %s119 = sphi 0, %s118
      %s133 = sphi 0, %s119
      %s137 = sphi 0, %s137
      %s139 = sphi 0, %s137
      %s140 = sphi 0, %s139
      %s154 = sphi 0, %s140
      %s158 = sphi 0, %s158
      %s160 = sphi 0, %s158
      %s161 = sphi 0, %s160
      %s175 = sphi 0, %s161
      %s179 = sphi 0, %s179
      %s181 = sphi 0, %s179
      %s182 = sphi 0, %s181
      %s196 = sphi 0, %s182
      %s200 = sphi 0, %s200
      %s202 = sphi 0, %s200
      %s203 = sphi 0, %s202
      %s217 = sphi 0, %s203
      %s221 = sphi 0, %s221
      %s223 = sphi 0, %s221
      %s224 = sphi 0, %s223
      %s238 = sphi 0, %s224
      %s242 = sphi 0, %s242
      %s244 = sphi 0, %s242
      %s245 = sphi 0, %s244
      %s259 = sphi 0, %s245
      %s267 = sphi 0, %s269
      %s270 = sphi 0, %s267
      %s271 = sphi 0, %s270
      %s287 = sphi 0, %s271
    $region4: #{transformer_block.5} parent=1 // loop_header_branch
      %22 = sbr.rel (%p20) target = $region8
    $region5: #{transformer_block.5} parent=1 // loop_body
      %s24 = ssub.s32 %s19, 1
      %s25 = ssub.s32 %s19, 2
      %s32 = sadd.s32 1, %s27
      %p33 = scmp.ge.s32.totalorder %s32, 1
      %s34 = scalar_select %p33, 0, %s32
      %s35 = sadd.s32 1, %s26
      %s36 = scalar_select %p33, %s35, %s26
      %p37 = scmp.ge.s32.totalorder %s36, 2
      %s38 = scalar_select %p37, 0, %s36
      %s39 = ssub.s32 %s26, %s38
      %s40 = ssub.s32 %s27, %s34
      %s41 = sor.u32 %s39, %s40
      %p42 = scmp.eq.s32.totalorder %s41, 0
      %s44 = sadd.s32 %s43, 1
      %s45 = scalar_select %p42, %s43, %s44
      %p48 = pneg %p42
      %p49 = scmp.eq.s32.totalorder %s19, 1
      %p50 = por %p48, %p49
      %p51 = scmp.ne.s32.totalorder %s43, %s46
      %p52 = scmp.eq.s32.totalorder %s19, 0
      %p53 = por %p51, %p52
      %p54 = scmp.ne.s32.totalorder %s43, %s46
      %p55 = scmp.eq.s32.totalorder %s24, 1
      %p56 = por %p54, %p55
      %p57 = scmp.ne.s32.totalorder %s46, %s47
      %p58 = scmp.eq.s32.totalorder %s24, 0
      %p59 = por %p57, %p58
      %p60 = scmp.ne.s32.totalorder %s46, %s47
      %p61 = scmp.eq.s32.totalorder %s25, 1
      %p62 = por %p60, %p61
      %p64 = scmp.ne.s32.totalorder %s47, %s63
      %p65 = scmp.eq.s32.totalorder %s25, 0
      %p66 = por %p64, %p65
      %s67 = ssub.s32 %s26, %s38
      %s68 = ssub.s32 %s27, %s34
      %s69 = sor.u32 %s67, %s68
      %p70 = scmp.eq.s32.totalorder %s69, 0
      %s72 = sadd.s32 %s71, 1
      %s73 = scalar_select %p70, %s71, %s72
      %p76 = pneg %p70
      %p77 = scmp.eq.s32.totalorder %s19, 1
      %p78 = por %p76, %p77
      %p79 = scmp.ne.s32.totalorder %s71, %s74
      %p80 = scmp.eq.s32.totalorder %s19, 0
      %p81 = por %p79, %p80
      %p82 = scmp.ne.s32.totalorder %s71, %s74
      %p83 = scmp.eq.s32.totalorder %s24, 1
      %p84 = por %p82, %p83
      %p85 = scmp.ne.s32.totalorder %s74, %s75
      %p86 = scmp.eq.s32.totalorder %s24, 0
      %p87 = por %p85, %p86
      %p88 = scmp.ne.s32.totalorder %s74, %s75
      %p89 = scmp.eq.s32.totalorder %s25, 1
      %p90 = por %p88, %p89
      %p92 = scmp.ne.s32.totalorder %s75, %s91
      %p93 = scmp.eq.s32.totalorder %s25, 0
      %p94 = por %p92, %p93
      %s96 = sadd.s32 %s95, 1
      %p99 = scmp.eq.s32.totalorder %s19, 1
      %p100 = scmp.ne.s32.totalorder %s95, %s97
      %p101 = scmp.eq.s32.totalorder %s19, 0
      %p102 = por %p100, %p101
      %p103 = scmp.ne.s32.totalorder %s95, %s97
      %p104 = scmp.eq.s32.totalorder %s24, 1
      %p105 = por %p103, %p104
      %p106 = scmp.ne.s32.totalorder %s97, %s98
      %p107 = scmp.eq.s32.totalorder %s24, 0
      %p108 = por %p106, %p107
      %p109 = scmp.ne.s32.totalorder %s97, %s98
      %p110 = scmp.eq.s32.totalorder %s25, 1
      %p111 = por %p109, %p110
      %p113 = scmp.ne.s32.totalorder %s98, %s112
      %p114 = scmp.eq.s32.totalorder %s25, 0
      %p115 = por %p113, %p114
      %s117 = sadd.s32 %s116, 1
      %p120 = scmp.eq.s32.totalorder %s19, 1
      %p121 = scmp.ne.s32.totalorder %s116, %s118
      %p122 = scmp.eq.s32.totalorder %s19, 0
      %p123 = por %p121, %p122
      %p124 = scmp.ne.s32.totalorder %s116, %s118
      %p125 = scmp.eq.s32.totalorder %s24, 1
      %p126 = por %p124, %p125
      %p127 = scmp.ne.s32.totalorder %s118, %s119
      %p128 = scmp.eq.s32.totalorder %s24, 0
      %p129 = por %p127, %p128
      %p130 = scmp.ne.s32.totalorder %s118, %s119
      %p131 = scmp.eq.s32.totalorder %s25, 1
      %p132 = por %p130, %p131
      %p134 = scmp.ne.s32.totalorder %s119, %s133
      %p135 = scmp.eq.s32.totalorder %s25, 0
      %p136 = por %p134, %p135
      %s138 = sadd.s32 %s137, 1
      %p141 = scmp.eq.s32.totalorder %s19, 1
      %p142 = scmp.ne.s32.totalorder %s137, %s139
      %p143 = scmp.eq.s32.totalorder %s19, 0
      %p144 = por %p142, %p143
      %p145 = scmp.ne.s32.totalorder %s137, %s139
      %p146 = scmp.eq.s32.totalorder %s24, 1
      %p147 = por %p145, %p146
      %p148 = scmp.ne.s32.totalorder %s139, %s140
      %p149 = scmp.eq.s32.totalorder %s24, 0
      %p150 = por %p148, %p149
      %p151 = scmp.ne.s32.totalorder %s139, %s140
      %p152 = scmp.eq.s32.totalorder %s25, 1
      %p153 = por %p151, %p152
      %p155 = scmp.ne.s32.totalorder %s140, %s154
      %p156 = scmp.eq.s32.totalorder %s25, 0
      %p157 = por %p155, %p156
      %s159 = sadd.s32 %s158, 1
      %p162 = scmp.eq.s32.totalorder %s19, 1
      %p163 = scmp.ne.s32.totalorder %s158, %s160
      %p164 = scmp.eq.s32.totalorder %s19, 0
      %p165 = por %p163, %p164
      %p166 = scmp.ne.s32.totalorder %s158, %s160
      %p167 = scmp.eq.s32.totalorder %s24, 1
      %p168 = por %p166, %p167
      %p169 = scmp.ne.s32.totalorder %s160, %s161
      %p170 = scmp.eq.s32.totalorder %s24, 0
      %p171 = por %p169, %p170
      %p172 = scmp.ne.s32.totalorder %s160, %s161
      %p173 = scmp.eq.s32.totalorder %s25, 1
      %p174 = por %p172, %p173
      %p176 = scmp.ne.s32.totalorder %s161, %s175
      %p177 = scmp.eq.s32.totalorder %s25, 0
      %p178 = por %p176, %p177
      %s180 = sadd.s32 %s179, 1
      %p183 = scmp.eq.s32.totalorder %s19, 1
      %p184 = scmp.ne.s32.totalorder %s179, %s181
      %p185 = scmp.eq.s32.totalorder %s19, 0
      %p186 = por %p184, %p185
      %p187 = scmp.ne.s32.totalorder %s179, %s181
      %p188 = scmp.eq.s32.totalorder %s24, 1
      %p189 = por %p187, %p188
      %p190 = scmp.ne.s32.totalorder %s181, %s182
      %p191 = scmp.eq.s32.totalorder %s24, 0
      %p192 = por %p190, %p191
      %p193 = scmp.ne.s32.totalorder %s181, %s182
      %p194 = scmp.eq.s32.totalorder %s25, 1
      %p195 = por %p193, %p194
      %p197 = scmp.ne.s32.totalorder %s182, %s196
      %p198 = scmp.eq.s32.totalorder %s25, 0
      %p199 = por %p197, %p198
      %s201 = sadd.s32 %s200, 1
      %p204 = scmp.eq.s32.totalorder %s19, 1
      %p205 = scmp.ne.s32.totalorder %s200, %s202
      %p206 = scmp.eq.s32.totalorder %s19, 0
      %p207 = por %p205, %p206
      %p208 = scmp.ne.s32.totalorder %s200, %s202
      %p209 = scmp.eq.s32.totalorder %s24, 1
      %p210 = por %p208, %p209
      %p211 = scmp.ne.s32.totalorder %s202, %s203
      %p212 = scmp.eq.s32.totalorder %s24, 0
      %p213 = por %p211, %p212
      %p214 = scmp.ne.s32.totalorder %s202, %s203
      %p215 = scmp.eq.s32.totalorder %s25, 1
      %p216 = por %p214, %p215
      %p218 = scmp.ne.s32.totalorder %s203, %s217
      %p219 = scmp.eq.s32.totalorder %s25, 0
      %p220 = por %p218, %p219
      %s222 = sadd.s32 %s221, 1
      %p225 = scmp.eq.s32.totalorder %s19, 1
      %p226 = scmp.ne.s32.totalorder %s221, %s223
      %p227 = scmp.eq.s32.totalorder %s19, 0
      %p228 = por %p226, %p227
      %p229 = scmp.ne.s32.totalorder %s221, %s223
      %p230 = scmp.eq.s32.totalorder %s24, 1
      %p231 = por %p229, %p230
      %p232 = scmp.ne.s32.totalorder %s223, %s224
      %p233 = scmp.eq.s32.totalorder %s24, 0
      %p234 = por %p232, %p233
      %p235 = scmp.ne.s32.totalorder %s223, %s224
      %p236 = scmp.eq.s32.totalorder %s25, 1
      %p237 = por %p235, %p236
      %p239 = scmp.ne.s32.totalorder %s224, %s238
      %p240 = scmp.eq.s32.totalorder %s25, 0
      %p241 = por %p239, %p240
      %s243 = sadd.s32 %s242, 1
      %p246 = scmp.eq.s32.totalorder %s19, 1
      %p247 = scmp.ne.s32.totalorder %s242, %s244
      %p248 = scmp.eq.s32.totalorder %s19, 0
      %p249 = por %p247, %p248
      %p250 = scmp.ne.s32.totalorder %s242, %s244
      %p251 = scmp.eq.s32.totalorder %s24, 1
      %p252 = por %p250, %p251
      %p253 = scmp.ne.s32.totalorder %s244, %s245
      %p254 = scmp.eq.s32.totalorder %s24, 0
      %p255 = por %p253, %p254
      %p256 = scmp.ne.s32.totalorder %s244, %s245
      %p257 = scmp.eq.s32.totalorder %s25, 1
      %p258 = por %p256, %p257
      %p260 = scmp.ne.s32.totalorder %s245, %s259
      %p261 = scmp.eq.s32.totalorder %s25, 0
      %p262 = por %p260, %p261
      %s263 = ssub.s32 %s26, %s38
      %s264 = ssub.s32 %s27, %s34
      %s265 = sor.u32 %s263, %s264
      %p266 = scmp.eq.s32.totalorder %s265, 0
      %s268 = sadd.s32 %s267, 1
      %s269 = scalar_select %p266, %s267, %s268
      %p272 = pneg %p266
      %p273 = scmp.eq.s32.totalorder %s19, 1
      %p274 = por %p272, %p273
      %p275 = scmp.ne.s32.totalorder %s267, %s270
      %p276 = scmp.eq.s32.totalorder %s19, 0
      %p277 = por %p275, %p276
      %p278 = scmp.ne.s32.totalorder %s267, %s270
      %p279 = scmp.eq.s32.totalorder %s24, 1
      %p280 = por %p278, %p279
      %p281 = scmp.ne.s32.totalorder %s270, %s271
      %p282 = scmp.eq.s32.totalorder %s24, 0
      %p283 = por %p281, %p282
      %p284 = scmp.ne.s32.totalorder %s270, %s271
      %p285 = scmp.eq.s32.totalorder %s25, 1
      %p286 = por %p284, %p285
      %p288 = scmp.ne.s32.totalorder %s271, %s287
      %p289 = scmp.eq.s32.totalorder %s25, 0
      %p290 = por %p288, %p289
      %p291 = scmp.le.s32.totalorder 1, %s19
      %p292 = scmp.lt.s32.totalorder %s19, 3
      %p293 = pnand %p291, %p292
      %p294 = pneg %p293
      // Predicated region
      $region9: #{transformer_block.5} parent=5 // pred_check
        _
      $region10: #{transformer_block.5} parent=5 // pred_check_branch
        %296 = sbr.rel (%p293) target = $region12
      $region11: #{transformer_block.5} parent=5 // pred_region
        %s297 = ssub.s32 %s19, 1
        // Predicated region
        $region13: #{transformer_block.5} parent=11 // pred_check
          %p298 = pneg %p108
        $region14: #{transformer_block.5} parent=11 // pred_check_branch
          %300 = sbr.rel (%p298) target = $region16
        $region15: #{transformer_block.5} parent=11 // pred_region
          _
        $region16: #{transformer_block.5} parent=11 // pred_fallthru
          _
        // Predicated region
        $region17: #{transformer_block.5} parent=11 // pred_check
          %p301 = pneg %p129
        $region18: #{transformer_block.5} parent=11 // pred_check_branch
          %303 = sbr.rel (%p301) target = $region20
        $region19: #{transformer_block.5} parent=11 // pred_region
          _
        $region20: #{transformer_block.5} parent=11 // pred_fallthru
          _
        // Predicated region
        $region21: #{transformer_block.5} parent=11 // pred_check
          %p304 = pneg %p150
        $region22: #{transformer_block.5} parent=11 // pred_check_branch
          %306 = sbr.rel (%p304) target = $region24
        $region23: #{transformer_block.5} parent=11 // pred_region
          _
        $region24: #{transformer_block.5} parent=11 // pred_fallthru
          _
        // Predicated region
        $region25: #{transformer_block.5} parent=11 // pred_check
          %p307 = pneg %p171
        $region26: #{transformer_block.5} parent=11 // pred_check_branch
          %309 = sbr.rel (%p307) target = $region28
        $region27: #{transformer_block.5} parent=11 // pred_region
          _
        $region28: #{transformer_block.5} parent=11 // pred_fallthru
          _
        // Predicated region
        $region29: #{transformer_block.5} parent=11 // pred_check
          %p310 = pneg %p192
        $region30: #{transformer_block.5} parent=11 // pred_check_branch
          %312 = sbr.rel (%p310) target = $region32
        $region31: #{transformer_block.5} parent=11 // pred_region
          _
        $region32: #{transformer_block.5} parent=11 // pred_fallthru
          _
        // Predicated region
        $region33: #{transformer_block.5} parent=11 // pred_check
          %p313 = pneg %p213
        $region34: #{transformer_block.5} parent=11 // pred_check_branch
          %315 = sbr.rel (%p313) target = $region36
        $region35: #{transformer_block.5} parent=11 // pred_region
          _
        $region36: #{transformer_block.5} parent=11 // pred_fallthru
          _
        // Predicated region
        $region37: #{transformer_block.5} parent=11 // pred_check
          %p316 = pneg %p234
        $region38: #{transformer_block.5} parent=11 // pred_check_branch
          %318 = sbr.rel (%p316) target = $region40
        $region39: #{transformer_block.5} parent=11 // pred_region
          _
        $region40: #{transformer_block.5} parent=11 // pred_fallthru
          _
        // Predicated region
        $region41: #{transformer_block.5} parent=11 // pred_check
          %p319 = pneg %p255
        $region42: #{transformer_block.5} parent=11 // pred_check_branch
          %321 = sbr.rel (%p319) target = $region44
        $region43: #{transformer_block.5} parent=11 // pred_region
          _
        $region44: #{transformer_block.5} parent=11 // pred_fallthru
          _
      $region12: #{transformer_block.5} parent=5 // pred_fallthru
        _
      %p322 = scmp.lt.s32.totalorder %s19, 2
      // Predicated region
      $region45: #{transformer_block.5} parent=5 // pred_check
        %p323 = pneg %p322
      $region46: #{transformer_block.5} parent=5 // pred_check_branch
        %325 = sbr.rel (%p323) target = $region48
      $region47: #{transformer_block.5} parent=5 // pred_region
        // Predicated region
        $region49: #{transformer_block.5} parent=47 // pred_check
          %p326 = pneg %p53
        $region50: #{transformer_block.5} parent=47 // pred_check_branch
          %328 = sbr.rel (%p326) target = $region52
        $region51: #{transformer_block.5} parent=47 // pred_region
          %p329 = scmp.lt.s32.totalorder %s26, 1
          %s330 = scalar_select %p329, %s26, 1
          %p331 = scmp.lt.s32.totalorder %s27, 0
          %s332 = scalar_select %p331, %s27, 0
          %s333 = sadd.s32 %s332, %s330
          %s334 = smul.addr %s333, 8
          %s335 = scalar_lea.vmem %s0, %s334
        $region52: #{transformer_block.5} parent=47 // pred_fallthru
          _
        // Predicated region
        $region53: #{transformer_block.5} parent=47 // pred_check
          %p336 = pneg %p81
        $region54: #{transformer_block.5} parent=47 // pred_check_branch
          %338 = sbr.rel (%p336) target = $region56
        $region55: #{transformer_block.5} parent=47 // pred_region
          %p339 = scmp.lt.s32.totalorder %s26, 1
          %s340 = scalar_select %p339, %s26, 1
          %p341 = scmp.lt.s32.totalorder %s27, 0
          %s342 = scalar_select %p341, %s27, 0
          %s343 = sadd.s32 %s342, %s340
          %s344 = smul.addr %s343, 4
          %s345 = scalar_lea.vmem %s1, %s344
        $region56: #{transformer_block.5} parent=47 // pred_fallthru
          _
      $region48: #{transformer_block.5} parent=5 // pred_fallthru
        _
      %p346 = scmp.le.s32.totalorder 1, %s19
      %p347 = scmp.lt.s32.totalorder %s19, 3
      %p348 = pnand %p346, %p347
      %p349 = pneg %p348
      // Predicated region
      $region57: #{transformer_block.5} parent=5 // pred_check
        _
      $region58: #{transformer_block.5} parent=5 // pred_check_branch
        %351 = sbr.rel (%p348) target = $region60
      $region59: #{transformer_block.5} parent=5 // pred_region
        %s352 = ssub.s32 %s19, 1
        %p353 = scmp.lt.s32.totalorder %s28, 1
        %s354 = scalar_select %p353, %s28, 1
        %p355 = scmp.lt.s32.totalorder %s29, 0
        %s356 = scalar_select %p355, %s29, 0
        %s357 = sadd.s32 %s356, %s354
        %s358 = smul.addr %s357, 8
        %s359 = scalar_lea.vmem %s0, %s358
        %p360 = pneg %p59
        %p361 = pneg %p56
        %p362 = scmp.lt.s32.totalorder %s28, 1
        %s363 = scalar_select %p362, %s28, 1
        %p364 = scmp.lt.s32.totalorder %s29, 0
        %s365 = scalar_select %p364, %s29, 0
        %s366 = sadd.s32 %s365, %s363
        %s367 = smul.addr %s366, 4
        %s368 = scalar_lea.vmem %s1, %s367
        %p369 = pneg %p87
        %p370 = pneg %p84
        %p371 = pneg %p108
        %p372 = pneg %p105
        %p373 = pneg %p129
        %p374 = pneg %p126
        %p375 = pneg %p150
        %p376 = pneg %p147
        %p377 = pneg %p171
        %p378 = pneg %p168
        %p379 = pneg %p192
        %p380 = pneg %p189
        %p381 = pneg %p213
        %p382 = pneg %p210
        %p383 = pneg %p234
        %p384 = pneg %p231
        %p385 = pneg %p255
        %p386 = pneg %p252
        %p387 = pneg %p283
        %p388 = pneg %p280
        %s389 = sand.u32 %s270, 1
        %s390 = scalar_lea.sflag [#allocation3], %s389
        %s391 = sand.u32 %s270, 1
        %s392 = smul.addr %s391, 8
        %s393 = scalar_lea.vmem [#allocation2], %s392
        %p394 = scmp.lt.s32.totalorder %s28, 1
        %s395 = scalar_select %p394, %s28, 1
        %p396 = scmp.lt.s32.totalorder %s29, 0
        %s397 = scalar_select %p396, %s29, 0
        %s398 = sadd.s32 %s397, %s395
        %s399 = smul.addr %s398, 8
        %s400 = scalar_lea.vmem %s0, %s399
        %p401 = scmp.lt.s32.totalorder %s28, 1
        %s402 = scalar_select %p401, %s28, 1
        %p403 = scmp.lt.s32.totalorder %s29, 0
        %s404 = scalar_select %p403, %s29, 0
        %s405 = sadd.s32 %s404, %s402
        %s406 = smul.addr %s405, 4
        %s407 = scalar_lea.vmem %s1, %s406
        %v409 = vld [vmem:[%s400] sm:$0xff]
        %v410 = vld [vmem:[%s407] sm:$0xf]
        %v411 = vld [vmem:[%s2] sm:$0xf]
        %v412 = vld [vmem:[%s2 + $0x4] sm:$0xf]
        %v413 = vld [vmem:[%s2 + $0x8] sm:$0xf]
        %v414 = vld [vmem:[%s2 + $0xc] sm:$0xf]
        %v415 = vld [vmem:[%s3] sm:$0x1]
        %v417 = vlaneseq
        %v418 = vshrl.u32 %v417, 7
        %v419 = vsub.s32 0, %v418
        %v420 = vrot.slane %v415, %v419
        %v426 = vunpack.c.l.b16 %v411
        %v427 = vunpack.c.l.b16 %v412
        %v428 = vunpack.c.l.b16 %v413
        %v429 = vunpack.c.l.b16 %v414
        %v430 = vpack.c.b16 %v427, %v426
        %v431 = vpack.c.b16 %v429, %v428
        %vm434 = vcmask 261120
        %v436 = vsel %vm434, %v410, 0
        %438 = vmatprep.subr.bf16.mxu0 0
        %439 = vmatpush1.bf16.msra.mxu0 0
        %440 = vmatprep.subr.bf16.mxu0 0
        %441 = vmatpush1.bf16.msra.mxu0 0
        %442 = vmatprep.subr.bf16.mxu0 0
        %443 = vmatpush1.bf16.msra.mxu0 0
        %444 = vmatprep.subr.bf16.mxu0 0
        %445 = vmatpush1.bf16.msra.mxu0 0
        %446 = vmatprep.subr.bf16.mxu0 0
        %447 = vmatpush1.bf16.msra.mxu0 0
        %448 = vmatprep.subr.bf16.mxu0 0
        %449 = vmatpush1.bf16.msra.mxu0 0
        %450 = vmatprep.subr.bf16.mxu0 0
        %451 = vmatpush1.bf16.msra.mxu0 %v431
        %452 = vmatprep.subr.bf16.mxu0 0
        %453 = vmatpush1.bf16.msra.mxu0 %v430
        %454 = vmatprep.subr.bf16.mxu0 0
        %455 = vmatpush2.bf16.msra.mxu0 0
        %456 = vmatprep.subr.bf16.mxu0 0
        %457 = vmatpush2.bf16.msra.mxu0 0
        %458 = vmatprep.subr.bf16.mxu0 0
        %459 = vmatpush2.bf16.msra.mxu0 0
        %460 = vmatprep.subr.bf16.mxu0 0
        %461 = vmatpush2.bf16.msra.mxu0 0
        %462 = vmatprep.subr.bf16.mxu0 0
        %463 = vmatpush2.bf16.msra.mxu0 0
        %464 = vmatprep.subr.bf16.mxu0 0
        %465 = vmatpush2.bf16.msra.mxu0 0
        %466 = vmatprep.subr.bf16.mxu0 0
        %467 = vmatpush2.bf16.msra.mxu0 0
        %468 = vmatprep.subr.bf16.mxu0 0
        %469 = vmatpush2.bf16.msra.mxu0 0
        %470 = vmatprep.mubr.bf16.mxu0 0
        %471 = vmatmul.mubr.bf16.gmra.mxu0 %v436
        %v472 = vpop.f32.mrf.mxu0
        %v473 = vadd.f32 %v420, %v472
        %v474 = vpop.f32.mrf.mxu0
        %v475 = vpop.f32.mrf.mxu0
        %v476 = vpop.f32.mrf.mxu0
        %477 = vdwg.mxu0
        %v478 = vadd.f32 %v409, %v473
        %v479 = vsel %vm434, %v478, 0.0
        %480 = vadd.xlane.f32.xlu0 %v479
        %v481 = vpop.xlane.xlu0 %480
        %v482 = vrcp.pop 32.0
        %v483 = vmul.f32 %v481, %v482
        %v484 = vsub.f32 %v478, %v483
        %v485 = vmul.f32 %v484, %v484
        %v486 = vsel %vm434, %v485, 0.0
        %487 = vadd.xlane.f32.xlu0 %v486
        %v488 = vpop.xlane.xlu0 %487
        %v489 = vmul.f32 %v488, %v482
        %v490 = vadd.f32 %v489, 1e-05
        %v491 = vrsqrt.pop %v490
        %v492 = vmul.f32 %v484, %v491
        %v493 = vld [vmem:[%s4] sm:$0x1]
        %v495 = vlaneseq
        %v496 = vshrl.u32 %v495, 7
        %v497 = vsub.s32 0, %v496
        %v498 = vrot.slane %v493, %v497
        %v500 = vmul.f32 %v492, %v498
        %v501 = vld [vmem:[%s5] sm:$0x1]
        %v503 = vlaneseq
        %v504 = vshrl.u32 %v503, 7
        %v505 = vsub.s32 0, %v504
        %v506 = vrot.slane %v501, %v505
        %v508 = vadd.f32 %v500, %v506
        %v509 = vpack.c.bf16 %v508, %v508
        %v510 = vld [vmem:[%s6] sm:$0xf]
        %v511 = vld [vmem:[%s6 + $0x4] sm:$0xf]
        %v512 = vld [vmem:[%s6 + $0x8] sm:$0xf]
        %v513 = vld [vmem:[%s6 + $0xc] sm:$0xf]
        %v514 = vld [vmem:[%s7] sm:$0x1]
        %v516 = vlaneseq
        %v517 = vshrl.u32 %v516, 7
        %v518 = vsub.s32 0, %v517
        %v519 = vrot.slane %v514, %v518
        %v525 = vunpack.c.l.b16 %v510
        %v526 = vunpack.c.l.b16 %v511
        %v527 = vunpack.c.l.b16 %v512
        %v528 = vunpack.c.l.b16 %v513
        %v529 = vpack.c.b16 %v526, %v525
        %v530 = vpack.c.b16 %v528, %v527
        %v534 = vsel %vm434, %v509, 0
        %536 = vmatprep.subr.bf16.mxu0 0
        %537 = vmatpush1.bf16.msra.mxu0 0
        %538 = vmatprep.subr.bf16.mxu0 0
        %539 = vmatpush1.bf16.msra.mxu0 0
        %540 = vmatprep.subr.bf16.mxu0 0
        %541 = vmatpush1.bf16.msra.mxu0 0
        %542 = vmatprep.subr.bf16.mxu0 0
        %543 = vmatpush1.bf16.msra.mxu0 0
        %544 = vmatprep.subr.bf16.mxu0 0
        %545 = vmatpush1.bf16.msra.mxu0 0
        %546 = vmatprep.subr.bf16.mxu0 0
        %547 = vmatpush1.bf16.msra.mxu0 0
        %548 = vmatprep.subr.bf16.mxu0 0
        %549 = vmatpush1.bf16.msra.mxu0 %v530
        %550 = vmatprep.subr.bf16.mxu0 0
        %551 = vmatpush1.bf16.msra.mxu0 %v529
        %552 = vmatprep.subr.bf16.mxu0 0
        %553 = vmatpush2.bf16.msra.mxu0 0
        %554 = vmatprep.subr.bf16.mxu0 0
        %555 = vmatpush2.bf16.msra.mxu0 0
        %556 = vmatprep.subr.bf16.mxu0 0
        %557 = vmatpush2.bf16.msra.mxu0 0
        %558 = vmatprep.subr.bf16.mxu0 0
        %559 = vmatpush2.bf16.msra.mxu0 0
        %560 = vmatprep.subr.bf16.mxu0 0
        %561 = vmatpush2.bf16.msra.mxu0 0
        %562 = vmatprep.subr.bf16.mxu0 0
        %563 = vmatpush2.bf16.msra.mxu0 0
        %564 = vmatprep.subr.bf16.mxu0 0
        %565 = vmatpush2.bf16.msra.mxu0 0
        %566 = vmatprep.subr.bf16.mxu0 0
        %567 = vmatpush2.bf16.msra.mxu0 0
        %568 = vmatprep.mubr.bf16.mxu0 0
        %569 = vmatmul.mubr.bf16.gmra.mxu0 %v534
        %v570 = vpop.f32.mrf.mxu0
        %v571 = vadd.f32 %v519, %v570
        %v572 = vpop.f32.mrf.mxu0
        %v573 = vpop.f32.mrf.mxu0
        %v574 = vpop.f32.mrf.mxu0
        %575 = vdwg.mxu0
        %v576 = vmul.f32 %v571, 0.5
        %v577 = vmul.f32 %v571, 0.70710677
        %v578 = verf.f32.pop %v577
        %v579 = vadd.f32 %v578, 1.0
        %v580 = vmul.f32 %v576, %v579
        %v581 = vpack.c.bf16 %v580, %v580
        %v582 = vld [vmem:[%s8] sm:$0xf]
        %v583 = vld [vmem:[%s8 + $0x4] sm:$0xf]
        %v584 = vld [vmem:[%s8 + $0x8] sm:$0xf]
        %v585 = vld [vmem:[%s8 + $0xc] sm:$0xf]
        %v586 = vld [vmem:[%s8 + $0x10] sm:$0xf]
        %v587 = vld [vmem:[%s8 + $0x14] sm:$0xf]
        %v588 = vld [vmem:[%s8 + $0x18] sm:$0xf]
        %v589 = vld [vmem:[%s8 + $0x1c] sm:$0xf]
        %v590 = vld [vmem:[%s9] sm:$0x1]
        %v592 = vlaneseq
        %v593 = vshrl.u32 %v592, 7
        %v594 = vsub.s32 0, %v593
        %v595 = vrot.slane %v590, %v594
        %v605 = vunpack.c.l.b16 %v582
        %v606 = vunpack.c.l.b16 %v583
        %v607 = vunpack.c.l.b16 %v584
        %v608 = vunpack.c.l.b16 %v585
        %v609 = vunpack.c.l.b16 %v586
        %v610 = vunpack.c.l.b16 %v587
        %v611 = vunpack.c.l.b16 %v588
        %v612 = vunpack.c.l.b16 %v589
        %v613 = vpack.c.b16 %v606, %v605
        %v614 = vpack.c.b16 %v608, %v607
        %v615 = vpack.c.b16 %v610, %v609
        %v616 = vpack.c.b16 %v612, %v611
        %vm621 = vcmask 523264
        %v623 = vsel %vm621, %v581, 0
        %625 = vmatprep.subr.bf16.mxu0 0
        %626 = vmatpush1.bf16.msra.mxu0 0
        %627 = vmatprep.subr.bf16.mxu0 0
        %628 = vmatpush1.bf16.msra.mxu0 0
        %629 = vmatprep.subr.bf16.mxu0 0
        %630 = vmatpush1.bf16.msra.mxu0 0
        %631 = vmatprep.subr.bf16.mxu0 0
        %632 = vmatpush1.bf16.msra.mxu0 0
        %633 = vmatprep.subr.bf16.mxu0 0
        %634 = vmatpush1.bf16.msra.mxu0 %v616
        %635 = vmatprep.subr.bf16.mxu0 0
        %636 = vmatpush1.bf16.msra.mxu0 %v615
        %637 = vmatprep.subr.bf16.mxu0 0
        %638 = vmatpush1.bf16.msra.mxu0 %v614
        %639 = vmatprep.subr.bf16.mxu0 0
        %640 = vmatpush1.bf16.msra.mxu0 %v613
        %641 = vmatprep.subr.bf16.mxu0 0
        %642 = vmatpush2.bf16.msra.mxu0 0
        %643 = vmatprep.subr.bf16.mxu0 0
        %644 = vmatpush2.bf16.msra.mxu0 0
        %645 = vmatprep.subr.bf16.mxu0 0
        %646 = vmatpush2.bf16.msra.mxu0 0
        %647 = vmatprep.subr.bf16.mxu0 0
        %648 = vmatpush2.bf16.msra.mxu0 0
        %649 = vmatprep.subr.bf16.mxu0 0
        %650 = vmatpush2.bf16.msra.mxu0 0
        %651 = vmatprep.subr.bf16.mxu0 0
        %652 = vmatpush2.bf16.msra.mxu0 0
        %653 = vmatprep.subr.bf16.mxu0 0
        %654 = vmatpush2.bf16.msra.mxu0 0
        %655 = vmatprep.subr.bf16.mxu0 0
        %656 = vmatpush2.bf16.msra.mxu0 0
        %657 = vmatprep.mubr.bf16.mxu0 0
        %658 = vmatmul.mubr.bf16.gmra.mxu0 %v623
        %v659 = vpop.f32.mrf.mxu0
        %v660 = vadd.f32 %v595, %v659
        %v661 = vpop.f32.mrf.mxu0
        %v662 = vpop.f32.mrf.mxu0
        %v663 = vpop.f32.mrf.mxu0
        %664 = vdwg.mxu0
        %v665 = vadd.f32 %v478, %v660
        %666 = vst.msk [vmem:[%s393] sm:$0xff] %vm434, %v665
        %s667 = sand.u32 %s270, 1
        %s668 = scalar_lea.sflag [#allocation3], %s667
        %s669 = sand.u32 %s270, 1
        %s670 = smul.addr %s669, 8
        %s671 = scalar_lea.vmem [#allocation2], %s670
        // Predicated region
        $region61: #{transformer_block.5} parent=59 // pred_check
          %p672 = pneg %p280
        $region62: #{transformer_block.5} parent=59 // pred_check_branch
          %674 = sbr.rel (%p672) target = $region64
        $region63: #{transformer_block.5} parent=59 // pred_region
          %s676 = ssub.s32 128, 128
          %677 = vsyncadd %s668, %s676
          %s678 = sadd.s32 %s29, %s28
          %s679 = smul.addr %s678, 128
          %s680 = scalar_lea.hbm %s10, %s679
          %s682 = sshll.u32 %s671, 4
          %s683 = int_to_ptr.vmem [resolvable:$true] %s682
          %685 = dma.vmem_to_hbm [thread:$0]  %s683, 128, %s680, %s668
        $region64: #{transformer_block.5} parent=59 // pred_fallthru
          _
      $region60: #{transformer_block.5} parent=5 // pred_fallthru
        _
      %p686 = scmp.le.s32.totalorder 2, %s19
      // Predicated region
      $region65: #{transformer_block.5} parent=5 // pred_check
        %p687 = pneg %p686
      $region66: #{transformer_block.5} parent=5 // pred_check_branch
        %689 = sbr.rel (%p687) target = $region68
      $region67: #{transformer_block.5} parent=5 // pred_region
        %s690 = ssub.s32 %s19, 2
        // Predicated region
        $region69: #{transformer_block.5} parent=67 // pred_check
          %p691 = pneg %p286
        $region70: #{transformer_block.5} parent=67 // pred_check_branch
          %693 = sbr.rel (%p691) target = $region72
        $region71: #{transformer_block.5} parent=67 // pred_region
          %s694 = sand.u32 %s271, 1
          %s695 = scalar_lea.sflag [#allocation3], %s694
          %s696 = sand.u32 %s271, 1
          %s697 = smul.addr %s696, 8
          %s698 = scalar_lea.vmem [#allocation2], %s697
          %699 = dma.done %s695, 128
        $region72: #{transformer_block.5} parent=67 // pred_fallthru
          _
      $region68: #{transformer_block.5} parent=5 // pred_fallthru
        _
    $region6: #{transformer_block.5} parent=1 // loop_footer
      %s23 = sadd.s32 1, %s19
    $region7: #{transformer_block.5} parent=1 // loop_footer_branch
      %18 = sbr.rel target = $region3
    $region8: #{transformer_block.5} parent=1 // loop_exit
      _
    %700 = vsyncpa [#allocation3], 1
    %s701 = scalar_lea.sflag [#allocation3], 1
    %702 = vsyncpa %s701, 1

</llo_original>
